<compile_context>
chip_gen: v7x
topology: tpu7x:2x2x1
jax: 0.10.0
libtpu: 0.0.40
codegen_flags: <defaults>
</compile_context>

<pallas_src>
import functools

import numpy as np

import jax
import jax.numpy as jnp
from jax.experimental import pallas as pl
from jax.experimental.pallas import tpu as pltpu

BATCH = 2
IN_PLANES = 8
FILTER_SIZE = 8
MAX_PLANES = 8
NBLOCKS = 2
IN_DIM = 16
EPS = 1e-5

P16 = BATCH * 16 * 16          # 512 pixels at 16x16 (lane-dense)
P8 = BATCH * 8 * 8             # 128 pixels at 8x8
P4 = BATCH * 4 * 4             # 32 pixels at 4x4

# Row offsets / channel counts of each layer inside the packed (2, 80, 1)
# scale|shift tensor.  The final conv's bias sits at rows 72:80 of the shift
# plane; every other conv bias is folded into the following BN shift.
_SS_OFF = (0, 8, 16, 24, 32, 40, 48, 64)
_SS_CH = (8, 8, 8, 8, 8, 8, 16, 8)
_B7_OFF = 72


# --------------------------- in-kernel building blocks -----------------------

def _bn_relu(a, scale, shift):
    # Inference BatchNorm folded to per-channel scale/shift, fused with ReLU.
    return jnp.maximum(a * scale + shift, 0.0)


def _roll_lanes(a, delta, use_roll, roll_like_jnp):
    """Circular lane shift: out[:, i] = a[:, (i + delta) mod P] (P % 128 == 0)."""
    P = a.shape[1]
    s = (-delta) % P
    if s == 0:
        return a
    if use_roll:
        return pltpu.roll(a, shift=(s if roll_like_jnp else P - s), axis=1)
    # Fallback (only if pltpu.roll failed to lower in the start-up probe):
    # static lane-slice concatenation, never an in-kernel (P, P) matmul.
    return jnp.concatenate([a[:, P - s:], a[:, :P - s]], axis=1)


def _conv3x3(a, w, masks, W, *, use_roll, roll_like_jnp):
    """3x3 / pad 1 / stride 1 conv on a channels-first flat activation.

    a     : (Cin, P) f32, pixel p = n*H*W + y*W + x, P a multiple of 128
    w     : (Cout, 9*Cin) bf16, column = ((dy+1)*3 + (dx+1)) * Cin + cin
    masks : (9, P) f32 host-precomputed border-validity masks
    The 9 taps are lane-rolled, border-masked views of `a`, stacked along the
    sublane axis so the whole conv is a single K = 9*Cin bf16 MXU matmul with
    f32 accumulation.  Element-wise masking stays in f32 (v5e-friendly); only
    the final matmul operand is cast to bf16 (one cast pass per conv).
    """
    taps = []
    t = 0
    for dy in (-1, 0, 1):
        for dx in (-1, 0, 1):
            delta = dy * W + dx
            if delta == 0:
                taps.append(a)
            else:
                shifted = _roll_lanes(a, delta, use_roll, roll_like_jnp)
                taps.append(shifted * masks[t:t + 1, :])
            t += 1
    stacked = jnp.concatenate(taps, axis=0).astype(jnp.bfloat16)     # (9*Cin, P)
    return jnp.dot(w, stacked, preferred_element_type=jnp.float32)   # (Cout, P)


def _conv3x3_p32(a, w, g_ref):
    """Same conv at the 4x4 level (P = 32, not lane-roll friendly).

    g_ref : (8, 32, 32) bf16 ref of per-tap shift+border-mask gather matrices
            (taps 0,1,2,3,5,6,7,8), precomputed on the host.
    """
    a_bf = a.astype(jnp.bfloat16)
    taps = []
    k = 0
    for t in range(9):
        if t == 4:
            taps.append(a)
        else:
            taps.append(jnp.dot(a_bf, g_ref[k],
                                preferred_element_type=jnp.float32))
            k += 1
    stacked = jnp.concatenate(taps, axis=0).astype(jnp.bfloat16)     # (72, 32)
    return jnp.dot(w, stacked, preferred_element_type=jnp.float32)   # (8, 32)


# --------------------------------- fused kernel ------------------------------

def _make_unet_kernel(use_roll, roll_like_jnp):
    conv = functools.partial(_conv3x3, use_roll=use_roll,
                             roll_like_jnp=roll_like_jnp)

    def kernel(x_ref, wa_ref, wb_ref, ss_ref, masks_ref, g4_ref,
               d16_ref, d8_ref, u8_ref, u16_ref, o_ref):
        a0 = x_ref[...]                              # (8, 512) f32, lane-dense

        maskv = masks_ref[...]                       # (9, 640) f32
        m16 = maskv[:, 0:P16]                        # (9, 512)
        m8 = maskv[:, P16:P16 + P8]                  # (9, 128)
        d16 = d16_ref[...]                           # (512, 128) bf16
        d8 = d8_ref[...]                             # (128, 32)  bf16
        u8 = u8_ref[...]                             # (32, 128)  bf16
        u16 = u16_ref[...]                           # (128, 512) bf16
        scale_plane = ss_ref[0]                      # (80, 1) f32
        shift_plane = ss_ref[1]                      # (80, 1) f32

        def bn(layer, h):
            off, c = _SS_OFF[layer], _SS_CH[layer]
            return _bn_relu(h, scale_plane[off:off + c, :],
                            shift_plane[off:off + c, :])

        def resample(h, sel):                        # bf16 0/1 selection matmul
            return jnp.dot(h.astype(jnp.bfloat16), sel,
                           preferred_element_type=jnp.float32)

        # ------------------------------ encoder ------------------------------
        h = conv(bn(0, a0), wa_ref[0], m16, 16)      # down[0]: bn1/relu1 + conv1
        h = resample(h, d16)                         #   stride 2 -> 8x8
        d0 = conv(bn(1, h), wa_ref[1], m8, 8)        # down[0]: bn2/relu2 + conv2

        h = conv(bn(2, d0), wa_ref[2], m8, 8)        # down[1]: bn1/relu1 + conv1
        h = resample(h, d8)                          #   stride 2 -> 4x4
        d1 = _conv3x3_p32(bn(3, h), wa_ref[3], g4_ref)   # down[1]: bn2/relu2 + conv2

        # ------------------------------ decoder ------------------------------
        h = resample(bn(4, d1), u8)                  # up[1]: bn0/relu0 + deconv0
        h = conv(h, wa_ref[4], m8, 8)                #   (zero-insert + flipped conv)
        u1 = conv(bn(5, h), wa_ref[5], m8, 8)        # up[1]: bn1/relu1 + deconv1

        cat = jnp.concatenate([u1, d0], axis=0)      # torch.cat([out, skip], dim=1)

        h = resample(bn(6, cat), u16)                # up[0]: bn0/relu0 + deconv0
        h = conv(h, wb_ref[...], m16, 16)            #   (Cin=16 -> K=144 matmul)
        y = conv(bn(7, h), wa_ref[6], m16, 16)       # up[0]: bn1/relu1 + deconv1
        y = y + shift_plane[_B7_OFF:_B7_OFF + 8, :]  # only non-folded conv bias

        o_ref[...] = y + a0                          # residual: out += x_skip

    return kernel


def unet_module_forward(x_nchw, kp, *, use_roll=True, roll_like_jnp=True):
    N, C, H, W = x_nchw.shape
    assert (N, C, H, W) == (BATCH, IN_PLANES, IN_DIM, IN_DIM)
    # Layout plumbing stays in the wrapper: the kernel consumes / produces a
    # channels-first (C, N*H*W) lane-dense slab.
    x2d = jnp.transpose(x_nchw, (1, 0, 2, 3)).reshape(C, N * H * W)
    out2d = pl.pallas_call(
        _make_unet_kernel(use_roll, roll_like_jnp),
        out_shape=jax.ShapeDtypeStruct((MAX_PLANES, N * H * W), jnp.float32),
    )(x2d, kp["wa"], kp["wb"], kp["ss"], kp["masks"], kp["g4"],
      kp["d16"], kp["d8"], kp["u8"], kp["u16"])
    return jnp.transpose(out2d.reshape(MAX_PLANES, N, H, W), (1, 0, 2, 3))


# ------------------------------- roll direction probe ------------------------

def _roll_probe_kernel(o_ref):
    idx = jax.lax.broadcasted_iota(jnp.int32, (8, 128), 1).astype(jnp.float32)
    o_ref[...] = pltpu.roll(idx, shift=1, axis=1)


def _probe_roll():
    """Check that pltpu.roll lowers and determine its direction.
    Returns (use_roll, roll_like_jnp)."""
    try:
        probe = pl.pallas_call(
            _roll_probe_kernel,
            out_shape=jax.ShapeDtypeStruct((8, 128), jnp.float32),
        )()
        return True, bool(probe[0, 0] == 127.0)
    except Exception:
        return False, True


# ---------------------------- parameter creation -----------------------------

def _init_bn(key, C):
    k1, k2, k3, k4 = jax.random.split(key, 4)
    return dict(
        gamma=jax.random.uniform(k1, (C,), jnp.float32, 0.5, 1.5),
        beta=0.1 * jax.random.normal(k2, (C,), jnp.float32),
        mean=0.1 * jax.random.normal(k3, (C,), jnp.float32),
        var=jax.random.uniform(k4, (C,), jnp.float32, 0.5, 1.5),
    )


def _init_conv(key, Cout, Cin, k=3):
    k1, k2 = jax.random.split(key)
    return dict(
        w=0.1 * jax.random.normal(k1, (Cout, Cin, k, k), jnp.float32),
        b=0.1 * jax.random.normal(k2, (Cout,), jnp.float32),
    )


def _init_deconv(key, Cin, Cout, k=3):
    k1, k2 = jax.random.split(key)
    return dict(
        w=0.1 * jax.random.normal(k1, (Cin, Cout, k, k), jnp.float32),
        b=0.1 * jax.random.normal(k2, (Cout,), jnp.float32),
    )


def init_unet_module_params(key):
    params = dict(down=[], up=[])
    for i in range(NBLOCKS):
        in_ = IN_PLANES if i == 0 else FILTER_SIZE
        key, k1, k2, k3, k4 = jax.random.split(key, 5)
        params["down"].append(dict(
            bn1=_init_bn(k1, in_),
            conv1=_init_conv(k2, FILTER_SIZE, in_),           # 3x3, pad 1, stride 2
            bn2=_init_bn(k3, FILTER_SIZE),
            conv2=_init_conv(k4, FILTER_SIZE, FILTER_SIZE),   # 3x3, pad 1, stride 1
        ))
        out_ = FILTER_SIZE if i == NBLOCKS - 1 else 2 * FILTER_SIZE
        key, k1, k2, k3, k4 = jax.random.split(key, 5)
        params["up"].append(dict(
            bn0=_init_bn(k1, out_),
            deconv0=_init_deconv(k2, out_, FILTER_SIZE),      # convT 3x3, s 2, op 1
            bn1=_init_bn(k3, FILTER_SIZE),
            deconv1=_init_conv(k4, FILTER_SIZE, FILTER_SIZE), # 3x3, pad 1, stride 1
        ))
    return params


# -------------------- kernel-ready parameter preparation ---------------------

def _conv_w2d(w_oihw):
    # Conv2d weight (Cout, Cin, 3, 3) -> (Cout, 9*Cin), col = tap*Cin + cin.
    co, ci = w_oihw.shape[0], w_oihw.shape[1]
    return jnp.transpose(w_oihw, (0, 2, 3, 1)).reshape(co, 9 * ci)


def _deconv_w2d(w_iohw):
    # ConvTranspose2d weight (Cin, Cout, 3, 3) -> equivalent direct-conv weight
    # (flip spatially, swap in/out channels), then stack to (Cout, 9*Cin).
    w_conv = jnp.transpose(w_iohw[:, :, ::-1, ::-1], (1, 0, 2, 3))
    return _conv_w2d(w_conv)


def _fold_bn(bn, folded_bias):
    scale = bn["gamma"] * jax.lax.rsqrt(bn["var"] + EPS)
    shift = bn["beta"] - bn["mean"] * scale
    if folded_bias is not None:
        shift = shift + scale * folded_bias     # previous conv's bias folded in
    return scale.astype(jnp.float32), shift.astype(jnp.float32)


def _border_masks(H, W, N):
    P = N * H * W
    p = np.arange(P)
    x = p % W
    y = (p // W) % H
    out = np.zeros((9, P), np.float32)
    t = 0
    for dy in (-1, 0, 1):
        for dx in (-1, 0, 1):
            out[t] = ((x + dx >= 0) & (x + dx < W) &
                      (y + dy >= 0) & (y + dy < H)).astype(np.float32)
            t += 1
    return out


def _down_matrix(H, W, N):
    # 0/1 matrix selecting even rows/cols: (N*H*W, N*(H//2)*(W//2)).
    Hs, Ws = H // 2, W // 2
    D = np.zeros((N * H * W, N * Hs * Ws), np.float32)
    for n in range(N):
        for i in range(0, H, 2):
            for j in range(0, W, 2):
                D[n * H * W + i * W + j,
                  n * Hs * Ws + (i // 2) * Ws + (j // 2)] = 1.0
    return D


def _gather_mats_4x4(N):
    # Per-tap shift+border-mask 0/1 matrices for the 4x4 level (P = 32).
    H = W = 4
    P = N * H * W
    p = np.arange(P)
    x = p % W
    y = (p // W) % H
    mats = []
    for dy in (-1, 0, 1):
        for dx in (-1, 0, 1):
            if dy == 0 and dx == 0:
                continue
            delta = dy * W + dx
            valid = (x + dx >= 0) & (x + dx < W) & (y + dy >= 0) & (y + dy < H)
            G = np.zeros((P, P), np.float32)
            for pp in range(P):
                if valid[pp]:
                    G[pp + delta, pp] = 1.0
            mats.append(G)
    return np.stack(mats, axis=0)               # (8, 32, 32)


def prepare_kernel_params(params):
    """Pack module params into the handful of arrays the fused kernel consumes.
    Runs once on the host (all BatchNorm folding / bias folding / weight
    reshaping / 0-1 matrix generation is inference-constant)."""
    d0, d1 = params["down"]
    u0, u1 = params["up"]

    # (BN, conv, weight transform, previous-conv bias folded into this BN shift)
    layers = [
        (d0["bn1"], d0["conv1"], _conv_w2d, None),
        (d0["bn2"], d0["conv2"], _conv_w2d, d0["conv1"]["b"]),
        (d1["bn1"], d1["conv1"], _conv_w2d, d0["conv2"]["b"]),
        (d1["bn2"], d1["conv2"], _conv_w2d, d1["conv1"]["b"]),
        (u1["bn0"], u1["deconv0"], _deconv_w2d, d1["conv2"]["b"]),   # up[1] first
        (u1["bn1"], u1["deconv1"], _conv_w2d, u1["deconv0"]["b"]),
        (u0["bn0"], u0["deconv0"], _deconv_w2d,
         jnp.concatenate([u1["deconv1"]["b"], d0["conv2"]["b"]])),   # cat([u1, d0])
        (u0["bn1"], u0["deconv1"], _conv_w2d, u0["deconv0"]["b"]),
    ]

    w2ds, scales, shifts = [], [], []
    for bn, cv, to2d, fb in layers:
        s, t = _fold_bn(bn, fb)
        scales.append(s)
        shifts.append(t)
        w2ds.append(to2d(cv["w"]).astype(jnp.bfloat16))

    wa = jnp.stack([w2ds[i] for i in (0, 1, 2, 3, 4, 5, 7)], axis=0)  # (7, 8, 72) bf16
    wb = w2ds[6]                                                      # (8, 144)  bf16

    scale_rows = jnp.concatenate(scales)                              # (72,)
    shift_rows = jnp.concatenate(shifts)                              # (72,)
    b7 = params["up"][0]["deconv1"]["b"]                              # (8,) kept explicit
    ss = jnp.stack([
        jnp.concatenate([scale_rows, jnp.zeros((8,), jnp.float32)]),
        jnp.concatenate([shift_rows, b7]),
    ]).reshape(2, 80, 1).astype(jnp.float32)

    masks = jnp.asarray(np.concatenate(
        [_border_masks(16, 16, BATCH), _border_masks(8, 8, BATCH)], axis=1))  # (9, 640)
    g4 = jnp.asarray(_gather_mats_4x4(BATCH)).astype(jnp.bfloat16)            # (8, 32, 32)

    D16 = _down_matrix(16, 16, BATCH)
    D8 = _down_matrix(8, 8, BATCH)
    return dict(
        wa=wa, wb=wb, ss=ss, masks=masks, g4=g4,
        d16=jnp.asarray(D16).astype(jnp.bfloat16),       # (512, 128)
        d8=jnp.asarray(D8).astype(jnp.bfloat16),         # (128, 32)
        u8=jnp.asarray(D8.T).astype(jnp.bfloat16),       # (32, 128)  zero-insert 4->8
        u16=jnp.asarray(D16.T).astype(jnp.bfloat16),     # (128, 512) zero-insert 8->16
    )


# ----------------------------------- main -------------------------------------

if __name__ == "__main__":
    key = jax.random.PRNGKey(0)
    kx, kparam = jax.random.split(key)
    # NCHW input matching the PyTorch module: (batch=2, channels=8, 16, 16)
    x = jax.random.normal(kx, (BATCH, IN_PLANES, IN_DIM, IN_DIM), jnp.float32)
    params = init_unet_module_params(kparam)
    kp = prepare_kernel_params(params)

    use_roll, roll_like_jnp = _probe_roll()

    fwd = jax.jit(functools.partial(unet_module_forward,
                                    use_roll=use_roll,
                                    roll_like_jnp=roll_like_jnp))
    out = fwd(x, kp)
    jax.block_until_ready(out)

    assert out.shape == (BATCH, MAX_PLANES, IN_DIM, IN_DIM), out.shape
    assert bool(jnp.all(jnp.isfinite(out)))
    print("KERNEL_OK")
</pallas_src>

<mosaic_0001>
module attributes {stable_mosaic.version = 11 : i64} {
  func.func @kernel(%arg0: memref<8x512xf32, #tpu.memory_space<vmem>>, %arg1: memref<7x8x72xbf16, #tpu.memory_space<vmem>>, %arg2: memref<8x144xbf16, #tpu.memory_space<vmem>>, %arg3: memref<2x80x1xf32, #tpu.memory_space<vmem>>, %arg4: memref<9x640xf32, #tpu.memory_space<vmem>>, %arg5: memref<8x32x32xbf16, #tpu.memory_space<vmem>>, %arg6: memref<512x128xbf16, #tpu.memory_space<vmem>>, %arg7: memref<128x32xbf16, #tpu.memory_space<vmem>>, %arg8: memref<32x128xbf16, #tpu.memory_space<vmem>>, %arg9: memref<128x512xbf16, #tpu.memory_space<vmem>>, %arg10: memref<8x512xf32, #tpu.memory_space<vmem>>) attributes {dimension_semantics = [], scalar_prefetch = 0 : i64, scratch_operands = 0 : i64, tpu.core_type = #tpu.core_type<tc>} {
    %c0 = arith.constant 0 : index
    %c0_0 = arith.constant 0 : index
    %0 = vector.load %arg0[%c0, %c0_0] : memref<8x512xf32, #tpu.memory_space<vmem>>, vector<8x512xf32>
    %c0_1 = arith.constant 0 : index
    %c0_2 = arith.constant 0 : index
    %1 = vector.load %arg4[%c0_1, %c0_2] : memref<9x640xf32, #tpu.memory_space<vmem>>, vector<9x640xf32>
    %2 = vector.extract_strided_slice %1 {offsets = [0, 0], sizes = [9, 512], strides = [1, 1]} : vector<9x640xf32> to vector<9x512xf32>
    %3 = vector.extract_strided_slice %1 {offsets = [0, 512], sizes = [9, 128], strides = [1, 1]} : vector<9x640xf32> to vector<9x128xf32>
    %c0_3 = arith.constant 0 : index
    %c0_4 = arith.constant 0 : index
    %4 = vector.load %arg6[%c0_3, %c0_4] : memref<512x128xbf16, #tpu.memory_space<vmem>>, vector<512x128xbf16>
    %c0_5 = arith.constant 0 : index
    %c0_6 = arith.constant 0 : index
    %5 = vector.load %arg7[%c0_5, %c0_6] : memref<128x32xbf16, #tpu.memory_space<vmem>>, vector<128x32xbf16>
    %c0_7 = arith.constant 0 : index
    %c0_8 = arith.constant 0 : index
    %6 = vector.load %arg8[%c0_7, %c0_8] : memref<32x128xbf16, #tpu.memory_space<vmem>>, vector<32x128xbf16>
    %c0_9 = arith.constant 0 : index
    %c0_10 = arith.constant 0 : index
    %7 = vector.load %arg9[%c0_9, %c0_10] : memref<128x512xbf16, #tpu.memory_space<vmem>>, vector<128x512xbf16>
    %c0_11 = arith.constant 0 : index
    %c0_12 = arith.constant 0 : index
    %c0_13 = arith.constant 0 : index
    %8 = vector.load %arg3[%c0_11, %c0_12, %c0_13] : memref<2x80x1xf32, #tpu.memory_space<vmem>>, vector<1x80x1xf32>
    %9 = vector.shape_cast %8 : vector<1x80x1xf32> to vector<80x1xf32>
    %c1 = arith.constant 1 : index
    %c0_14 = arith.constant 0 : index
    %c0_15 = arith.constant 0 : index
    %10 = vector.load %arg3[%c1, %c0_14, %c0_15] : memref<2x80x1xf32, #tpu.memory_space<vmem>>, vector<1x80x1xf32>
    %11 = vector.shape_cast %10 : vector<1x80x1xf32> to vector<80x1xf32>
    %12 = vector.extract_strided_slice %9 {offsets = [0, 0], sizes = [8, 1], strides = [1, 1]} : vector<80x1xf32> to vector<8x1xf32>
    %13 = vector.extract_strided_slice %11 {offsets = [0, 0], sizes = [8, 1], strides = [1, 1]} : vector<80x1xf32> to vector<8x1xf32>
    %14 = vector.broadcast %12 : vector<8x1xf32> to vector<8x512xf32>
    %15 = arith.mulf %0, %14 : vector<8x512xf32>
    %16 = vector.broadcast %13 : vector<8x1xf32> to vector<8x512xf32>
    %17 = arith.addf %15, %16 : vector<8x512xf32>
    %cst = arith.constant 0.000000e+00 : f32
    %18 = vector.broadcast %cst : f32 to vector<8x512xf32>
    %19 = arith.maximumf %17, %18 : vector<8x512xf32>
    %c0_16 = arith.constant 0 : index
    %c0_17 = arith.constant 0 : index
    %c0_18 = arith.constant 0 : index
    %20 = vector.load %arg1[%c0_16, %c0_17, %c0_18] : memref<7x8x72xbf16, #tpu.memory_space<vmem>>, vector<1x8x72xbf16>
    %21 = vector.shape_cast %20 : vector<1x8x72xbf16> to vector<8x72xbf16>
    %22 = vector.extract_strided_slice %19 {offsets = [0, 495], sizes = [8, 17], strides = [1, 1]} : vector<8x512xf32> to vector<8x17xf32>
    %23 = vector.extract_strided_slice %19 {offsets = [0, 0], sizes = [8, 495], strides = [1, 1]} : vector<8x512xf32> to vector<8x495xf32>
    %24 = tpu.concatenate %22, %23 in 1 : vector<8x17xf32>, vector<8x495xf32> -> vector<8x512xf32>
    %25 = vector.extract_strided_slice %2 {offsets = [0, 0], sizes = [1, 512], strides = [1, 1]} : vector<9x512xf32> to vector<1x512xf32>
    %26 = vector.broadcast %25 : vector<1x512xf32> to vector<8x512xf32>
    %27 = arith.mulf %24, %26 : vector<8x512xf32>
    %28 = vector.extract_strided_slice %19 {offsets = [0, 496], sizes = [8, 16], strides = [1, 1]} : vector<8x512xf32> to vector<8x16xf32>
    %29 = vector.extract_strided_slice %19 {offsets = [0, 0], sizes = [8, 496], strides = [1, 1]} : vector<8x512xf32> to vector<8x496xf32>
    %30 = tpu.concatenate %28, %29 in 1 : vector<8x16xf32>, vector<8x496xf32> -> vector<8x512xf32>
    %31 = vector.extract_strided_slice %2 {offsets = [1, 0], sizes = [1, 512], strides = [1, 1]} : vector<9x512xf32> to vector<1x512xf32>
    %32 = vector.broadcast %31 : vector<1x512xf32> to vector<8x512xf32>
    %33 = arith.mulf %30, %32 : vector<8x512xf32>
    %34 = vector.extract_strided_slice %19 {offsets = [0, 497], sizes = [8, 15], strides = [1, 1]} : vector<8x512xf32> to vector<8x15xf32>
    %35 = vector.extract_strided_slice %19 {offsets = [0, 0], sizes = [8, 497], strides = [1, 1]} : vector<8x512xf32> to vector<8x497xf32>
    %36 = tpu.concatenate %34, %35 in 1 : vector<8x15xf32>, vector<8x497xf32> -> vector<8x512xf32>
    %37 = vector.extract_strided_slice %2 {offsets = [2, 0], sizes = [1, 512], strides = [1, 1]} : vector<9x512xf32> to vector<1x512xf32>
    %38 = vector.broadcast %37 : vector<1x512xf32> to vector<8x512xf32>
    %39 = arith.mulf %36, %38 : vector<8x512xf32>
    %40 = vector.extract_strided_slice %19 {offsets = [0, 511], sizes = [8, 1], strides = [1, 1]} : vector<8x512xf32> to vector<8x1xf32>
    %41 = vector.extract_strided_slice %19 {offsets = [0, 0], sizes = [8, 511], strides = [1, 1]} : vector<8x512xf32> to vector<8x511xf32>
    %42 = tpu.concatenate %40, %41 in 1 : vector<8x1xf32>, vector<8x511xf32> -> vector<8x512xf32>
    %43 = vector.extract_strided_slice %2 {offsets = [3, 0], sizes = [1, 512], strides = [1, 1]} : vector<9x512xf32> to vector<1x512xf32>
    %44 = vector.broadcast %43 : vector<1x512xf32> to vector<8x512xf32>
    %45 = arith.mulf %42, %44 : vector<8x512xf32>
    %46 = vector.extract_strided_slice %19 {offsets = [0, 1], sizes = [8, 511], strides = [1, 1]} : vector<8x512xf32> to vector<8x511xf32>
    %47 = vector.extract_strided_slice %19 {offsets = [0, 0], sizes = [8, 1], strides = [1, 1]} : vector<8x512xf32> to vector<8x1xf32>
    %48 = tpu.concatenate %46, %47 in 1 : vector<8x511xf32>, vector<8x1xf32> -> vector<8x512xf32>
    %49 = vector.extract_strided_slice %2 {offsets = [5, 0], sizes = [1, 512], strides = [1, 1]} : vector<9x512xf32> to vector<1x512xf32>
    %50 = vector.broadcast %49 : vector<1x512xf32> to vector<8x512xf32>
    %51 = arith.mulf %48, %50 : vector<8x512xf32>
    %52 = vector.extract_strided_slice %19 {offsets = [0, 15], sizes = [8, 497], strides = [1, 1]} : vector<8x512xf32> to vector<8x497xf32>
    %53 = vector.extract_strided_slice %19 {offsets = [0, 0], sizes = [8, 15], strides = [1, 1]} : vector<8x512xf32> to vector<8x15xf32>
    %54 = tpu.concatenate %52, %53 in 1 : vector<8x497xf32>, vector<8x15xf32> -> vector<8x512xf32>
    %55 = vector.extract_strided_slice %2 {offsets = [6, 0], sizes = [1, 512], strides = [1, 1]} : vector<9x512xf32> to vector<1x512xf32>
    %56 = vector.broadcast %55 : vector<1x512xf32> to vector<8x512xf32>
    %57 = arith.mulf %54, %56 : vector<8x512xf32>
    %58 = vector.extract_strided_slice %19 {offsets = [0, 16], sizes = [8, 496], strides = [1, 1]} : vector<8x512xf32> to vector<8x496xf32>
    %59 = vector.extract_strided_slice %19 {offsets = [0, 0], sizes = [8, 16], strides = [1, 1]} : vector<8x512xf32> to vector<8x16xf32>
    %60 = tpu.concatenate %58, %59 in 1 : vector<8x496xf32>, vector<8x16xf32> -> vector<8x512xf32>
    %61 = vector.extract_strided_slice %2 {offsets = [7, 0], sizes = [1, 512], strides = [1, 1]} : vector<9x512xf32> to vector<1x512xf32>
    %62 = vector.broadcast %61 : vector<1x512xf32> to vector<8x512xf32>
    %63 = arith.mulf %60, %62 : vector<8x512xf32>
    %64 = vector.extract_strided_slice %19 {offsets = [0, 17], sizes = [8, 495], strides = [1, 1]} : vector<8x512xf32> to vector<8x495xf32>
    %65 = vector.extract_strided_slice %19 {offsets = [0, 0], sizes = [8, 17], strides = [1, 1]} : vector<8x512xf32> to vector<8x17xf32>
    %66 = tpu.concatenate %64, %65 in 1 : vector<8x495xf32>, vector<8x17xf32> -> vector<8x512xf32>
    %67 = vector.extract_strided_slice %2 {offsets = [8, 0], sizes = [1, 512], strides = [1, 1]} : vector<9x512xf32> to vector<1x512xf32>
    %68 = vector.broadcast %67 : vector<1x512xf32> to vector<8x512xf32>
    %69 = arith.mulf %66, %68 : vector<8x512xf32>
    %70 = tpu.concatenate %27, %33, %39, %45, %19, %51, %57, %63, %69 in 0 : vector<8x512xf32>, vector<8x512xf32>, vector<8x512xf32>, vector<8x512xf32>, vector<8x512xf32>, vector<8x512xf32>, vector<8x512xf32>, vector<8x512xf32>, vector<8x512xf32> -> vector<72x512xf32>
    %71 = arith.truncf %70 : vector<72x512xf32> to vector<72x512xbf16>
    %cst_19 = arith.constant dense<0.000000e+00> : vector<8x512xf32>
    %72 = tpu.matmul %21, %71, %cst_19 {dimension_numbers = #tpu.dot_dimension_numbers<[1], [0], [0], [1], [0, 0, 1, 1], [], []>} : vector<8x72xbf16>, vector<72x512xbf16>, vector<8x512xf32> -> vector<8x512xf32>
    %73 = arith.truncf %72 : vector<8x512xf32> to vector<8x512xbf16>
    %cst_20 = arith.constant dense<0.000000e+00> : vector<8x128xf32>
    %74 = tpu.matmul %73, %4, %cst_20 {dimension_numbers = #tpu.dot_dimension_numbers<[1], [0], [0], [1], [0, 0, 1, 1], [], []>} : vector<8x512xbf16>, vector<512x128xbf16>, vector<8x128xf32> -> vector<8x128xf32>
    %75 = vector.extract_strided_slice %9 {offsets = [8, 0], sizes = [8, 1], strides = [1, 1]} : vector<80x1xf32> to vector<8x1xf32>
    %76 = vector.extract_strided_slice %11 {offsets = [8, 0], sizes = [8, 1], strides = [1, 1]} : vector<80x1xf32> to vector<8x1xf32>
    %77 = vector.broadcast %75 : vector<8x1xf32> to vector<8x128xf32>
    %78 = arith.mulf %74, %77 : vector<8x128xf32>
    %79 = vector.broadcast %76 : vector<8x1xf32> to vector<8x128xf32>
    %80 = arith.addf %78, %79 : vector<8x128xf32>
    %cst_21 = arith.constant 0.000000e+00 : f32
    %81 = vector.broadcast %cst_21 : f32 to vector<8x128xf32>
    %82 = arith.maximumf %80, %81 : vector<8x128xf32>
    %c1_22 = arith.constant 1 : index
    %c0_23 = arith.constant 0 : index
    %c0_24 = arith.constant 0 : index
    %83 = vector.load %arg1[%c1_22, %c0_23, %c0_24] : memref<7x8x72xbf16, #tpu.memory_space<vmem>>, vector<1x8x72xbf16>
    %84 = vector.shape_cast %83 : vector<1x8x72xbf16> to vector<8x72xbf16>
    %85 = vector.extract_strided_slice %82 {offsets = [0, 119], sizes = [8, 9], strides = [1, 1]} : vector<8x128xf32> to vector<8x9xf32>
    %86 = vector.extract_strided_slice %82 {offsets = [0, 0], sizes = [8, 119], strides = [1, 1]} : vector<8x128xf32> to vector<8x119xf32>
    %87 = tpu.concatenate %85, %86 in 1 : vector<8x9xf32>, vector<8x119xf32> -> vector<8x128xf32>
    %88 = vector.extract_strided_slice %3 {offsets = [0, 0], sizes = [1, 128], strides = [1, 1]} : vector<9x128xf32> to vector<1x128xf32>
    %89 = vector.broadcast %88 : vector<1x128xf32> to vector<8x128xf32>
    %90 = arith.mulf %87, %89 : vector<8x128xf32>
    %91 = vector.extract_strided_slice %82 {offsets = [0, 120], sizes = [8, 8], strides = [1, 1]} : vector<8x128xf32> to vector<8x8xf32>
    %92 = vector.extract_strided_slice %82 {offsets = [0, 0], sizes = [8, 120], strides = [1, 1]} : vector<8x128xf32> to vector<8x120xf32>
    %93 = tpu.concatenate %91, %92 in 1 : vector<8x8xf32>, vector<8x120xf32> -> vector<8x128xf32>
    %94 = vector.extract_strided_slice %3 {offsets = [1, 0], sizes = [1, 128], strides = [1, 1]} : vector<9x128xf32> to vector<1x128xf32>
    %95 = vector.broadcast %94 : vector<1x128xf32> to vector<8x128xf32>
    %96 = arith.mulf %93, %95 : vector<8x128xf32>
    %97 = vector.extract_strided_slice %82 {offsets = [0, 121], sizes = [8, 7], strides = [1, 1]} : vector<8x128xf32> to vector<8x7xf32>
    %98 = vector.extract_strided_slice %82 {offsets = [0, 0], sizes = [8, 121], strides = [1, 1]} : vector<8x128xf32> to vector<8x121xf32>
    %99 = tpu.concatenate %97, %98 in 1 : vector<8x7xf32>, vector<8x121xf32> -> vector<8x128xf32>
    %100 = vector.extract_strided_slice %3 {offsets = [2, 0], sizes = [1, 128], strides = [1, 1]} : vector<9x128xf32> to vector<1x128xf32>
    %101 = vector.broadcast %100 : vector<1x128xf32> to vector<8x128xf32>
    %102 = arith.mulf %99, %101 : vector<8x128xf32>
    %103 = vector.extract_strided_slice %82 {offsets = [0, 127], sizes = [8, 1], strides = [1, 1]} : vector<8x128xf32> to vector<8x1xf32>
    %104 = vector.extract_strided_slice %82 {offsets = [0, 0], sizes = [8, 127], strides = [1, 1]} : vector<8x128xf32> to vector<8x127xf32>
    %105 = tpu.concatenate %103, %104 in 1 : vector<8x1xf32>, vector<8x127xf32> -> vector<8x128xf32>
    %106 = vector.extract_strided_slice %3 {offsets = [3, 0], sizes = [1, 128], strides = [1, 1]} : vector<9x128xf32> to vector<1x128xf32>
    %107 = vector.broadcast %106 : vector<1x128xf32> to vector<8x128xf32>
    %108 = arith.mulf %105, %107 : vector<8x128xf32>
    %109 = vector.extract_strided_slice %82 {offsets = [0, 1], sizes = [8, 127], strides = [1, 1]} : vector<8x128xf32> to vector<8x127xf32>
    %110 = vector.extract_strided_slice %82 {offsets = [0, 0], sizes = [8, 1], strides = [1, 1]} : vector<8x128xf32> to vector<8x1xf32>
    %111 = tpu.concatenate %109, %110 in 1 : vector<8x127xf32>, vector<8x1xf32> -> vector<8x128xf32>
    %112 = vector.extract_strided_slice %3 {offsets = [5, 0], sizes = [1, 128], strides = [1, 1]} : vector<9x128xf32> to vector<1x128xf32>
    %113 = vector.broadcast %112 : vector<1x128xf32> to vector<8x128xf32>
    %114 = arith.mulf %111, %113 : vector<8x128xf32>
    %115 = vector.extract_strided_slice %82 {offsets = [0, 7], sizes = [8, 121], strides = [1, 1]} : vector<8x128xf32> to vector<8x121xf32>
    %116 = vector.extract_strided_slice %82 {offsets = [0, 0], sizes = [8, 7], strides = [1, 1]} : vector<8x128xf32> to vector<8x7xf32>
    %117 = tpu.concatenate %115, %116 in 1 : vector<8x121xf32>, vector<8x7xf32> -> vector<8x128xf32>
    %118 = vector.extract_strided_slice %3 {offsets = [6, 0], sizes = [1, 128], strides = [1, 1]} : vector<9x128xf32> to vector<1x128xf32>
    %119 = vector.broadcast %118 : vector<1x128xf32> to vector<8x128xf32>
    %120 = arith.mulf %117, %119 : vector<8x128xf32>
    %121 = vector.extract_strided_slice %82 {offsets = [0, 8], sizes = [8, 120], strides = [1, 1]} : vector<8x128xf32> to vector<8x120xf32>
    %122 = vector.extract_strided_slice %82 {offsets = [0, 0], sizes = [8, 8], strides = [1, 1]} : vector<8x128xf32> to vector<8x8xf32>
    %123 = tpu.concatenate %121, %122 in 1 : vector<8x120xf32>, vector<8x8xf32> -> vector<8x128xf32>
    %124 = vector.extract_strided_slice %3 {offsets = [7, 0], sizes = [1, 128], strides = [1, 1]} : vector<9x128xf32> to vector<1x128xf32>
    %125 = vector.broadcast %124 : vector<1x128xf32> to vector<8x128xf32>
    %126 = arith.mulf %123, %125 : vector<8x128xf32>
    %127 = vector.extract_strided_slice %82 {offsets = [0, 9], sizes = [8, 119], strides = [1, 1]} : vector<8x128xf32> to vector<8x119xf32>
    %128 = vector.extract_strided_slice %82 {offsets = [0, 0], sizes = [8, 9], strides = [1, 1]} : vector<8x128xf32> to vector<8x9xf32>
    %129 = tpu.concatenate %127, %128 in 1 : vector<8x119xf32>, vector<8x9xf32> -> vector<8x128xf32>
    %130 = vector.extract_strided_slice %3 {offsets = [8, 0], sizes = [1, 128], strides = [1, 1]} : vector<9x128xf32> to vector<1x128xf32>
    %131 = vector.broadcast %130 : vector<1x128xf32> to vector<8x128xf32>
    %132 = arith.mulf %129, %131 : vector<8x128xf32>
    %133 = tpu.concatenate %90, %96, %102, %108, %82, %114, %120, %126, %132 in 0 : vector<8x128xf32>, vector<8x128xf32>, vector<8x128xf32>, vector<8x128xf32>, vector<8x128xf32>, vector<8x128xf32>, vector<8x128xf32>, vector<8x128xf32>, vector<8x128xf32> -> vector<72x128xf32>
    %134 = arith.truncf %133 : vector<72x128xf32> to vector<72x128xbf16>
    %cst_25 = arith.constant dense<0.000000e+00> : vector<8x128xf32>
    %135 = tpu.matmul %84, %134, %cst_25 {dimension_numbers = #tpu.dot_dimension_numbers<[1], [0], [0], [1], [0, 0, 1, 1], [], []>} : vector<8x72xbf16>, vector<72x128xbf16>, vector<8x128xf32> -> vector<8x128xf32>
    %136 = vector.extract_strided_slice %9 {offsets = [16, 0], sizes = [8, 1], strides = [1, 1]} : vector<80x1xf32> to vector<8x1xf32>
    %137 = vector.extract_strided_slice %11 {offsets = [16, 0], sizes = [8, 1], strides = [1, 1]} : vector<80x1xf32> to vector<8x1xf32>
    %138 = vector.broadcast %136 : vector<8x1xf32> to vector<8x128xf32>
    %139 = arith.mulf %135, %138 : vector<8x128xf32>
    %140 = vector.broadcast %137 : vector<8x1xf32> to vector<8x128xf32>
    %141 = arith.addf %139, %140 : vector<8x128xf32>
    %cst_26 = arith.constant 0.000000e+00 : f32
    %142 = vector.broadcast %cst_26 : f32 to vector<8x128xf32>
    %143 = arith.maximumf %141, %142 : vector<8x128xf32>
    %c2 = arith.constant 2 : index
    %c0_27 = arith.constant 0 : index
    %c0_28 = arith.constant 0 : index
    %144 = vector.load %arg1[%c2, %c0_27, %c0_28] : memref<7x8x72xbf16, #tpu.memory_space<vmem>>, vector<1x8x72xbf16>
    %145 = vector.shape_cast %144 : vector<1x8x72xbf16> to vector<8x72xbf16>
    %146 = vector.extract_strided_slice %143 {offsets = [0, 119], sizes = [8, 9], strides = [1, 1]} : vector<8x128xf32> to vector<8x9xf32>
    %147 = vector.extract_strided_slice %143 {offsets = [0, 0], sizes = [8, 119], strides = [1, 1]} : vector<8x128xf32> to vector<8x119xf32>
    %148 = tpu.concatenate %146, %147 in 1 : vector<8x9xf32>, vector<8x119xf32> -> vector<8x128xf32>
    %149 = vector.extract_strided_slice %3 {offsets = [0, 0], sizes = [1, 128], strides = [1, 1]} : vector<9x128xf32> to vector<1x128xf32>
    %150 = vector.broadcast %149 : vector<1x128xf32> to vector<8x128xf32>
    %151 = arith.mulf %148, %150 : vector<8x128xf32>
    %152 = vector.extract_strided_slice %143 {offsets = [0, 120], sizes = [8, 8], strides = [1, 1]} : vector<8x128xf32> to vector<8x8xf32>
    %153 = vector.extract_strided_slice %143 {offsets = [0, 0], sizes = [8, 120], strides = [1, 1]} : vector<8x128xf32> to vector<8x120xf32>
    %154 = tpu.concatenate %152, %153 in 1 : vector<8x8xf32>, vector<8x120xf32> -> vector<8x128xf32>
    %155 = vector.extract_strided_slice %3 {offsets = [1, 0], sizes = [1, 128], strides = [1, 1]} : vector<9x128xf32> to vector<1x128xf32>
    %156 = vector.broadcast %155 : vector<1x128xf32> to vector<8x128xf32>
    %157 = arith.mulf %154, %156 : vector<8x128xf32>
    %158 = vector.extract_strided_slice %143 {offsets = [0, 121], sizes = [8, 7], strides = [1, 1]} : vector<8x128xf32> to vector<8x7xf32>
    %159 = vector.extract_strided_slice %143 {offsets = [0, 0], sizes = [8, 121], strides = [1, 1]} : vector<8x128xf32> to vector<8x121xf32>
    %160 = tpu.concatenate %158, %159 in 1 : vector<8x7xf32>, vector<8x121xf32> -> vector<8x128xf32>
    %161 = vector.extract_strided_slice %3 {offsets = [2, 0], sizes = [1, 128], strides = [1, 1]} : vector<9x128xf32> to vector<1x128xf32>
    %162 = vector.broadcast %161 : vector<1x128xf32> to vector<8x128xf32>
    %163 = arith.mulf %160, %162 : vector<8x128xf32>
    %164 = vector.extract_strided_slice %143 {offsets = [0, 127], sizes = [8, 1], strides = [1, 1]} : vector<8x128xf32> to vector<8x1xf32>
    %165 = vector.extract_strided_slice %143 {offsets = [0, 0], sizes = [8, 127], strides = [1, 1]} : vector<8x128xf32> to vector<8x127xf32>
    %166 = tpu.concatenate %164, %165 in 1 : vector<8x1xf32>, vector<8x127xf32> -> vector<8x128xf32>
    %167 = vector.extract_strided_slice %3 {offsets = [3, 0], sizes = [1, 128], strides = [1, 1]} : vector<9x128xf32> to vector<1x128xf32>
    %168 = vector.broadcast %167 : vector<1x128xf32> to vector<8x128xf32>
    %169 = arith.mulf %166, %168 : vector<8x128xf32>
    %170 = vector.extract_strided_slice %143 {offsets = [0, 1], sizes = [8, 127], strides = [1, 1]} : vector<8x128xf32> to vector<8x127xf32>
    %171 = vector.extract_strided_slice %143 {offsets = [0, 0], sizes = [8, 1], strides = [1, 1]} : vector<8x128xf32> to vector<8x1xf32>
    %172 = tpu.concatenate %170, %171 in 1 : vector<8x127xf32>, vector<8x1xf32> -> vector<8x128xf32>
    %173 = vector.extract_strided_slice %3 {offsets = [5, 0], sizes = [1, 128], strides = [1, 1]} : vector<9x128xf32> to vector<1x128xf32>
    %174 = vector.broadcast %173 : vector<1x128xf32> to vector<8x128xf32>
    %175 = arith.mulf %172, %174 : vector<8x128xf32>
    %176 = vector.extract_strided_slice %143 {offsets = [0, 7], sizes = [8, 121], strides = [1, 1]} : vector<8x128xf32> to vector<8x121xf32>
    %177 = vector.extract_strided_slice %143 {offsets = [0, 0], sizes = [8, 7], strides = [1, 1]} : vector<8x128xf32> to vector<8x7xf32>
    %178 = tpu.concatenate %176, %177 in 1 : vector<8x121xf32>, vector<8x7xf32> -> vector<8x128xf32>
    %179 = vector.extract_strided_slice %3 {offsets = [6, 0], sizes = [1, 128], strides = [1, 1]} : vector<9x128xf32> to vector<1x128xf32>
    %180 = vector.broadcast %179 : vector<1x128xf32> to vector<8x128xf32>
    %181 = arith.mulf %178, %180 : vector<8x128xf32>
    %182 = vector.extract_strided_slice %143 {offsets = [0, 8], sizes = [8, 120], strides = [1, 1]} : vector<8x128xf32> to vector<8x120xf32>
    %183 = vector.extract_strided_slice %143 {offsets = [0, 0], sizes = [8, 8], strides = [1, 1]} : vector<8x128xf32> to vector<8x8xf32>
    %184 = tpu.concatenate %182, %183 in 1 : vector<8x120xf32>, vector<8x8xf32> -> vector<8x128xf32>
    %185 = vector.extract_strided_slice %3 {offsets = [7, 0], sizes = [1, 128], strides = [1, 1]} : vector<9x128xf32> to vector<1x128xf32>
    %186 = vector.broadcast %185 : vector<1x128xf32> to vector<8x128xf32>
    %187 = arith.mulf %184, %186 : vector<8x128xf32>
    %188 = vector.extract_strided_slice %143 {offsets = [0, 9], sizes = [8, 119], strides = [1, 1]} : vector<8x128xf32> to vector<8x119xf32>
    %189 = vector.extract_strided_slice %143 {offsets = [0, 0], sizes = [8, 9], strides = [1, 1]} : vector<8x128xf32> to vector<8x9xf32>
    %190 = tpu.concatenate %188, %189 in 1 : vector<8x119xf32>, vector<8x9xf32> -> vector<8x128xf32>
    %191 = vector.extract_strided_slice %3 {offsets = [8, 0], sizes = [1, 128], strides = [1, 1]} : vector<9x128xf32> to vector<1x128xf32>
    %192 = vector.broadcast %191 : vector<1x128xf32> to vector<8x128xf32>
    %193 = arith.mulf %190, %192 : vector<8x128xf32>
    %194 = tpu.concatenate %151, %157, %163, %169, %143, %175, %181, %187, %193 in 0 : vector<8x128xf32>, vector<8x128xf32>, vector<8x128xf32>, vector<8x128xf32>, vector<8x128xf32>, vector<8x128xf32>, vector<8x128xf32>, vector<8x128xf32>, vector<8x128xf32> -> vector<72x128xf32>
    %195 = arith.truncf %194 : vector<72x128xf32> to vector<72x128xbf16>
    %cst_29 = arith.constant dense<0.000000e+00> : vector<8x128xf32>
    %196 = tpu.matmul %145, %195, %cst_29 {dimension_numbers = #tpu.dot_dimension_numbers<[1], [0], [0], [1], [0, 0, 1, 1], [], []>} : vector<8x72xbf16>, vector<72x128xbf16>, vector<8x128xf32> -> vector<8x128xf32>
    %197 = arith.truncf %196 : vector<8x128xf32> to vector<8x128xbf16>
    %cst_30 = arith.constant dense<0.000000e+00> : vector<8x32xf32>
    %198 = tpu.matmul %197, %5, %cst_30 {dimension_numbers = #tpu.dot_dimension_numbers<[1], [0], [0], [1], [0, 0, 1, 1], [], []>} : vector<8x128xbf16>, vector<128x32xbf16>, vector<8x32xf32> -> vector<8x32xf32>
    %199 = vector.extract_strided_slice %9 {offsets = [24, 0], sizes = [8, 1], strides = [1, 1]} : vector<80x1xf32> to vector<8x1xf32>
    %200 = vector.extract_strided_slice %11 {offsets = [24, 0], sizes = [8, 1], strides = [1, 1]} : vector<80x1xf32> to vector<8x1xf32>
    %201 = vector.broadcast %199 : vector<8x1xf32> to vector<8x32xf32>
    %202 = arith.mulf %198, %201 : vector<8x32xf32>
    %203 = vector.broadcast %200 : vector<8x1xf32> to vector<8x32xf32>
    %204 = arith.addf %202, %203 : vector<8x32xf32>
    %cst_31 = arith.constant 0.000000e+00 : f32
    %205 = vector.broadcast %cst_31 : f32 to vector<8x32xf32>
    %206 = arith.maximumf %204, %205 : vector<8x32xf32>
    %c3 = arith.constant 3 : index
    %c0_32 = arith.constant 0 : index
    %c0_33 = arith.constant 0 : index
    %207 = vector.load %arg1[%c3, %c0_32, %c0_33] : memref<7x8x72xbf16, #tpu.memory_space<vmem>>, vector<1x8x72xbf16>
    %208 = vector.shape_cast %207 : vector<1x8x72xbf16> to vector<8x72xbf16>
    %209 = arith.truncf %206 : vector<8x32xf32> to vector<8x32xbf16>
    %c0_34 = arith.constant 0 : index
    %c0_35 = arith.constant 0 : index
    %c0_36 = arith.constant 0 : index
    %210 = vector.load %arg5[%c0_34, %c0_35, %c0_36] : memref<8x32x32xbf16, #tpu.memory_space<vmem>>, vector<1x32x32xbf16>
    %211 = vector.shape_cast %210 : vector<1x32x32xbf16> to vector<32x32xbf16>
    %cst_37 = arith.constant dense<0.000000e+00> : vector<8x32xf32>
    %212 = tpu.matmul %209, %211, %cst_37 {dimension_numbers = #tpu.dot_dimension_numbers<[1], [0], [0], [1], [0, 0, 1, 1], [], []>} : vector<8x32xbf16>, vector<32x32xbf16>, vector<8x32xf32> -> vector<8x32xf32>
    %c1_38 = arith.constant 1 : index
    %c0_39 = arith.constant 0 : index
    %c0_40 = arith.constant 0 : index
    %213 = vector.load %arg5[%c1_38, %c0_39, %c0_40] : memref<8x32x32xbf16, #tpu.memory_space<vmem>>, vector<1x32x32xbf16>
    %214 = vector.shape_cast %213 : vector<1x32x32xbf16> to vector<32x32xbf16>
    %cst_41 = arith.constant dense<0.000000e+00> : vector<8x32xf32>
    %215 = tpu.matmul %209, %214, %cst_41 {dimension_numbers = #tpu.dot_dimension_numbers<[1], [0], [0], [1], [0, 0, 1, 1], [], []>} : vector<8x32xbf16>, vector<32x32xbf16>, vector<8x32xf32> -> vector<8x32xf32>
    %c2_42 = arith.constant 2 : index
    %c0_43 = arith.constant 0 : index
    %c0_44 = arith.constant 0 : index
    %216 = vector.load %arg5[%c2_42, %c0_43, %c0_44] : memref<8x32x32xbf16, #tpu.memory_space<vmem>>, vector<1x32x32xbf16>
    %217 = vector.shape_cast %216 : vector<1x32x32xbf16> to vector<32x32xbf16>
    %cst_45 = arith.constant dense<0.000000e+00> : vector<8x32xf32>
    %218 = tpu.matmul %209, %217, %cst_45 {dimension_numbers = #tpu.dot_dimension_numbers<[1], [0], [0], [1], [0, 0, 1, 1], [], []>} : vector<8x32xbf16>, vector<32x32xbf16>, vector<8x32xf32> -> vector<8x32xf32>
    %c3_46 = arith.constant 3 : index
    %c0_47 = arith.constant 0 : index
    %c0_48 = arith.constant 0 : index
    %219 = vector.load %arg5[%c3_46, %c0_47, %c0_48] : memref<8x32x32xbf16, #tpu.memory_space<vmem>>, vector<1x32x32xbf16>
    %220 = vector.shape_cast %219 : vector<1x32x32xbf16> to vector<32x32xbf16>
    %cst_49 = arith.constant dense<0.000000e+00> : vector<8x32xf32>
    %221 = tpu.matmul %209, %220, %cst_49 {dimension_numbers = #tpu.dot_dimension_numbers<[1], [0], [0], [1], [0, 0, 1, 1], [], []>} : vector<8x32xbf16>, vector<32x32xbf16>, vector<8x32xf32> -> vector<8x32xf32>
    %c4 = arith.constant 4 : index
    %c0_50 = arith.constant 0 : index
    %c0_51 = arith.constant 0 : index
    %222 = vector.load %arg5[%c4, %c0_50, %c0_51] : memref<8x32x32xbf16, #tpu.memory_space<vmem>>, vector<1x32x32xbf16>
    %223 = vector.shape_cast %222 : vector<1x32x32xbf16> to vector<32x32xbf16>
    %cst_52 = arith.constant dense<0.000000e+00> : vector<8x32xf32>
    %224 = tpu.matmul %209, %223, %cst_52 {dimension_numbers = #tpu.dot_dimension_numbers<[1], [0], [0], [1], [0, 0, 1, 1], [], []>} : vector<8x32xbf16>, vector<32x32xbf16>, vector<8x32xf32> -> vector<8x32xf32>
    %c5 = arith.constant 5 : index
    %c0_53 = arith.constant 0 : index
    %c0_54 = arith.constant 0 : index
    %225 = vector.load %arg5[%c5, %c0_53, %c0_54] : memref<8x32x32xbf16, #tpu.memory_space<vmem>>, vector<1x32x32xbf16>
    %226 = vector.shape_cast %225 : vector<1x32x32xbf16> to vector<32x32xbf16>
    %cst_55 = arith.constant dense<0.000000e+00> : vector<8x32xf32>
    %227 = tpu.matmul %209, %226, %cst_55 {dimension_numbers = #tpu.dot_dimension_numbers<[1], [0], [0], [1], [0, 0, 1, 1], [], []>} : vector<8x32xbf16>, vector<32x32xbf16>, vector<8x32xf32> -> vector<8x32xf32>
    %c6 = arith.constant 6 : index
    %c0_56 = arith.constant 0 : index
    %c0_57 = arith.constant 0 : index
    %228 = vector.load %arg5[%c6, %c0_56, %c0_57] : memref<8x32x32xbf16, #tpu.memory_space<vmem>>, vector<1x32x32xbf16>
    %229 = vector.shape_cast %228 : vector<1x32x32xbf16> to vector<32x32xbf16>
    %cst_58 = arith.constant dense<0.000000e+00> : vector<8x32xf32>
    %230 = tpu.matmul %209, %229, %cst_58 {dimension_numbers = #tpu.dot_dimension_numbers<[1], [0], [0], [1], [0, 0, 1, 1], [], []>} : vector<8x32xbf16>, vector<32x32xbf16>, vector<8x32xf32> -> vector<8x32xf32>
    %c7 = arith.constant 7 : index
    %c0_59 = arith.constant 0 : index
    %c0_60 = arith.constant 0 : index
    %231 = vector.load %arg5[%c7, %c0_59, %c0_60] : memref<8x32x32xbf16, #tpu.memory_space<vmem>>, vector<1x32x32xbf16>
    %232 = vector.shape_cast %231 : vector<1x32x32xbf16> to vector<32x32xbf16>
    %cst_61 = arith.constant dense<0.000000e+00> : vector<8x32xf32>
    %233 = tpu.matmul %209, %232, %cst_61 {dimension_numbers = #tpu.dot_dimension_numbers<[1], [0], [0], [1], [0, 0, 1, 1], [], []>} : vector<8x32xbf16>, vector<32x32xbf16>, vector<8x32xf32> -> vector<8x32xf32>
    %234 = tpu.concatenate %212, %215, %218, %221, %206, %224, %227, %230, %233 in 0 : vector<8x32xf32>, vector<8x32xf32>, vector<8x32xf32>, vector<8x32xf32>, vector<8x32xf32>, vector<8x32xf32>, vector<8x32xf32>, vector<8x32xf32>, vector<8x32xf32> -> vector<72x32xf32>
    %235 = arith.truncf %234 : vector<72x32xf32> to vector<72x32xbf16>
    %cst_62 = arith.constant dense<0.000000e+00> : vector<8x32xf32>
    %236 = tpu.matmul %208, %235, %cst_62 {dimension_numbers = #tpu.dot_dimension_numbers<[1], [0], [0], [1], [0, 0, 1, 1], [], []>} : vector<8x72xbf16>, vector<72x32xbf16>, vector<8x32xf32> -> vector<8x32xf32>
    %237 = vector.extract_strided_slice %9 {offsets = [32, 0], sizes = [8, 1], strides = [1, 1]} : vector<80x1xf32> to vector<8x1xf32>
    %238 = vector.extract_strided_slice %11 {offsets = [32, 0], sizes = [8, 1], strides = [1, 1]} : vector<80x1xf32> to vector<8x1xf32>
    %239 = vector.broadcast %237 : vector<8x1xf32> to vector<8x32xf32>
    %240 = arith.mulf %236, %239 : vector<8x32xf32>
    %241 = vector.broadcast %238 : vector<8x1xf32> to vector<8x32xf32>
    %242 = arith.addf %240, %241 : vector<8x32xf32>
    %cst_63 = arith.constant 0.000000e+00 : f32
    %243 = vector.broadcast %cst_63 : f32 to vector<8x32xf32>
    %244 = arith.maximumf %242, %243 : vector<8x32xf32>
    %245 = arith.truncf %244 : vector<8x32xf32> to vector<8x32xbf16>
    %cst_64 = arith.constant dense<0.000000e+00> : vector<8x128xf32>
    %246 = tpu.matmul %245, %6, %cst_64 {dimension_numbers = #tpu.dot_dimension_numbers<[1], [0], [0], [1], [0, 0, 1, 1], [], []>} : vector<8x32xbf16>, vector<32x128xbf16>, vector<8x128xf32> -> vector<8x128xf32>
    %c4_65 = arith.constant 4 : index
    %c0_66 = arith.constant 0 : index
    %c0_67 = arith.constant 0 : index
    %247 = vector.load %arg1[%c4_65, %c0_66, %c0_67] : memref<7x8x72xbf16, #tpu.memory_space<vmem>>, vector<1x8x72xbf16>
    %248 = vector.shape_cast %247 : vector<1x8x72xbf16> to vector<8x72xbf16>
    %249 = vector.extract_strided_slice %246 {offsets = [0, 119], sizes = [8, 9], strides = [1, 1]} : vector<8x128xf32> to vector<8x9xf32>
    %250 = vector.extract_strided_slice %246 {offsets = [0, 0], sizes = [8, 119], strides = [1, 1]} : vector<8x128xf32> to vector<8x119xf32>
    %251 = tpu.concatenate %249, %250 in 1 : vector<8x9xf32>, vector<8x119xf32> -> vector<8x128xf32>
    %252 = vector.extract_strided_slice %3 {offsets = [0, 0], sizes = [1, 128], strides = [1, 1]} : vector<9x128xf32> to vector<1x128xf32>
    %253 = vector.broadcast %252 : vector<1x128xf32> to vector<8x128xf32>
    %254 = arith.mulf %251, %253 : vector<8x128xf32>
    %255 = vector.extract_strided_slice %246 {offsets = [0, 120], sizes = [8, 8], strides = [1, 1]} : vector<8x128xf32> to vector<8x8xf32>
    %256 = vector.extract_strided_slice %246 {offsets = [0, 0], sizes = [8, 120], strides = [1, 1]} : vector<8x128xf32> to vector<8x120xf32>
    %257 = tpu.concatenate %255, %256 in 1 : vector<8x8xf32>, vector<8x120xf32> -> vector<8x128xf32>
    %258 = vector.extract_strided_slice %3 {offsets = [1, 0], sizes = [1, 128], strides = [1, 1]} : vector<9x128xf32> to vector<1x128xf32>
    %259 = vector.broadcast %258 : vector<1x128xf32> to vector<8x128xf32>
    %260 = arith.mulf %257, %259 : vector<8x128xf32>
    %261 = vector.extract_strided_slice %246 {offsets = [0, 121], sizes = [8, 7], strides = [1, 1]} : vector<8x128xf32> to vector<8x7xf32>
    %262 = vector.extract_strided_slice %246 {offsets = [0, 0], sizes = [8, 121], strides = [1, 1]} : vector<8x128xf32> to vector<8x121xf32>
    %263 = tpu.concatenate %261, %262 in 1 : vector<8x7xf32>, vector<8x121xf32> -> vector<8x128xf32>
    %264 = vector.extract_strided_slice %3 {offsets = [2, 0], sizes = [1, 128], strides = [1, 1]} : vector<9x128xf32> to vector<1x128xf32>
    %265 = vector.broadcast %264 : vector<1x128xf32> to vector<8x128xf32>
    %266 = arith.mulf %263, %265 : vector<8x128xf32>
    %267 = vector.extract_strided_slice %246 {offsets = [0, 127], sizes = [8, 1], strides = [1, 1]} : vector<8x128xf32> to vector<8x1xf32>
    %268 = vector.extract_strided_slice %246 {offsets = [0, 0], sizes = [8, 127], strides = [1, 1]} : vector<8x128xf32> to vector<8x127xf32>
    %269 = tpu.concatenate %267, %268 in 1 : vector<8x1xf32>, vector<8x127xf32> -> vector<8x128xf32>
    %270 = vector.extract_strided_slice %3 {offsets = [3, 0], sizes = [1, 128], strides = [1, 1]} : vector<9x128xf32> to vector<1x128xf32>
    %271 = vector.broadcast %270 : vector<1x128xf32> to vector<8x128xf32>
    %272 = arith.mulf %269, %271 : vector<8x128xf32>
    %273 = vector.extract_strided_slice %246 {offsets = [0, 1], sizes = [8, 127], strides = [1, 1]} : vector<8x128xf32> to vector<8x127xf32>
    %274 = vector.extract_strided_slice %246 {offsets = [0, 0], sizes = [8, 1], strides = [1, 1]} : vector<8x128xf32> to vector<8x1xf32>
    %275 = tpu.concatenate %273, %274 in 1 : vector<8x127xf32>, vector<8x1xf32> -> vector<8x128xf32>
    %276 = vector.extract_strided_slice %3 {offsets = [5, 0], sizes = [1, 128], strides = [1, 1]} : vector<9x128xf32> to vector<1x128xf32>
    %277 = vector.broadcast %276 : vector<1x128xf32> to vector<8x128xf32>
    %278 = arith.mulf %275, %277 : vector<8x128xf32>
    %279 = vector.extract_strided_slice %246 {offsets = [0, 7], sizes = [8, 121], strides = [1, 1]} : vector<8x128xf32> to vector<8x121xf32>
    %280 = vector.extract_strided_slice %246 {offsets = [0, 0], sizes = [8, 7], strides = [1, 1]} : vector<8x128xf32> to vector<8x7xf32>
    %281 = tpu.concatenate %279, %280 in 1 : vector<8x121xf32>, vector<8x7xf32> -> vector<8x128xf32>
    %282 = vector.extract_strided_slice %3 {offsets = [6, 0], sizes = [1, 128], strides = [1, 1]} : vector<9x128xf32> to vector<1x128xf32>
    %283 = vector.broadcast %282 : vector<1x128xf32> to vector<8x128xf32>
    %284 = arith.mulf %281, %283 : vector<8x128xf32>
    %285 = vector.extract_strided_slice %246 {offsets = [0, 8], sizes = [8, 120], strides = [1, 1]} : vector<8x128xf32> to vector<8x120xf32>
    %286 = vector.extract_strided_slice %246 {offsets = [0, 0], sizes = [8, 8], strides = [1, 1]} : vector<8x128xf32> to vector<8x8xf32>
    %287 = tpu.concatenate %285, %286 in 1 : vector<8x120xf32>, vector<8x8xf32> -> vector<8x128xf32>
    %288 = vector.extract_strided_slice %3 {offsets = [7, 0], sizes = [1, 128], strides = [1, 1]} : vector<9x128xf32> to vector<1x128xf32>
    %289 = vector.broadcast %288 : vector<1x128xf32> to vector<8x128xf32>
    %290 = arith.mulf %287, %289 : vector<8x128xf32>
    %291 = vector.extract_strided_slice %246 {offsets = [0, 9], sizes = [8, 119], strides = [1, 1]} : vector<8x128xf32> to vector<8x119xf32>
    %292 = vector.extract_strided_slice %246 {offsets = [0, 0], sizes = [8, 9], strides = [1, 1]} : vector<8x128xf32> to vector<8x9xf32>
    %293 = tpu.concatenate %291, %292 in 1 : vector<8x119xf32>, vector<8x9xf32> -> vector<8x128xf32>
    %294 = vector.extract_strided_slice %3 {offsets = [8, 0], sizes = [1, 128], strides = [1, 1]} : vector<9x128xf32> to vector<1x128xf32>
    %295 = vector.broadcast %294 : vector<1x128xf32> to vector<8x128xf32>
    %296 = arith.mulf %293, %295 : vector<8x128xf32>
    %297 = tpu.concatenate %254, %260, %266, %272, %246, %278, %284, %290, %296 in 0 : vector<8x128xf32>, vector<8x128xf32>, vector<8x128xf32>, vector<8x128xf32>, vector<8x128xf32>, vector<8x128xf32>, vector<8x128xf32>, vector<8x128xf32>, vector<8x128xf32> -> vector<72x128xf32>
    %298 = arith.truncf %297 : vector<72x128xf32> to vector<72x128xbf16>
    %cst_68 = arith.constant dense<0.000000e+00> : vector<8x128xf32>
    %299 = tpu.matmul %248, %298, %cst_68 {dimension_numbers = #tpu.dot_dimension_numbers<[1], [0], [0], [1], [0, 0, 1, 1], [], []>} : vector<8x72xbf16>, vector<72x128xbf16>, vector<8x128xf32> -> vector<8x128xf32>
    %300 = vector.extract_strided_slice %9 {offsets = [40, 0], sizes = [8, 1], strides = [1, 1]} : vector<80x1xf32> to vector<8x1xf32>
    %301 = vector.extract_strided_slice %11 {offsets = [40, 0], sizes = [8, 1], strides = [1, 1]} : vector<80x1xf32> to vector<8x1xf32>
    %302 = vector.broadcast %300 : vector<8x1xf32> to vector<8x128xf32>
    %303 = arith.mulf %299, %302 : vector<8x128xf32>
    %304 = vector.broadcast %301 : vector<8x1xf32> to vector<8x128xf32>
    %305 = arith.addf %303, %304 : vector<8x128xf32>
    %cst_69 = arith.constant 0.000000e+00 : f32
    %306 = vector.broadcast %cst_69 : f32 to vector<8x128xf32>
    %307 = arith.maximumf %305, %306 : vector<8x128xf32>
    %c5_70 = arith.constant 5 : index
    %c0_71 = arith.constant 0 : index
    %c0_72 = arith.constant 0 : index
    %308 = vector.load %arg1[%c5_70, %c0_71, %c0_72] : memref<7x8x72xbf16, #tpu.memory_space<vmem>>, vector<1x8x72xbf16>
    %309 = vector.shape_cast %308 : vector<1x8x72xbf16> to vector<8x72xbf16>
    %310 = vector.extract_strided_slice %307 {offsets = [0, 119], sizes = [8, 9], strides = [1, 1]} : vector<8x128xf32> to vector<8x9xf32>
    %311 = vector.extract_strided_slice %307 {offsets = [0, 0], sizes = [8, 119], strides = [1, 1]} : vector<8x128xf32> to vector<8x119xf32>
    %312 = tpu.concatenate %310, %311 in 1 : vector<8x9xf32>, vector<8x119xf32> -> vector<8x128xf32>
    %313 = vector.extract_strided_slice %3 {offsets = [0, 0], sizes = [1, 128], strides = [1, 1]} : vector<9x128xf32> to vector<1x128xf32>
    %314 = vector.broadcast %313 : vector<1x128xf32> to vector<8x128xf32>
    %315 = arith.mulf %312, %314 : vector<8x128xf32>
    %316 = vector.extract_strided_slice %307 {offsets = [0, 120], sizes = [8, 8], strides = [1, 1]} : vector<8x128xf32> to vector<8x8xf32>
    %317 = vector.extract_strided_slice %307 {offsets = [0, 0], sizes = [8, 120], strides = [1, 1]} : vector<8x128xf32> to vector<8x120xf32>
    %318 = tpu.concatenate %316, %317 in 1 : vector<8x8xf32>, vector<8x120xf32> -> vector<8x128xf32>
    %319 = vector.extract_strided_slice %3 {offsets = [1, 0], sizes = [1, 128], strides = [1, 1]} : vector<9x128xf32> to vector<1x128xf32>
    %320 = vector.broadcast %319 : vector<1x128xf32> to vector<8x128xf32>
    %321 = arith.mulf %318, %320 : vector<8x128xf32>
    %322 = vector.extract_strided_slice %307 {offsets = [0, 121], sizes = [8, 7], strides = [1, 1]} : vector<8x128xf32> to vector<8x7xf32>
    %323 = vector.extract_strided_slice %307 {offsets = [0, 0], sizes = [8, 121], strides = [1, 1]} : vector<8x128xf32> to vector<8x121xf32>
    %324 = tpu.concatenate %322, %323 in 1 : vector<8x7xf32>, vector<8x121xf32> -> vector<8x128xf32>
    %325 = vector.extract_strided_slice %3 {offsets = [2, 0], sizes = [1, 128], strides = [1, 1]} : vector<9x128xf32> to vector<1x128xf32>
    %326 = vector.broadcast %325 : vector<1x128xf32> to vector<8x128xf32>
    %327 = arith.mulf %324, %326 : vector<8x128xf32>
    %328 = vector.extract_strided_slice %307 {offsets = [0, 127], sizes = [8, 1], strides = [1, 1]} : vector<8x128xf32> to vector<8x1xf32>
    %329 = vector.extract_strided_slice %307 {offsets = [0, 0], sizes = [8, 127], strides = [1, 1]} : vector<8x128xf32> to vector<8x127xf32>
    %330 = tpu.concatenate %328, %329 in 1 : vector<8x1xf32>, vector<8x127xf32> -> vector<8x128xf32>
    %331 = vector.extract_strided_slice %3 {offsets = [3, 0], sizes = [1, 128], strides = [1, 1]} : vector<9x128xf32> to vector<1x128xf32>
    %332 = vector.broadcast %331 : vector<1x128xf32> to vector<8x128xf32>
    %333 = arith.mulf %330, %332 : vector<8x128xf32>
    %334 = vector.extract_strided_slice %307 {offsets = [0, 1], sizes = [8, 127], strides = [1, 1]} : vector<8x128xf32> to vector<8x127xf32>
    %335 = vector.extract_strided_slice %307 {offsets = [0, 0], sizes = [8, 1], strides = [1, 1]} : vector<8x128xf32> to vector<8x1xf32>
    %336 = tpu.concatenate %334, %335 in 1 : vector<8x127xf32>, vector<8x1xf32> -> vector<8x128xf32>
    %337 = vector.extract_strided_slice %3 {offsets = [5, 0], sizes = [1, 128], strides = [1, 1]} : vector<9x128xf32> to vector<1x128xf32>
    %338 = vector.broadcast %337 : vector<1x128xf32> to vector<8x128xf32>
    %339 = arith.mulf %336, %338 : vector<8x128xf32>
    %340 = vector.extract_strided_slice %307 {offsets = [0, 7], sizes = [8, 121], strides = [1, 1]} : vector<8x128xf32> to vector<8x121xf32>
    %341 = vector.extract_strided_slice %307 {offsets = [0, 0], sizes = [8, 7], strides = [1, 1]} : vector<8x128xf32> to vector<8x7xf32>
    %342 = tpu.concatenate %340, %341 in 1 : vector<8x121xf32>, vector<8x7xf32> -> vector<8x128xf32>
    %343 = vector.extract_strided_slice %3 {offsets = [6, 0], sizes = [1, 128], strides = [1, 1]} : vector<9x128xf32> to vector<1x128xf32>
    %344 = vector.broadcast %343 : vector<1x128xf32> to vector<8x128xf32>
    %345 = arith.mulf %342, %344 : vector<8x128xf32>
    %346 = vector.extract_strided_slice %307 {offsets = [0, 8], sizes = [8, 120], strides = [1, 1]} : vector<8x128xf32> to vector<8x120xf32>
    %347 = vector.extract_strided_slice %307 {offsets = [0, 0], sizes = [8, 8], strides = [1, 1]} : vector<8x128xf32> to vector<8x8xf32>
    %348 = tpu.concatenate %346, %347 in 1 : vector<8x120xf32>, vector<8x8xf32> -> vector<8x128xf32>
    %349 = vector.extract_strided_slice %3 {offsets = [7, 0], sizes = [1, 128], strides = [1, 1]} : vector<9x128xf32> to vector<1x128xf32>
    %350 = vector.broadcast %349 : vector<1x128xf32> to vector<8x128xf32>
    %351 = arith.mulf %348, %350 : vector<8x128xf32>
    %352 = vector.extract_strided_slice %307 {offsets = [0, 9], sizes = [8, 119], strides = [1, 1]} : vector<8x128xf32> to vector<8x119xf32>
    %353 = vector.extract_strided_slice %307 {offsets = [0, 0], sizes = [8, 9], strides = [1, 1]} : vector<8x128xf32> to vector<8x9xf32>
    %354 = tpu.concatenate %352, %353 in 1 : vector<8x119xf32>, vector<8x9xf32> -> vector<8x128xf32>
    %355 = vector.extract_strided_slice %3 {offsets = [8, 0], sizes = [1, 128], strides = [1, 1]} : vector<9x128xf32> to vector<1x128xf32>
    %356 = vector.broadcast %355 : vector<1x128xf32> to vector<8x128xf32>
    %357 = arith.mulf %354, %356 : vector<8x128xf32>
    %358 = tpu.concatenate %315, %321, %327, %333, %307, %339, %345, %351, %357 in 0 : vector<8x128xf32>, vector<8x128xf32>, vector<8x128xf32>, vector<8x128xf32>, vector<8x128xf32>, vector<8x128xf32>, vector<8x128xf32>, vector<8x128xf32>, vector<8x128xf32> -> vector<72x128xf32>
    %359 = arith.truncf %358 : vector<72x128xf32> to vector<72x128xbf16>
    %cst_73 = arith.constant dense<0.000000e+00> : vector<8x128xf32>
    %360 = tpu.matmul %309, %359, %cst_73 {dimension_numbers = #tpu.dot_dimension_numbers<[1], [0], [0], [1], [0, 0, 1, 1], [], []>} : vector<8x72xbf16>, vector<72x128xbf16>, vector<8x128xf32> -> vector<8x128xf32>
    %361 = tpu.concatenate %360, %135 in 0 : vector<8x128xf32>, vector<8x128xf32> -> vector<16x128xf32>
    %362 = vector.extract_strided_slice %9 {offsets = [48, 0], sizes = [16, 1], strides = [1, 1]} : vector<80x1xf32> to vector<16x1xf32>
    %363 = vector.extract_strided_slice %11 {offsets = [48, 0], sizes = [16, 1], strides = [1, 1]} : vector<80x1xf32> to vector<16x1xf32>
    %364 = vector.broadcast %362 : vector<16x1xf32> to vector<16x128xf32>
    %365 = arith.mulf %361, %364 : vector<16x128xf32>
    %366 = vector.broadcast %363 : vector<16x1xf32> to vector<16x128xf32>
    %367 = arith.addf %365, %366 : vector<16x128xf32>
    %cst_74 = arith.constant 0.000000e+00 : f32
    %368 = vector.broadcast %cst_74 : f32 to vector<16x128xf32>
    %369 = arith.maximumf %367, %368 : vector<16x128xf32>
    %370 = arith.truncf %369 : vector<16x128xf32> to vector<16x128xbf16>
    %cst_75 = arith.constant dense<0.000000e+00> : vector<16x512xf32>
    %371 = tpu.matmul %370, %7, %cst_75 {dimension_numbers = #tpu.dot_dimension_numbers<[1], [0], [0], [1], [0, 0, 1, 1], [], []>} : vector<16x128xbf16>, vector<128x512xbf16>, vector<16x512xf32> -> vector<16x512xf32>
    %c0_76 = arith.constant 0 : index
    %c0_77 = arith.constant 0 : index
    %372 = vector.load %arg2[%c0_76, %c0_77] : memref<8x144xbf16, #tpu.memory_space<vmem>>, vector<8x144xbf16>
    %373 = vector.extract_strided_slice %371 {offsets = [0, 495], sizes = [16, 17], strides = [1, 1]} : vector<16x512xf32> to vector<16x17xf32>
    %374 = vector.extract_strided_slice %371 {offsets = [0, 0], sizes = [16, 495], strides = [1, 1]} : vector<16x512xf32> to vector<16x495xf32>
    %375 = tpu.concatenate %373, %374 in 1 : vector<16x17xf32>, vector<16x495xf32> -> vector<16x512xf32>
    %376 = vector.extract_strided_slice %2 {offsets = [0, 0], sizes = [1, 512], strides = [1, 1]} : vector<9x512xf32> to vector<1x512xf32>
    %377 = vector.broadcast %376 : vector<1x512xf32> to vector<16x512xf32>
    %378 = arith.mulf %375, %377 : vector<16x512xf32>
    %379 = vector.extract_strided_slice %371 {offsets = [0, 496], sizes = [16, 16], strides = [1, 1]} : vector<16x512xf32> to vector<16x16xf32>
    %380 = vector.extract_strided_slice %371 {offsets = [0, 0], sizes = [16, 496], strides = [1, 1]} : vector<16x512xf32> to vector<16x496xf32>
    %381 = tpu.concatenate %379, %380 in 1 : vector<16x16xf32>, vector<16x496xf32> -> vector<16x512xf32>
    %382 = vector.extract_strided_slice %2 {offsets = [1, 0], sizes = [1, 512], strides = [1, 1]} : vector<9x512xf32> to vector<1x512xf32>
    %383 = vector.broadcast %382 : vector<1x512xf32> to vector<16x512xf32>
    %384 = arith.mulf %381, %383 : vector<16x512xf32>
    %385 = vector.extract_strided_slice %371 {offsets = [0, 497], sizes = [16, 15], strides = [1, 1]} : vector<16x512xf32> to vector<16x15xf32>
    %386 = vector.extract_strided_slice %371 {offsets = [0, 0], sizes = [16, 497], strides = [1, 1]} : vector<16x512xf32> to vector<16x497xf32>
    %387 = tpu.concatenate %385, %386 in 1 : vector<16x15xf32>, vector<16x497xf32> -> vector<16x512xf32>
    %388 = vector.extract_strided_slice %2 {offsets = [2, 0], sizes = [1, 512], strides = [1, 1]} : vector<9x512xf32> to vector<1x512xf32>
    %389 = vector.broadcast %388 : vector<1x512xf32> to vector<16x512xf32>
    %390 = arith.mulf %387, %389 : vector<16x512xf32>
    %391 = vector.extract_strided_slice %371 {offsets = [0, 511], sizes = [16, 1], strides = [1, 1]} : vector<16x512xf32> to vector<16x1xf32>
    %392 = vector.extract_strided_slice %371 {offsets = [0, 0], sizes = [16, 511], strides = [1, 1]} : vector<16x512xf32> to vector<16x511xf32>
    %393 = tpu.concatenate %391, %392 in 1 : vector<16x1xf32>, vector<16x511xf32> -> vector<16x512xf32>
    %394 = vector.extract_strided_slice %2 {offsets = [3, 0], sizes = [1, 512], strides = [1, 1]} : vector<9x512xf32> to vector<1x512xf32>
    %395 = vector.broadcast %394 : vector<1x512xf32> to vector<16x512xf32>
    %396 = arith.mulf %393, %395 : vector<16x512xf32>
    %397 = vector.extract_strided_slice %371 {offsets = [0, 1], sizes = [16, 511], strides = [1, 1]} : vector<16x512xf32> to vector<16x511xf32>
    %398 = vector.extract_strided_slice %371 {offsets = [0, 0], sizes = [16, 1], strides = [1, 1]} : vector<16x512xf32> to vector<16x1xf32>
    %399 = tpu.concatenate %397, %398 in 1 : vector<16x511xf32>, vector<16x1xf32> -> vector<16x512xf32>
    %400 = vector.extract_strided_slice %2 {offsets = [5, 0], sizes = [1, 512], strides = [1, 1]} : vector<9x512xf32> to vector<1x512xf32>
    %401 = vector.broadcast %400 : vector<1x512xf32> to vector<16x512xf32>
    %402 = arith.mulf %399, %401 : vector<16x512xf32>
    %403 = vector.extract_strided_slice %371 {offsets = [0, 15], sizes = [16, 497], strides = [1, 1]} : vector<16x512xf32> to vector<16x497xf32>
    %404 = vector.extract_strided_slice %371 {offsets = [0, 0], sizes = [16, 15], strides = [1, 1]} : vector<16x512xf32> to vector<16x15xf32>
    %405 = tpu.concatenate %403, %404 in 1 : vector<16x497xf32>, vector<16x15xf32> -> vector<16x512xf32>
    %406 = vector.extract_strided_slice %2 {offsets = [6, 0], sizes = [1, 512], strides = [1, 1]} : vector<9x512xf32> to vector<1x512xf32>
    %407 = vector.broadcast %406 : vector<1x512xf32> to vector<16x512xf32>
    %408 = arith.mulf %405, %407 : vector<16x512xf32>
    %409 = vector.extract_strided_slice %371 {offsets = [0, 16], sizes = [16, 496], strides = [1, 1]} : vector<16x512xf32> to vector<16x496xf32>
    %410 = vector.extract_strided_slice %371 {offsets = [0, 0], sizes = [16, 16], strides = [1, 1]} : vector<16x512xf32> to vector<16x16xf32>
    %411 = tpu.concatenate %409, %410 in 1 : vector<16x496xf32>, vector<16x16xf32> -> vector<16x512xf32>
    %412 = vector.extract_strided_slice %2 {offsets = [7, 0], sizes = [1, 512], strides = [1, 1]} : vector<9x512xf32> to vector<1x512xf32>
    %413 = vector.broadcast %412 : vector<1x512xf32> to vector<16x512xf32>
    %414 = arith.mulf %411, %413 : vector<16x512xf32>
    %415 = vector.extract_strided_slice %371 {offsets = [0, 17], sizes = [16, 495], strides = [1, 1]} : vector<16x512xf32> to vector<16x495xf32>
    %416 = vector.extract_strided_slice %371 {offsets = [0, 0], sizes = [16, 17], strides = [1, 1]} : vector<16x512xf32> to vector<16x17xf32>
    %417 = tpu.concatenate %415, %416 in 1 : vector<16x495xf32>, vector<16x17xf32> -> vector<16x512xf32>
    %418 = vector.extract_strided_slice %2 {offsets = [8, 0], sizes = [1, 512], strides = [1, 1]} : vector<9x512xf32> to vector<1x512xf32>
    %419 = vector.broadcast %418 : vector<1x512xf32> to vector<16x512xf32>
    %420 = arith.mulf %417, %419 : vector<16x512xf32>
    %421 = tpu.concatenate %378, %384, %390, %396, %371, %402, %408, %414, %420 in 0 : vector<16x512xf32>, vector<16x512xf32>, vector<16x512xf32>, vector<16x512xf32>, vector<16x512xf32>, vector<16x512xf32>, vector<16x512xf32>, vector<16x512xf32>, vector<16x512xf32> -> vector<144x512xf32>
    %422 = arith.truncf %421 : vector<144x512xf32> to vector<144x512xbf16>
    %cst_78 = arith.constant dense<0.000000e+00> : vector<8x512xf32>
    %423 = tpu.matmul %372, %422, %cst_78 {dimension_numbers = #tpu.dot_dimension_numbers<[1], [0], [0], [1], [0, 0, 1, 1], [], []>} : vector<8x144xbf16>, vector<144x512xbf16>, vector<8x512xf32> -> vector<8x512xf32>
    %424 = vector.extract_strided_slice %9 {offsets = [64, 0], sizes = [8, 1], strides = [1, 1]} : vector<80x1xf32> to vector<8x1xf32>
    %425 = vector.extract_strided_slice %11 {offsets = [64, 0], sizes = [8, 1], strides = [1, 1]} : vector<80x1xf32> to vector<8x1xf32>
    %426 = vector.broadcast %424 : vector<8x1xf32> to vector<8x512xf32>
    %427 = arith.mulf %423, %426 : vector<8x512xf32>
    %428 = vector.broadcast %425 : vector<8x1xf32> to vector<8x512xf32>
    %429 = arith.addf %427, %428 : vector<8x512xf32>
    %cst_79 = arith.constant 0.000000e+00 : f32
    %430 = vector.broadcast %cst_79 : f32 to vector<8x512xf32>
    %431 = arith.maximumf %429, %430 : vector<8x512xf32>
    %c6_80 = arith.constant 6 : index
    %c0_81 = arith.constant 0 : index
    %c0_82 = arith.constant 0 : index
    %432 = vector.load %arg1[%c6_80, %c0_81, %c0_82] : memref<7x8x72xbf16, #tpu.memory_space<vmem>>, vector<1x8x72xbf16>
    %433 = vector.shape_cast %432 : vector<1x8x72xbf16> to vector<8x72xbf16>
    %434 = vector.extract_strided_slice %431 {offsets = [0, 495], sizes = [8, 17], strides = [1, 1]} : vector<8x512xf32> to vector<8x17xf32>
    %435 = vector.extract_strided_slice %431 {offsets = [0, 0], sizes = [8, 495], strides = [1, 1]} : vector<8x512xf32> to vector<8x495xf32>
    %436 = tpu.concatenate %434, %435 in 1 : vector<8x17xf32>, vector<8x495xf32> -> vector<8x512xf32>
    %437 = vector.extract_strided_slice %2 {offsets = [0, 0], sizes = [1, 512], strides = [1, 1]} : vector<9x512xf32> to vector<1x512xf32>
    %438 = vector.broadcast %437 : vector<1x512xf32> to vector<8x512xf32>
    %439 = arith.mulf %436, %438 : vector<8x512xf32>
    %440 = vector.extract_strided_slice %431 {offsets = [0, 496], sizes = [8, 16], strides = [1, 1]} : vector<8x512xf32> to vector<8x16xf32>
    %441 = vector.extract_strided_slice %431 {offsets = [0, 0], sizes = [8, 496], strides = [1, 1]} : vector<8x512xf32> to vector<8x496xf32>
    %442 = tpu.concatenate %440, %441 in 1 : vector<8x16xf32>, vector<8x496xf32> -> vector<8x512xf32>
    %443 = vector.extract_strided_slice %2 {offsets = [1, 0], sizes = [1, 512], strides = [1, 1]} : vector<9x512xf32> to vector<1x512xf32>
    %444 = vector.broadcast %443 : vector<1x512xf32> to vector<8x512xf32>
    %445 = arith.mulf %442, %444 : vector<8x512xf32>
    %446 = vector.extract_strided_slice %431 {offsets = [0, 497], sizes = [8, 15], strides = [1, 1]} : vector<8x512xf32> to vector<8x15xf32>
    %447 = vector.extract_strided_slice %431 {offsets = [0, 0], sizes = [8, 497], strides = [1, 1]} : vector<8x512xf32> to vector<8x497xf32>
    %448 = tpu.concatenate %446, %447 in 1 : vector<8x15xf32>, vector<8x497xf32> -> vector<8x512xf32>
    %449 = vector.extract_strided_slice %2 {offsets = [2, 0], sizes = [1, 512], strides = [1, 1]} : vector<9x512xf32> to vector<1x512xf32>
    %450 = vector.broadcast %449 : vector<1x512xf32> to vector<8x512xf32>
    %451 = arith.mulf %448, %450 : vector<8x512xf32>
    %452 = vector.extract_strided_slice %431 {offsets = [0, 511], sizes = [8, 1], strides = [1, 1]} : vector<8x512xf32> to vector<8x1xf32>
    %453 = vector.extract_strided_slice %431 {offsets = [0, 0], sizes = [8, 511], strides = [1, 1]} : vector<8x512xf32> to vector<8x511xf32>
    %454 = tpu.concatenate %452, %453 in 1 : vector<8x1xf32>, vector<8x511xf32> -> vector<8x512xf32>
    %455 = vector.extract_strided_slice %2 {offsets = [3, 0], sizes = [1, 512], strides = [1, 1]} : vector<9x512xf32> to vector<1x512xf32>
    %456 = vector.broadcast %455 : vector<1x512xf32> to vector<8x512xf32>
    %457 = arith.mulf %454, %456 : vector<8x512xf32>
    %458 = vector.extract_strided_slice %431 {offsets = [0, 1], sizes = [8, 511], strides = [1, 1]} : vector<8x512xf32> to vector<8x511xf32>
    %459 = vector.extract_strided_slice %431 {offsets = [0, 0], sizes = [8, 1], strides = [1, 1]} : vector<8x512xf32> to vector<8x1xf32>
    %460 = tpu.concatenate %458, %459 in 1 : vector<8x511xf32>, vector<8x1xf32> -> vector<8x512xf32>
    %461 = vector.extract_strided_slice %2 {offsets = [5, 0], sizes = [1, 512], strides = [1, 1]} : vector<9x512xf32> to vector<1x512xf32>
    %462 = vector.broadcast %461 : vector<1x512xf32> to vector<8x512xf32>
    %463 = arith.mulf %460, %462 : vector<8x512xf32>
    %464 = vector.extract_strided_slice %431 {offsets = [0, 15], sizes = [8, 497], strides = [1, 1]} : vector<8x512xf32> to vector<8x497xf32>
    %465 = vector.extract_strided_slice %431 {offsets = [0, 0], sizes = [8, 15], strides = [1, 1]} : vector<8x512xf32> to vector<8x15xf32>
    %466 = tpu.concatenate %464, %465 in 1 : vector<8x497xf32>, vector<8x15xf32> -> vector<8x512xf32>
    %467 = vector.extract_strided_slice %2 {offsets = [6, 0], sizes = [1, 512], strides = [1, 1]} : vector<9x512xf32> to vector<1x512xf32>
    %468 = vector.broadcast %467 : vector<1x512xf32> to vector<8x512xf32>
    %469 = arith.mulf %466, %468 : vector<8x512xf32>
    %470 = vector.extract_strided_slice %431 {offsets = [0, 16], sizes = [8, 496], strides = [1, 1]} : vector<8x512xf32> to vector<8x496xf32>
    %471 = vector.extract_strided_slice %431 {offsets = [0, 0], sizes = [8, 16], strides = [1, 1]} : vector<8x512xf32> to vector<8x16xf32>
    %472 = tpu.concatenate %470, %471 in 1 : vector<8x496xf32>, vector<8x16xf32> -> vector<8x512xf32>
    %473 = vector.extract_strided_slice %2 {offsets = [7, 0], sizes = [1, 512], strides = [1, 1]} : vector<9x512xf32> to vector<1x512xf32>
    %474 = vector.broadcast %473 : vector<1x512xf32> to vector<8x512xf32>
    %475 = arith.mulf %472, %474 : vector<8x512xf32>
    %476 = vector.extract_strided_slice %431 {offsets = [0, 17], sizes = [8, 495], strides = [1, 1]} : vector<8x512xf32> to vector<8x495xf32>
    %477 = vector.extract_strided_slice %431 {offsets = [0, 0], sizes = [8, 17], strides = [1, 1]} : vector<8x512xf32> to vector<8x17xf32>
    %478 = tpu.concatenate %476, %477 in 1 : vector<8x495xf32>, vector<8x17xf32> -> vector<8x512xf32>
    %479 = vector.extract_strided_slice %2 {offsets = [8, 0], sizes = [1, 512], strides = [1, 1]} : vector<9x512xf32> to vector<1x512xf32>
    %480 = vector.broadcast %479 : vector<1x512xf32> to vector<8x512xf32>
    %481 = arith.mulf %478, %480 : vector<8x512xf32>
    %482 = tpu.concatenate %439, %445, %451, %457, %431, %463, %469, %475, %481 in 0 : vector<8x512xf32>, vector<8x512xf32>, vector<8x512xf32>, vector<8x512xf32>, vector<8x512xf32>, vector<8x512xf32>, vector<8x512xf32>, vector<8x512xf32>, vector<8x512xf32> -> vector<72x512xf32>
    %483 = arith.truncf %482 : vector<72x512xf32> to vector<72x512xbf16>
    %cst_83 = arith.constant dense<0.000000e+00> : vector<8x512xf32>
    %484 = tpu.matmul %433, %483, %cst_83 {dimension_numbers = #tpu.dot_dimension_numbers<[1], [0], [0], [1], [0, 0, 1, 1], [], []>} : vector<8x72xbf16>, vector<72x512xbf16>, vector<8x512xf32> -> vector<8x512xf32>
    %485 = vector.extract_strided_slice %11 {offsets = [72, 0], sizes = [8, 1], strides = [1, 1]} : vector<80x1xf32> to vector<8x1xf32>
    %486 = vector.broadcast %485 : vector<8x1xf32> to vector<8x512xf32>
    %487 = arith.addf %484, %486 : vector<8x512xf32>
    %488 = arith.addf %487, %0 : vector<8x512xf32>
    %c0_84 = arith.constant 0 : index
    %c0_85 = arith.constant 0 : index
    %489 = vector.load %arg10[%c0_84, %c0_85] : memref<8x512xf32, #tpu.memory_space<vmem>>, vector<8x512xf32>
    tpu.vector_store %arg10[%c0_84, %c0_85], %488 {strides = array<i32>} : memref<8x512xf32, #tpu.memory_space<vmem>>, vector<8x512xf32>,
    return
  }
}

</mosaic_0001>

<llo_original>
// kernel: unet_module_forward.1
$region0: #{unet_module_forward.1}
  #allocation0 [shape = 'u32[]', space=smem, size = 0x4, offset = 0x4, fixed_abs, tag = 'smem constant byte address 0x4 - core index']
  #allocation1 [shape = 'u32[144,128]{1,0:T(1,128)}', space=vmem, size = 0x12000, scoped, tag = 'internal scratch']
  %s0 = inlined_call_operand.vmem [shape: f32[8,512], index: 0, kind: input, shape index: {}]
  %s1 = inlined_call_operand.vmem [shape: bf16[7,8,72], index: 1, kind: input, shape index: {}]
  %s2 = inlined_call_operand.vmem [shape: bf16[8,144], index: 2, kind: input, shape index: {}]
  %s3 = inlined_call_operand.vmem [shape: f32[2,80,1], index: 3, kind: input, shape index: {}]
  %s4 = inlined_call_operand.vmem [shape: f32[9,640], index: 4, kind: input, shape index: {}]
  %s5 = inlined_call_operand.vmem [shape: bf16[8,32,32], index: 5, kind: input, shape index: {}]
  %s6 = inlined_call_operand.vmem [shape: bf16[512,128], index: 6, kind: input, shape index: {}]
  %s7 = inlined_call_operand.vmem [shape: bf16[128,32], index: 7, kind: input, shape index: {}]
  %s8 = inlined_call_operand.vmem [shape: bf16[32,128], index: 8, kind: input, shape index: {}]
  %s9 = inlined_call_operand.vmem [shape: bf16[128,512], index: 9, kind: input, shape index: {}]
  %s10 = inlined_call_operand.vmem [shape: f32[8,512], index: 10, kind: output, shape index: {}]
  %s11 = sld [smem:[#allocation0]]
  $region50: #{unet_module_forward.1} parent=0
    _
  %s13 = ssub.s32 1, %s11
  %s14 = scalar_select 0, %s13, %s11
  // Predicated region
  $region2: #{unet_module_forward.1} parent=0 // pred_check
    _
  $region3: #{unet_module_forward.1} parent=0 // pred_check_branch
    %16 = sbr.rel (0) target = $region5
  $region4: #{unet_module_forward.1} parent=0 // pred_region
    _
  $region5: #{unet_module_forward.1} parent=0 // pred_fallthru
    _
  // Predicated region
  $region6: #{unet_module_forward.1} parent=0 // pred_check
    _
  $region7: #{unet_module_forward.1} parent=0 // pred_check_branch
    %18 = sbr.rel (0) target = $region9
  $region8: #{unet_module_forward.1} parent=0 // pred_region
    _
  $region9: #{unet_module_forward.1} parent=0 // pred_fallthru
    _
  // Predicated region
  $region10: #{unet_module_forward.1} parent=0 // pred_check
    _
  $region11: #{unet_module_forward.1} parent=0 // pred_check_branch
    %20 = sbr.rel (0) target = $region13
  $region12: #{unet_module_forward.1} parent=0 // pred_region
    _
  $region13: #{unet_module_forward.1} parent=0 // pred_fallthru
    _
  // Predicated region
  $region14: #{unet_module_forward.1} parent=0 // pred_check
    _
  $region15: #{unet_module_forward.1} parent=0 // pred_check_branch
    %22 = sbr.rel (0) target = $region17
  $region16: #{unet_module_forward.1} parent=0 // pred_region
    _
  $region17: #{unet_module_forward.1} parent=0 // pred_fallthru
    _
  // Predicated region
  $region18: #{unet_module_forward.1} parent=0 // pred_check
    _
  $region19: #{unet_module_forward.1} parent=0 // pred_check_branch
    %24 = sbr.rel (0) target = $region21
  $region20: #{unet_module_forward.1} parent=0 // pred_region
    _
  $region21: #{unet_module_forward.1} parent=0 // pred_fallthru
    _
  // Predicated region
  $region22: #{unet_module_forward.1} parent=0 // pred_check
    _
  $region23: #{unet_module_forward.1} parent=0 // pred_check_branch
    %26 = sbr.rel (0) target = $region25
  $region24: #{unet_module_forward.1} parent=0 // pred_region
    _
  $region25: #{unet_module_forward.1} parent=0 // pred_fallthru
    _
  // Predicated region
  $region26: #{unet_module_forward.1} parent=0 // pred_check
    _
  $region27: #{unet_module_forward.1} parent=0 // pred_check_branch
    %28 = sbr.rel (0) target = $region29
  $region28: #{unet_module_forward.1} parent=0 // pred_region
    _
  $region29: #{unet_module_forward.1} parent=0 // pred_fallthru
    _
  // Predicated region
  $region30: #{unet_module_forward.1} parent=0 // pred_check
    _
  $region31: #{unet_module_forward.1} parent=0 // pred_check_branch
    %30 = sbr.rel (0) target = $region33
  $region32: #{unet_module_forward.1} parent=0 // pred_region
    _
  $region33: #{unet_module_forward.1} parent=0 // pred_fallthru
    _
  // Predicated region
  $region34: #{unet_module_forward.1} parent=0 // pred_check
    _
  $region35: #{unet_module_forward.1} parent=0 // pred_check_branch
    %32 = sbr.rel (0) target = $region37
  $region36: #{unet_module_forward.1} parent=0 // pred_region
    _
  $region37: #{unet_module_forward.1} parent=0 // pred_fallthru
    _
  // Predicated region
  $region38: #{unet_module_forward.1} parent=0 // pred_check
    _
  $region39: #{unet_module_forward.1} parent=0 // pred_check_branch
    %34 = sbr.rel (0) target = $region41
  $region40: #{unet_module_forward.1} parent=0 // pred_region
    _
  $region41: #{unet_module_forward.1} parent=0 // pred_fallthru
    _
  %v36 = vld [vmem:[%s0] sm:$0xff]
  %v37 = vld [vmem:[%s0 + $0x8] sm:$0xff]
  %v38 = vld [vmem:[%s0 + $0x10] sm:$0xff]
  %v39 = vld [vmem:[%s0 + $0x18] sm:$0xff]
  %v40 = vld [vmem:[%s4] sm:$0xff]
  %v41 = vld [vmem:[%s4 + $0x8] sm:$0xff]
  %v42 = vld [vmem:[%s4 + $0x10] sm:$0xff]
  %v43 = vld [vmem:[%s4 + $0x18] sm:$0xff]
  %v44 = vld [vmem:[%s4 + $0x20] sm:$0xff]
  %v45 = vld [vmem:[%s4 + $0x28] sm:$0x1]
  %v46 = vld [vmem:[%s4 + $0x30] sm:$0x1]
  %v47 = vld [vmem:[%s4 + $0x38] sm:$0x1]
  %v48 = vld [vmem:[%s4 + $0x40] sm:$0x1]
  %v49 = vld [vmem:[%s4 + $0x48] sm:$0x1]
  %v50 = vld [vmem:[%s6] sm:$0xf]
  %v51 = vld [vmem:[%s6 + $0x4] sm:$0xf]
  %v52 = vld [vmem:[%s6 + $0x8] sm:$0xf]
  %v53 = vld [vmem:[%s6 + $0xc] sm:$0xf]
  %v54 = vld [vmem:[%s6 + $0x10] sm:$0xf]
  %v55 = vld [vmem:[%s6 + $0x14] sm:$0xf]
  %v56 = vld [vmem:[%s6 + $0x18] sm:$0xf]
  %v57 = vld [vmem:[%s6 + $0x1c] sm:$0xf]
  %v58 = vld [vmem:[%s6 + $0x20] sm:$0xf]
  %v59 = vld [vmem:[%s6 + $0x24] sm:$0xf]
  %v60 = vld [vmem:[%s6 + $0x28] sm:$0xf]
  %v61 = vld [vmem:[%s6 + $0x2c] sm:$0xf]
  %v62 = vld [vmem:[%s6 + $0x30] sm:$0xf]
  %v63 = vld [vmem:[%s6 + $0x34] sm:$0xf]
  %v64 = vld [vmem:[%s6 + $0x38] sm:$0xf]
  %v65 = vld [vmem:[%s6 + $0x3c] sm:$0xf]
  %v66 = vld [vmem:[%s6 + $0x40] sm:$0xf]
  %v67 = vld [vmem:[%s6 + $0x44] sm:$0xf]
  %v68 = vld [vmem:[%s6 + $0x48] sm:$0xf]
  %v69 = vld [vmem:[%s6 + $0x4c] sm:$0xf]
  %v70 = vld [vmem:[%s6 + $0x50] sm:$0xf]
  %v71 = vld [vmem:[%s6 + $0x54] sm:$0xf]
  %v72 = vld [vmem:[%s6 + $0x58] sm:$0xf]
  %v73 = vld [vmem:[%s6 + $0x5c] sm:$0xf]
  %v74 = vld [vmem:[%s6 + $0x60] sm:$0xf]
  %v75 = vld [vmem:[%s6 + $0x64] sm:$0xf]
  %v76 = vld [vmem:[%s6 + $0x68] sm:$0xf]
  %v77 = vld [vmem:[%s6 + $0x6c] sm:$0xf]
  %v78 = vld [vmem:[%s6 + $0x70] sm:$0xf]
  %v79 = vld [vmem:[%s6 + $0x74] sm:$0xf]
  %v80 = vld [vmem:[%s6 + $0x78] sm:$0xf]
  %v81 = vld [vmem:[%s6 + $0x7c] sm:$0xf]
  %v82 = vld [vmem:[%s6 + $0x80] sm:$0xf]
  %v83 = vld [vmem:[%s6 + $0x84] sm:$0xf]
  %v84 = vld [vmem:[%s6 + $0x88] sm:$0xf]
  %v85 = vld [vmem:[%s6 + $0x8c] sm:$0xf]
  %v86 = vld [vmem:[%s6 + $0x90] sm:$0xf]
  %v87 = vld [vmem:[%s6 + $0x94] sm:$0xf]
  %v88 = vld [vmem:[%s6 + $0x98] sm:$0xf]
  %v89 = vld [vmem:[%s6 + $0x9c] sm:$0xf]
  %v90 = vld [vmem:[%s6 + $0xa0] sm:$0xf]
  %v91 = vld [vmem:[%s6 + $0xa4] sm:$0xf]
  %v92 = vld [vmem:[%s6 + $0xa8] sm:$0xf]
  %v93 = vld [vmem:[%s6 + $0xac] sm:$0xf]
  %v94 = vld [vmem:[%s6 + $0xb0] sm:$0xf]
  %v95 = vld [vmem:[%s6 + $0xb4] sm:$0xf]
  %v96 = vld [vmem:[%s6 + $0xb8] sm:$0xf]
  %v97 = vld [vmem:[%s6 + $0xbc] sm:$0xf]
  %v98 = vld [vmem:[%s6 + $0xc0] sm:$0xf]
  %v99 = vld [vmem:[%s6 + $0xc4] sm:$0xf]
  %v100 = vld [vmem:[%s6 + $0xc8] sm:$0xf]
  %v101 = vld [vmem:[%s6 + $0xcc] sm:$0xf]
  %v102 = vld [vmem:[%s6 + $0xd0] sm:$0xf]
  %v103 = vld [vmem:[%s6 + $0xd4] sm:$0xf]
  %v104 = vld [vmem:[%s6 + $0xd8] sm:$0xf]
  %v105 = vld [vmem:[%s6 + $0xdc] sm:$0xf]
  %v106 = vld [vmem:[%s6 + $0xe0] sm:$0xf]
  %v107 = vld [vmem:[%s6 + $0xe4] sm:$0xf]
  %v108 = vld [vmem:[%s6 + $0xe8] sm:$0xf]
  %v109 = vld [vmem:[%s6 + $0xec] sm:$0xf]
  %v110 = vld [vmem:[%s6 + $0xf0] sm:$0xf]
  %v111 = vld [vmem:[%s6 + $0xf4] sm:$0xf]
  %v112 = vld [vmem:[%s6 + $0xf8] sm:$0xf]
  %v113 = vld [vmem:[%s6 + $0xfc] sm:$0xf]
  %v114 = vld [vmem:[%s7] sm:$0xf]
  %v115 = vld [vmem:[%s7 + $0x4] sm:$0xf]
  %v116 = vld [vmem:[%s7 + $0x8] sm:$0xf]
  %v117 = vld [vmem:[%s7 + $0xc] sm:$0xf]
  %v118 = vld [vmem:[%s7 + $0x10] sm:$0xf]
  %v119 = vld [vmem:[%s7 + $0x14] sm:$0xf]
  %v120 = vld [vmem:[%s7 + $0x18] sm:$0xf]
  %v121 = vld [vmem:[%s7 + $0x1c] sm:$0xf]
  %v122 = vld [vmem:[%s7 + $0x20] sm:$0xf]
  %v123 = vld [vmem:[%s7 + $0x24] sm:$0xf]
  %v124 = vld [vmem:[%s7 + $0x28] sm:$0xf]
  %v125 = vld [vmem:[%s7 + $0x2c] sm:$0xf]
  %v126 = vld [vmem:[%s7 + $0x30] sm:$0xf]
  %v127 = vld [vmem:[%s7 + $0x34] sm:$0xf]
  %v128 = vld [vmem:[%s7 + $0x38] sm:$0xf]
  %v129 = vld [vmem:[%s7 + $0x3c] sm:$0xf]
  %v130 = vld [vmem:[%s8] sm:$0xf]
  %v131 = vld [vmem:[%s8 + $0x4] sm:$0xf]
  %v132 = vld [vmem:[%s8 + $0x8] sm:$0xf]
  %v133 = vld [vmem:[%s8 + $0xc] sm:$0xf]
  %v134 = vld [vmem:[%s9] sm:$0xff]
  %v135 = vld [vmem:[%s9 + $0x8] sm:$0xff]
  %v136 = vld [vmem:[%s9 + $0x10] sm:$0xff]
  %v137 = vld [vmem:[%s9 + $0x18] sm:$0xff]
  %v138 = vld [vmem:[%s9 + $0x20] sm:$0xff]
  %v139 = vld [vmem:[%s9 + $0x28] sm:$0xff]
  %v140 = vld [vmem:[%s9 + $0x30] sm:$0xff]
  %v141 = vld [vmem:[%s9 + $0x38] sm:$0xff]
  %v142 = vld [vmem:[%s9 + $0x40] sm:$0xff]
  %v143 = vld [vmem:[%s9 + $0x48] sm:$0xff]
  %v144 = vld [vmem:[%s9 + $0x50] sm:$0xff]
  %v145 = vld [vmem:[%s9 + $0x58] sm:$0xff]
  %v146 = vld [vmem:[%s9 + $0x60] sm:$0xff]
  %v147 = vld [vmem:[%s9 + $0x68] sm:$0xff]
  %v148 = vld [vmem:[%s9 + $0x70] sm:$0xff]
  %v149 = vld [vmem:[%s9 + $0x78] sm:$0xff]
  %v150 = vld [vmem:[%s9 + $0x80] sm:$0xff]
  %v151 = vld [vmem:[%s9 + $0x88] sm:$0xff]
  %v152 = vld [vmem:[%s9 + $0x90] sm:$0xff]
  %v153 = vld [vmem:[%s9 + $0x98] sm:$0xff]
  %v154 = vld [vmem:[%s9 + $0xa0] sm:$0xff]
  %v155 = vld [vmem:[%s9 + $0xa8] sm:$0xff]
  %v156 = vld [vmem:[%s9 + $0xb0] sm:$0xff]
  %v157 = vld [vmem:[%s9 + $0xb8] sm:$0xff]
  %v158 = vld [vmem:[%s9 + $0xc0] sm:$0xff]
  %v159 = vld [vmem:[%s9 + $0xc8] sm:$0xff]
  %v160 = vld [vmem:[%s9 + $0xd0] sm:$0xff]
  %v161 = vld [vmem:[%s9 + $0xd8] sm:$0xff]
  %v162 = vld [vmem:[%s9 + $0xe0] sm:$0xff]
  %v163 = vld [vmem:[%s9 + $0xe8] sm:$0xff]
  %v164 = vld [vmem:[%s9 + $0xf0] sm:$0xff]
  %v165 = vld [vmem:[%s9 + $0xf8] sm:$0xff]
  %v166 = vld [vmem:[%s3] sm:$0xff]
  %v167 = vld [vmem:[%s3 + $0x8] sm:$0xff]
  %v168 = vld [vmem:[%s3 + $0x10] sm:$0xff]
  %v169 = vld [vmem:[%s3 + $0x18] sm:$0xff]
  %v170 = vld [vmem:[%s3 + $0x20] sm:$0xff]
  %v171 = vld [vmem:[%s3 + $0x28] sm:$0xff]
  %v172 = vld [vmem:[%s3 + $0x30] sm:$0xff]
  %v173 = vld [vmem:[%s3 + $0x38] sm:$0xff]
  %v174 = vld [vmem:[%s3 + $0x40] sm:$0xff]
  %s175 = scalar_lea.vmem %s3, 80
  %v176 = vld [vmem:[%s175] sm:$0xff]
  %v177 = vld [vmem:[%s175 + $0x8] sm:$0xff]
  %v178 = vld [vmem:[%s175 + $0x10] sm:$0xff]
  %v179 = vld [vmem:[%s175 + $0x18] sm:$0xff]
  %v180 = vld [vmem:[%s175 + $0x20] sm:$0xff]
  %v181 = vld [vmem:[%s175 + $0x28] sm:$0xff]
  %v182 = vld [vmem:[%s175 + $0x30] sm:$0xff]
  %v183 = vld [vmem:[%s175 + $0x38] sm:$0xff]
  %v184 = vld [vmem:[%s175 + $0x40] sm:$0xff]
  %v185 = vld [vmem:[%s175 + $0x48] sm:$0xff]
  %187 = vset.pattern.permute.xlu0 0
  %188 = vperm.xlu0 %187, %v166
  %v189 = vpop.permute.xlu0 %188
  %v191 = vmul.f32 %v36, %v189
  %v192 = vmul.f32 %v37, %v189
  %v193 = vmul.f32 %v38, %v189
  %v194 = vmul.f32 %v39, %v189
  %196 = vset.pattern.permute.xlu0 0
  %197 = vperm.xlu0 %196, %v176
  %v198 = vpop.permute.xlu0 %197
  %v200 = vadd.f32 %v191, %v198
  %v201 = vadd.f32 %v192, %v198
  %v202 = vadd.f32 %v193, %v198
  %v203 = vadd.f32 %v194, %v198
  %v204 = vmax.f32 %v200, 0.0
  %v205 = vmax.f32 %v201, 0.0
  %v206 = vmax.f32 %v202, 0.0
  %v207 = vmax.f32 %v203, 0.0
  %v208 = vld [vmem:[%s1] sm:$0xf]
  %210 = vrot.lane.b32.xlu0 %v207, 17
  %v211 = vpop.permute.xlu0 %210
  %216 = vrot.lane.b32.xlu0 %v204, 17
  %v217 = vpop.permute.xlu0 %216
  %218 = vrot.lane.b32.xlu0 %v205, 17
  %v219 = vpop.permute.xlu0 %218
  %220 = vrot.lane.b32.xlu0 %v206, 17
  %v221 = vpop.permute.xlu0 %220
  %vm222 = vcmask 138240
  %v223 = vsel %vm222, %v217, %v219
  %v224 = vsel %vm222, %v219, %v221
  %v225 = vsel %vm222, %v221, %v211
  %v230 = vsel %vm222, %v211, %v217
  %v231 = vlaneseq
  %v232 = vshrl.u32 %v231, 7
  %v233 = vsub.s32 0, %v232
  %v234 = vrot.slane %v40, %v233
  %v235 = vlaneseq
  %v236 = vshrl.u32 %v235, 7
  %v237 = vsub.s32 0, %v236
  %v238 = vrot.slane %v41, %v237
  %v239 = vlaneseq
  %v240 = vshrl.u32 %v239, 7
  %v241 = vsub.s32 0, %v240
  %v242 = vrot.slane %v42, %v241
  %v243 = vlaneseq
  %v244 = vshrl.u32 %v243, 7
  %v245 = vsub.s32 0, %v244
  %v246 = vrot.slane %v43, %v245
  %v247 = vmul.f32 %v230, %v234
  %v248 = vmul.f32 %v223, %v238
  %v249 = vmul.f32 %v224, %v242
  %v250 = vmul.f32 %v225, %v246
  %251 = vrot.lane.b32.xlu0 %v207, 16
  %v252 = vpop.permute.xlu0 %251
  %254 = vrot.lane.b32.xlu0 %v204, 16
  %v255 = vpop.permute.xlu0 %254
  %256 = vrot.lane.b32.xlu0 %v205, 16
  %v257 = vpop.permute.xlu0 %256
  %258 = vrot.lane.b32.xlu0 %v206, 16
  %v259 = vpop.permute.xlu0 %258
  %vm260 = vcmask 130048
  %v261 = vsel %vm260, %v255, %v257
  %v262 = vsel %vm260, %v257, %v259
  %v263 = vsel %vm260, %v259, %v252
  %v268 = vsel %vm260, %v252, %v255
  %v269 = vlaneseq
  %v270 = vshrl.u32 %v269, 7
  %v271 = vsub.s32 1, %v270
  %v272 = vrot.slane %v40, %v271
  %v273 = vlaneseq
  %v274 = vshrl.u32 %v273, 7
  %v275 = vsub.s32 1, %v274
  %v276 = vrot.slane %v41, %v275
  %v277 = vlaneseq
  %v278 = vshrl.u32 %v277, 7
  %v279 = vsub.s32 1, %v278
  %v280 = vrot.slane %v42, %v279
  %v281 = vlaneseq
  %v282 = vshrl.u32 %v281, 7
  %v283 = vsub.s32 1, %v282
  %v284 = vrot.slane %v43, %v283
  %v285 = vmul.f32 %v268, %v272
  %v286 = vmul.f32 %v261, %v276
  %v287 = vmul.f32 %v262, %v280
  %v288 = vmul.f32 %v263, %v284
  %289 = vrot.lane.b32.xlu0 %v207, 15
  %v290 = vpop.permute.xlu0 %289
  %292 = vrot.lane.b32.xlu0 %v204, 15
  %v293 = vpop.permute.xlu0 %292
  %294 = vrot.lane.b32.xlu0 %v205, 15
  %v295 = vpop.permute.xlu0 %294
  %296 = vrot.lane.b32.xlu0 %v206, 15
  %v297 = vpop.permute.xlu0 %296
  %vm298 = vcmask 121856
  %v299 = vsel %vm298, %v293, %v295
  %v300 = vsel %vm298, %v295, %v297
  %v301 = vsel %vm298, %v297, %v290
  %v306 = vsel %vm298, %v290, %v293
  %v307 = vlaneseq
  %v308 = vshrl.u32 %v307, 7
  %v309 = vsub.s32 2, %v308
  %v310 = vrot.slane %v40, %v309
  %v311 = vlaneseq
  %v312 = vshrl.u32 %v311, 7
  %v313 = vsub.s32 2, %v312
  %v314 = vrot.slane %v41, %v313
  %v315 = vlaneseq
  %v316 = vshrl.u32 %v315, 7
  %v317 = vsub.s32 2, %v316
  %v318 = vrot.slane %v42, %v317
  %v319 = vlaneseq
  %v320 = vshrl.u32 %v319, 7
  %v321 = vsub.s32 2, %v320
  %v322 = vrot.slane %v43, %v321
  %v323 = vmul.f32 %v306, %v310
  %v324 = vmul.f32 %v299, %v314
  %v325 = vmul.f32 %v300, %v318
  %v326 = vmul.f32 %v301, %v322
  %327 = vrot.lane.b32.xlu0 %v207, 1
  %v328 = vpop.permute.xlu0 %327
  %330 = vrot.lane.b32.xlu0 %v204, 1
  %v331 = vpop.permute.xlu0 %330
  %332 = vrot.lane.b32.xlu0 %v205, 1
  %v333 = vpop.permute.xlu0 %332
  %334 = vrot.lane.b32.xlu0 %v206, 1
  %v335 = vpop.permute.xlu0 %334
  %vm336 = vcmask 7168
  %v337 = vsel %vm336, %v331, %v333
  %v338 = vsel %vm336, %v333, %v335
  %v339 = vsel %vm336, %v335, %v328
  %v344 = vsel %vm336, %v328, %v331
  %v345 = vlaneseq
  %v346 = vshrl.u32 %v345, 7
  %v347 = vsub.s32 3, %v346
  %v348 = vrot.slane %v40, %v347
  %v349 = vlaneseq
  %v350 = vshrl.u32 %v349, 7
  %v351 = vsub.s32 3, %v350
  %v352 = vrot.slane %v41, %v351
  %v353 = vlaneseq
  %v354 = vshrl.u32 %v353, 7
  %v355 = vsub.s32 3, %v354
  %v356 = vrot.slane %v42, %v355
  %v357 = vlaneseq
  %v358 = vshrl.u32 %v357, 7
  %v359 = vsub.s32 3, %v358
  %v360 = vrot.slane %v43, %v359
  %v361 = vmul.f32 %v344, %v348
  %v362 = vmul.f32 %v337, %v352
  %v363 = vmul.f32 %v338, %v356
  %v364 = vmul.f32 %v339, %v360
  %365 = vrot.lane.b32.xlu0 %v204, 127
  %v366 = vpop.permute.xlu0 %365
  %367 = vrot.lane.b32.xlu0 %v205, 127
  %v368 = vpop.permute.xlu0 %367
  %369 = vrot.lane.b32.xlu0 %v206, 127
  %v370 = vpop.permute.xlu0 %369
  %371 = vrot.lane.b32.xlu0 %v207, 127
  %v372 = vpop.permute.xlu0 %371
  %vm373 = vcmask 1039360
  %v374 = vsel %vm373, %v366, %v368
  %v375 = vsel %vm373, %v368, %v370
  %v376 = vsel %vm373, %v370, %v372
  %v382 = vsel %vm373, %v372, %v366
  %v383 = vlaneseq
  %v384 = vshrl.u32 %v383, 7
  %v385 = vsub.s32 5, %v384
  %v386 = vrot.slane %v40, %v385
  %v387 = vlaneseq
  %v388 = vshrl.u32 %v387, 7
  %v389 = vsub.s32 5, %v388
  %v390 = vrot.slane %v41, %v389
  %v391 = vlaneseq
  %v392 = vshrl.u32 %v391, 7
  %v393 = vsub.s32 5, %v392
  %v394 = vrot.slane %v42, %v393
  %v395 = vlaneseq
  %v396 = vshrl.u32 %v395, 7
  %v397 = vsub.s32 5, %v396
  %v398 = vrot.slane %v43, %v397
  %v399 = vmul.f32 %v374, %v386
  %v400 = vmul.f32 %v375, %v390
  %v401 = vmul.f32 %v376, %v394
  %v402 = vmul.f32 %v382, %v398
  %403 = vrot.lane.b32.xlu0 %v204, 113
  %v404 = vpop.permute.xlu0 %403
  %405 = vrot.lane.b32.xlu0 %v205, 113
  %v406 = vpop.permute.xlu0 %405
  %407 = vrot.lane.b32.xlu0 %v206, 113
  %v408 = vpop.permute.xlu0 %407
  %409 = vrot.lane.b32.xlu0 %v207, 113
  %v410 = vpop.permute.xlu0 %409
  %vm411 = vcmask 924672
  %v412 = vsel %vm411, %v404, %v406
  %v413 = vsel %vm411, %v406, %v408
  %v414 = vsel %vm411, %v408, %v410
  %v420 = vsel %vm411, %v410, %v404
  %v421 = vlaneseq
  %v422 = vshrl.u32 %v421, 7
  %v423 = vsub.s32 6, %v422
  %v424 = vrot.slane %v40, %v423
  %v425 = vlaneseq
  %v426 = vshrl.u32 %v425, 7
  %v427 = vsub.s32 6, %v426
  %v428 = vrot.slane %v41, %v427
  %v429 = vlaneseq
  %v430 = vshrl.u32 %v429, 7
  %v431 = vsub.s32 6, %v430
  %v432 = vrot.slane %v42, %v431
  %v433 = vlaneseq
  %v434 = vshrl.u32 %v433, 7
  %v435 = vsub.s32 6, %v434
  %v436 = vrot.slane %v43, %v435
  %v437 = vmul.f32 %v412, %v424
  %v438 = vmul.f32 %v413, %v428
  %v439 = vmul.f32 %v414, %v432
  %v440 = vmul.f32 %v420, %v436
  %441 = vrot.lane.b32.xlu0 %v204, 112
  %v442 = vpop.permute.xlu0 %441
  %443 = vrot.lane.b32.xlu0 %v205, 112
  %v444 = vpop.permute.xlu0 %443
  %445 = vrot.lane.b32.xlu0 %v206, 112
  %v446 = vpop.permute.xlu0 %445
  %447 = vrot.lane.b32.xlu0 %v207, 112
  %v448 = vpop.permute.xlu0 %447
  %vm449 = vcmask 916480
  %v450 = vsel %vm449, %v442, %v444
  %v451 = vsel %vm449, %v444, %v446
  %v452 = vsel %vm449, %v446, %v448
  %v458 = vsel %vm449, %v448, %v442
  %v459 = vlaneseq
  %v460 = vshrl.u32 %v459, 7
  %v461 = vsub.s32 7, %v460
  %v462 = vrot.slane %v40, %v461
  %v463 = vlaneseq
  %v464 = vshrl.u32 %v463, 7
  %v465 = vsub.s32 7, %v464
  %v466 = vrot.slane %v41, %v465
  %v467 = vlaneseq
  %v468 = vshrl.u32 %v467, 7
  %v469 = vsub.s32 7, %v468
  %v470 = vrot.slane %v42, %v469
  %v471 = vlaneseq
  %v472 = vshrl.u32 %v471, 7
  %v473 = vsub.s32 7, %v472
  %v474 = vrot.slane %v43, %v473
  %v475 = vmul.f32 %v450, %v462
  %v476 = vmul.f32 %v451, %v466
  %v477 = vmul.f32 %v452, %v470
  %v478 = vmul.f32 %v458, %v474
  %479 = vrot.lane.b32.xlu0 %v204, 111
  %v480 = vpop.permute.xlu0 %479
  %481 = vrot.lane.b32.xlu0 %v205, 111
  %v482 = vpop.permute.xlu0 %481
  %483 = vrot.lane.b32.xlu0 %v206, 111
  %v484 = vpop.permute.xlu0 %483
  %485 = vrot.lane.b32.xlu0 %v207, 111
  %v486 = vpop.permute.xlu0 %485
  %vm487 = vcmask 908288
  %v488 = vsel %vm487, %v480, %v482
  %v489 = vsel %vm487, %v482, %v484
  %v490 = vsel %vm487, %v484, %v486
  %v496 = vsel %vm487, %v486, %v480
  %v497 = vlaneseq
  %v498 = vshrl.u32 %v497, 7
  %v499 = vsub.s32 0, %v498
  %v500 = vrot.slane %v45, %v499
  %v501 = vlaneseq
  %v502 = vshrl.u32 %v501, 7
  %v503 = vsub.s32 0, %v502
  %v504 = vrot.slane %v46, %v503
  %v505 = vlaneseq
  %v506 = vshrl.u32 %v505, 7
  %v507 = vsub.s32 0, %v506
  %v508 = vrot.slane %v47, %v507
  %v509 = vlaneseq
  %v510 = vshrl.u32 %v509, 7
  %v511 = vsub.s32 0, %v510
  %v512 = vrot.slane %v48, %v511
  %v513 = vmul.f32 %v488, %v500
  %v514 = vmul.f32 %v489, %v504
  %v515 = vmul.f32 %v490, %v508
  %v516 = vmul.f32 %v496, %v512
  %v517 = vpack.c.bf16 %v285, %v247
  %v518 = vpack.c.bf16 %v286, %v248
  %v519 = vpack.c.bf16 %v287, %v249
  %v520 = vpack.c.bf16 %v288, %v250
  %v521 = vpack.c.bf16 %v361, %v323
  %v522 = vpack.c.bf16 %v362, %v324
  %v523 = vpack.c.bf16 %v363, %v325
  %v524 = vpack.c.bf16 %v364, %v326
  %v525 = vpack.c.bf16 %v399, %v204
  %v526 = vpack.c.bf16 %v400, %v205
  %v527 = vpack.c.bf16 %v401, %v206
  %v528 = vpack.c.bf16 %v402, %v207
  %v529 = vpack.c.bf16 %v475, %v437
  %v530 = vpack.c.bf16 %v476, %v438
  %v531 = vpack.c.bf16 %v477, %v439
  %v532 = vpack.c.bf16 %v478, %v440
  %v533 = vpack.c.bf16 %v513, %v513
  %v534 = vpack.c.bf16 %v514, %v514
  %v535 = vpack.c.bf16 %v515, %v515
  %v536 = vpack.c.bf16 %v516, %v516
  %vm537 = vcmask 588800
  %v539 = vsel %vm537, %v208, 0
  %vm541 = vcmask 1043456
  %v543 = vsel %vm541, %v533, 0
  %v546 = vsel %vm541, %v534, 0
  %v549 = vsel %vm541, %v535, 0
  %v552 = vsel %vm541, %v536, 0
  %554 = vmatprep.subr.bf16.mxu0 %v518
  %555 = vmatpush1.bf16.msra.mxu0 %v517
  %556 = vmatprep.subr.bf16.mxu0 %v522
  %557 = vmatpush1.bf16.msra.mxu0 %v521
  %558 = vmatprep.subr.bf16.mxu0 %v526
  %559 = vmatpush1.bf16.msra.mxu0 %v525
  %560 = vmatprep.subr.bf16.mxu0 %v530
  %561 = vmatpush1.bf16.msra.mxu0 %v529
  %562 = vmatprep.subr.bf16.mxu0 %v546
  %563 = vmatpush1.bf16.msra.mxu0 %v543
  %564 = vmatprep.subr.bf16.mxu0 0
  %565 = vmatpush1.bf16.msra.mxu0 0
  %566 = vmatprep.subr.bf16.mxu0 0
  %567 = vmatpush1.bf16.msra.mxu0 0
  %568 = vmatprep.subr.bf16.mxu0 0
  %569 = vmatpush1.bf16.msra.mxu0 0
  %570 = vmatprep.subr.bf16.mxu0 0
  %571 = vmatpush1.bf16.msra.mxu0 0
  %572 = vmatprep.subr.bf16.mxu0 0
  %573 = vmatpush1.bf16.msra.mxu0 0
  %574 = vmatprep.subr.bf16.mxu0 0
  %575 = vmatpush1.bf16.msra.mxu0 0
  %576 = vmatprep.subr.bf16.mxu0 0
  %577 = vmatpush1.bf16.msra.mxu0 0
  %578 = vmatprep.subr.bf16.mxu0 0
  %579 = vmatpush1.bf16.msra.mxu0 0
  %580 = vmatprep.subr.bf16.mxu0 0
  %581 = vmatpush1.bf16.msra.mxu0 0
  %582 = vmatprep.subr.bf16.mxu0 0
  %583 = vmatpush1.bf16.msra.mxu0 0
  %584 = vmatprep.subr.bf16.mxu0 0
  %585 = vmatpush1.bf16.msra.mxu0 0
  %586 = vmatprep.mubr.bf16.mxu0 0
  %587 = vmatmul.mubr.bf16.gmra.mrb[0].mxu0 %v539
  %v588 = vpop.f32.mrb[0].mxu0
  %v589 = vadd.f32 0.0, %v588
  %v590 = vpop.f32.mrb[0].mxu0
  %v591 = vadd.f32 0.0, %v590
  %v592 = vpop.f32.mrb[0].mxu0
  %v593 = vpop.f32.mrb[0].mxu0
  %594 = vdwg.mxu0
  %595 = vmatprep.subr.bf16.mxu0 %v520
  %596 = vmatpush1.bf16.msra.mxu0 %v519
  %597 = vmatprep.subr.bf16.mxu0 %v524
  %598 = vmatpush1.bf16.msra.mxu0 %v523
  %599 = vmatprep.subr.bf16.mxu0 %v528
  %600 = vmatpush1.bf16.msra.mxu0 %v527
  %601 = vmatprep.subr.bf16.mxu0 %v532
  %602 = vmatpush1.bf16.msra.mxu0 %v531
  %603 = vmatprep.subr.bf16.mxu0 %v552
  %604 = vmatpush1.bf16.msra.mxu0 %v549
  %605 = vmatprep.subr.bf16.mxu0 0
  %606 = vmatpush1.bf16.msra.mxu0 0
  %607 = vmatprep.subr.bf16.mxu0 0
  %608 = vmatpush1.bf16.msra.mxu0 0
  %609 = vmatprep.subr.bf16.mxu0 0
  %610 = vmatpush1.bf16.msra.mxu0 0
  %611 = vmatprep.subr.bf16.mxu0 0
  %612 = vmatpush1.bf16.msra.mxu0 0
  %613 = vmatprep.subr.bf16.mxu0 0
  %614 = vmatpush1.bf16.msra.mxu0 0
  %615 = vmatprep.subr.bf16.mxu0 0
  %616 = vmatpush1.bf16.msra.mxu0 0
  %617 = vmatprep.subr.bf16.mxu0 0
  %618 = vmatpush1.bf16.msra.mxu0 0
  %619 = vmatprep.subr.bf16.mxu0 0
  %620 = vmatpush1.bf16.msra.mxu0 0
  %621 = vmatprep.subr.bf16.mxu0 0
  %622 = vmatpush1.bf16.msra.mxu0 0
  %623 = vmatprep.subr.bf16.mxu0 0
  %624 = vmatpush1.bf16.msra.mxu0 0
  %625 = vmatprep.subr.bf16.mxu0 0
  %626 = vmatpush1.bf16.msra.mxu0 0
  %627 = vmatprep.mubr.bf16.mxu0 0
  %628 = vmatmul.mubr.bf16.gmra.mrb[0].mxu0 %v539
  %v629 = vpop.f32.mrb[0].mxu0
  %v630 = vadd.f32 0.0, %v629
  %v631 = vpop.f32.mrb[0].mxu0
  %v632 = vadd.f32 0.0, %v631
  %v633 = vpop.f32.mrb[0].mxu0
  %v634 = vpop.f32.mrb[0].mxu0
  %635 = vdwg.mxu0
  %v636 = vpack.c.bf16 %v589, %v589
  %v637 = vpack.c.bf16 %v591, %v591
  %v638 = vpack.c.bf16 %v630, %v630
  %v639 = vpack.c.bf16 %v632, %v632
  %v704 = vunpack.c.l.b16 %v50
  %v705 = vunpack.c.l.b16 %v51
  %v706 = vunpack.c.l.b16 %v52
  %v707 = vunpack.c.l.b16 %v53
  %v708 = vunpack.c.l.b16 %v54
  %v709 = vunpack.c.l.b16 %v55
  %v710 = vunpack.c.l.b16 %v56
  %v711 = vunpack.c.l.b16 %v57
  %v712 = vunpack.c.l.b16 %v58
  %v713 = vunpack.c.l.b16 %v59
  %v714 = vunpack.c.l.b16 %v60
  %v715 = vunpack.c.l.b16 %v61
  %v716 = vunpack.c.l.b16 %v62
  %v717 = vunpack.c.l.b16 %v63
  %v718 = vunpack.c.l.b16 %v64
  %v719 = vunpack.c.l.b16 %v65
  %v720 = vunpack.c.l.b16 %v66
  %v721 = vunpack.c.l.b16 %v67
  %v722 = vunpack.c.l.b16 %v68
  %v723 = vunpack.c.l.b16 %v69
  %v724 = vunpack.c.l.b16 %v70
  %v725 = vunpack.c.l.b16 %v71
  %v726 = vunpack.c.l.b16 %v72
  %v727 = vunpack.c.l.b16 %v73
  %v728 = vunpack.c.l.b16 %v74
  %v729 = vunpack.c.l.b16 %v75
  %v730 = vunpack.c.l.b16 %v76
  %v731 = vunpack.c.l.b16 %v77
  %v732 = vunpack.c.l.b16 %v78
  %v733 = vunpack.c.l.b16 %v79
  %v734 = vunpack.c.l.b16 %v80
  %v735 = vunpack.c.l.b16 %v81
  %v736 = vunpack.c.l.b16 %v82
  %v737 = vunpack.c.l.b16 %v83
  %v738 = vunpack.c.l.b16 %v84
  %v739 = vunpack.c.l.b16 %v85
  %v740 = vunpack.c.l.b16 %v86
  %v741 = vunpack.c.l.b16 %v87
  %v742 = vunpack.c.l.b16 %v88
  %v743 = vunpack.c.l.b16 %v89
  %v744 = vunpack.c.l.b16 %v90
  %v745 = vunpack.c.l.b16 %v91
  %v746 = vunpack.c.l.b16 %v92
  %v747 = vunpack.c.l.b16 %v93
  %v748 = vunpack.c.l.b16 %v94
  %v749 = vunpack.c.l.b16 %v95
  %v750 = vunpack.c.l.b16 %v96
  %v751 = vunpack.c.l.b16 %v97
  %v752 = vunpack.c.l.b16 %v98
  %v753 = vunpack.c.l.b16 %v99
  %v754 = vunpack.c.l.b16 %v100
  %v755 = vunpack.c.l.b16 %v101
  %v756 = vunpack.c.l.b16 %v102
  %v757 = vunpack.c.l.b16 %v103
  %v758 = vunpack.c.l.b16 %v104
  %v759 = vunpack.c.l.b16 %v105
  %v760 = vunpack.c.l.b16 %v106
  %v761 = vunpack.c.l.b16 %v107
  %v762 = vunpack.c.l.b16 %v108
  %v763 = vunpack.c.l.b16 %v109
  %v764 = vunpack.c.l.b16 %v110
  %v765 = vunpack.c.l.b16 %v111
  %v766 = vunpack.c.l.b16 %v112
  %v767 = vunpack.c.l.b16 %v113
  %v768 = vpack.c.b16 %v705, %v704
  %v769 = vpack.c.b16 %v707, %v706
  %v770 = vpack.c.b16 %v709, %v708
  %v771 = vpack.c.b16 %v711, %v710
  %v772 = vpack.c.b16 %v713, %v712
  %v773 = vpack.c.b16 %v715, %v714
  %v774 = vpack.c.b16 %v717, %v716
  %v775 = vpack.c.b16 %v719, %v718
  %v776 = vpack.c.b16 %v721, %v720
  %v777 = vpack.c.b16 %v723, %v722
  %v778 = vpack.c.b16 %v725, %v724
  %v779 = vpack.c.b16 %v727, %v726
  %v780 = vpack.c.b16 %v729, %v728
  %v781 = vpack.c.b16 %v731, %v730
  %v782 = vpack.c.b16 %v733, %v732
  %v783 = vpack.c.b16 %v735, %v734
  %v784 = vpack.c.b16 %v737, %v736
  %v785 = vpack.c.b16 %v739, %v738
  %v786 = vpack.c.b16 %v741, %v740
  %v787 = vpack.c.b16 %v743, %v742
  %v788 = vpack.c.b16 %v745, %v744
  %v789 = vpack.c.b16 %v747, %v746
  %v790 = vpack.c.b16 %v749, %v748
  %v791 = vpack.c.b16 %v751, %v750
  %v792 = vpack.c.b16 %v753, %v752
  %v793 = vpack.c.b16 %v755, %v754
  %v794 = vpack.c.b16 %v757, %v756
  %v795 = vpack.c.b16 %v759, %v758
  %v796 = vpack.c.b16 %v761, %v760
  %v797 = vpack.c.b16 %v763, %v762
  %v798 = vpack.c.b16 %v765, %v764
  %v799 = vpack.c.b16 %v767, %v766
  %832 = vmatprep.subr.bf16.mxu0 0
  %833 = vmatpush1.bf16.msra.mxu0 %v768
  %834 = vmatprep.subr.bf16.mxu0 0
  %835 = vmatpush1.bf16.msra.mxu0 %v769
  %836 = vmatprep.subr.bf16.mxu0 0
  %837 = vmatpush1.bf16.msra.mxu0 %v770
  %838 = vmatprep.subr.bf16.mxu0 0
  %839 = vmatpush1.bf16.msra.mxu0 %v771
  %840 = vmatprep.subr.bf16.mxu0 0
  %841 = vmatpush1.bf16.msra.mxu0 %v772
  %842 = vmatprep.subr.bf16.mxu0 0
  %843 = vmatpush1.bf16.msra.mxu0 %v773
  %844 = vmatprep.subr.bf16.mxu0 0
  %845 = vmatpush1.bf16.msra.mxu0 %v774
  %846 = vmatprep.subr.bf16.mxu0 0
  %847 = vmatpush1.bf16.msra.mxu0 %v775
  %848 = vmatprep.subr.bf16.mxu0 0
  %849 = vmatpush1.bf16.msra.mxu0 %v776
  %850 = vmatprep.subr.bf16.mxu0 0
  %851 = vmatpush1.bf16.msra.mxu0 %v777
  %852 = vmatprep.subr.bf16.mxu0 0
  %853 = vmatpush1.bf16.msra.mxu0 %v778
  %854 = vmatprep.subr.bf16.mxu0 0
  %855 = vmatpush1.bf16.msra.mxu0 %v779
  %856 = vmatprep.subr.bf16.mxu0 0
  %857 = vmatpush1.bf16.msra.mxu0 %v780
  %858 = vmatprep.subr.bf16.mxu0 0
  %859 = vmatpush1.bf16.msra.mxu0 %v781
  %860 = vmatprep.subr.bf16.mxu0 0
  %861 = vmatpush1.bf16.msra.mxu0 %v782
  %862 = vmatprep.subr.bf16.mxu0 0
  %863 = vmatpush1.bf16.msra.mxu0 %v783
  %864 = vmatprep.mubr.bf16.mxu0 %v637
  %865 = vmatmul.mubr.bf16.gmra.mrb[0].mxu0 %v636
  %v866 = vpop.f32.mrb[0].mxu0
  %v867 = vadd.f32 0.0, %v866
  %v868 = vpop.f32.mrb[0].mxu0
  %v869 = vpop.f32.mrb[0].mxu0
  %v870 = vpop.f32.mrb[0].mxu0
  %871 = vdwg.mxu0
  %872 = vmatprep.subr.bf16.mxu0 0
  %873 = vmatpush1.bf16.msra.mxu0 %v784
  %874 = vmatprep.subr.bf16.mxu0 0
  %875 = vmatpush1.bf16.msra.mxu0 %v785
  %876 = vmatprep.subr.bf16.mxu0 0
  %877 = vmatpush1.bf16.msra.mxu0 %v786
  %878 = vmatprep.subr.bf16.mxu0 0
  %879 = vmatpush1.bf16.msra.mxu0 %v787
  %880 = vmatprep.subr.bf16.mxu0 0
  %881 = vmatpush1.bf16.msra.mxu0 %v788
  %882 = vmatprep.subr.bf16.mxu0 0
  %883 = vmatpush1.bf16.msra.mxu0 %v789
  %884 = vmatprep.subr.bf16.mxu0 0
  %885 = vmatpush1.bf16.msra.mxu0 %v790
  %886 = vmatprep.subr.bf16.mxu0 0
  %887 = vmatpush1.bf16.msra.mxu0 %v791
  %888 = vmatprep.subr.bf16.mxu0 0
  %889 = vmatpush1.bf16.msra.mxu0 %v792
  %890 = vmatprep.subr.bf16.mxu0 0
  %891 = vmatpush1.bf16.msra.mxu0 %v793
  %892 = vmatprep.subr.bf16.mxu0 0
  %893 = vmatpush1.bf16.msra.mxu0 %v794
  %894 = vmatprep.subr.bf16.mxu0 0
  %895 = vmatpush1.bf16.msra.mxu0 %v795
  %896 = vmatprep.subr.bf16.mxu0 0
  %897 = vmatpush1.bf16.msra.mxu0 %v796
  %898 = vmatprep.subr.bf16.mxu0 0
  %899 = vmatpush1.bf16.msra.mxu0 %v797
  %900 = vmatprep.subr.bf16.mxu0 0
  %901 = vmatpush1.bf16.msra.mxu0 %v798
  %902 = vmatprep.subr.bf16.mxu0 0
  %903 = vmatpush1.bf16.msra.mxu0 %v799
  %904 = vmatprep.mubr.bf16.mxu0 %v639
  %905 = vmatmul.mubr.bf16.gmra.mrb[0].mxu0 %v638
  %v906 = vpop.f32.mrb[0].mxu0
  %v907 = vadd.f32 %v867, %v906
  %v908 = vpop.f32.mrb[0].mxu0
  %v909 = vpop.f32.mrb[0].mxu0
  %v910 = vpop.f32.mrb[0].mxu0
  %911 = vdwg.mxu0
  %913 = vset.pattern.permute.xlu0 0
  %914 = vperm.xlu0 %913, %v167
  %v915 = vpop.permute.xlu0 %914
  %v917 = vmul.f32 %v907, %v915
  %919 = vset.pattern.permute.xlu0 0
  %920 = vperm.xlu0 %919, %v177
  %v921 = vpop.permute.xlu0 %920
  %v923 = vadd.f32 %v917, %v921
  %v924 = vmax.f32 %v923, 0.0
  %s925 = scalar_lea.vmem %s1, 4
  %v926 = vld [vmem:[%s925] sm:$0xf]
  %928 = vrot.lane.b32.xlu0 %v924, 9
  %v929 = vpop.permute.xlu0 %928
  %v931 = vlaneseq
  %v932 = vshrl.u32 %v931, 7
  %v933 = vsub.s32 0, %v932
  %v934 = vrot.slane %v44, %v933
  %v935 = vmul.f32 %v929, %v934
  %936 = vrot.lane.b32.xlu0 %v924, 8
  %v937 = vpop.permute.xlu0 %936
  %v939 = vlaneseq
  %v940 = vshrl.u32 %v939, 7
  %v941 = vsub.s32 1, %v940
  %v942 = vrot.slane %v44, %v941
  %v943 = vmul.f32 %v937, %v942
  %944 = vrot.lane.b32.xlu0 %v924, 7
  %v945 = vpop.permute.xlu0 %944
  %v947 = vlaneseq
  %v948 = vshrl.u32 %v947, 7
  %v949 = vsub.s32 2, %v948
  %v950 = vrot.slane %v44, %v949
  %v951 = vmul.f32 %v945, %v950
  %952 = vrot.lane.b32.xlu0 %v924, 1
  %v953 = vpop.permute.xlu0 %952
  %v955 = vlaneseq
  %v956 = vshrl.u32 %v955, 7
  %v957 = vsub.s32 3, %v956
  %v958 = vrot.slane %v44, %v957
  %v959 = vmul.f32 %v953, %v958
  %960 = vrot.lane.b32.xlu0 %v924, 127
  %v961 = vpop.permute.xlu0 %960
  %v963 = vlaneseq
  %v964 = vshrl.u32 %v963, 7
  %v965 = vsub.s32 5, %v964
  %v966 = vrot.slane %v44, %v965
  %v967 = vmul.f32 %v961, %v966
  %968 = vrot.lane.b32.xlu0 %v924, 121
  %v969 = vpop.permute.xlu0 %968
  %v971 = vlaneseq
  %v972 = vshrl.u32 %v971, 7
  %v973 = vsub.s32 6, %v972
  %v974 = vrot.slane %v44, %v973
  %v975 = vmul.f32 %v969, %v974
  %976 = vrot.lane.b32.xlu0 %v924, 120
  %v977 = vpop.permute.xlu0 %976
  %v979 = vlaneseq
  %v980 = vshrl.u32 %v979, 7
  %v981 = vsub.s32 7, %v980
  %v982 = vrot.slane %v44, %v981
  %v983 = vmul.f32 %v977, %v982
  %984 = vrot.lane.b32.xlu0 %v924, 119
  %v985 = vpop.permute.xlu0 %984
  %v987 = vlaneseq
  %v988 = vshrl.u32 %v987, 7
  %v989 = vsub.s32 0, %v988
  %v990 = vrot.slane %v49, %v989
  %v991 = vmul.f32 %v985, %v990
  %v992 = vpack.c.bf16 %v943, %v935
  %v993 = vpack.c.bf16 %v959, %v951
  %v994 = vpack.c.bf16 %v967, %v924
  %v995 = vpack.c.bf16 %v983, %v975
  %v996 = vpack.c.bf16 %v991, %v991
  %v998 = vsel %vm537, %v926, 0
  %v1001 = vsel %vm541, %v996, 0
  %1003 = vmatprep.subr.bf16.mxu0 0
  %1004 = vmatpush1.bf16.msra.mxu0 %v992
  %1005 = vmatprep.subr.bf16.mxu0 0
  %1006 = vmatpush1.bf16.msra.mxu0 %v993
  %1007 = vmatprep.subr.bf16.mxu0 0
  %1008 = vmatpush1.bf16.msra.mxu0 %v994
  %1009 = vmatprep.subr.bf16.mxu0 0
  %1010 = vmatpush1.bf16.msra.mxu0 %v995
  %1011 = vmatprep.subr.bf16.mxu0 0
  %1012 = vmatpush1.bf16.msra.mxu0 %v1001
  %1013 = vmatprep.subr.bf16.mxu0 0
  %1014 = vmatpush1.bf16.msra.mxu0 0
  %1015 = vmatprep.subr.bf16.mxu0 0
  %1016 = vmatpush1.bf16.msra.mxu0 0
  %1017 = vmatprep.subr.bf16.mxu0 0
  %1018 = vmatpush1.bf16.msra.mxu0 0
  %1019 = vmatprep.subr.bf16.mxu0 0
  %1020 = vmatpush1.bf16.msra.mxu0 0
  %1021 = vmatprep.subr.bf16.mxu0 0
  %1022 = vmatpush1.bf16.msra.mxu0 0
  %1023 = vmatprep.subr.bf16.mxu0 0
  %1024 = vmatpush1.bf16.msra.mxu0 0
  %1025 = vmatprep.subr.bf16.mxu0 0
  %1026 = vmatpush1.bf16.msra.mxu0 0
  %1027 = vmatprep.subr.bf16.mxu0 0
  %1028 = vmatpush1.bf16.msra.mxu0 0
  %1029 = vmatprep.subr.bf16.mxu0 0
  %1030 = vmatpush1.bf16.msra.mxu0 0
  %1031 = vmatprep.subr.bf16.mxu0 0
  %1032 = vmatpush1.bf16.msra.mxu0 0
  %1033 = vmatprep.subr.bf16.mxu0 0
  %1034 = vmatpush1.bf16.msra.mxu0 0
  %1035 = vmatprep.mubr.bf16.mxu0 0
  %1036 = vmatmul.mubr.bf16.gmra.mrb[0].mxu0 %v998
  %v1037 = vpop.f32.mrb[0].mxu0
  %v1038 = vadd.f32 0.0, %v1037
  %v1039 = vpop.f32.mrb[0].mxu0
  %v1040 = vpop.f32.mrb[0].mxu0
  %v1041 = vpop.f32.mrb[0].mxu0
  %1042 = vdwg.mxu0
  %1044 = vset.pattern.permute.xlu0 0
  %1045 = vperm.xlu0 %1044, %v168
  %v1046 = vpop.permute.xlu0 %1045
  %v1048 = vmul.f32 %v1038, %v1046
  %1050 = vset.pattern.permute.xlu0 0
  %1051 = vperm.xlu0 %1050, %v178
  %v1052 = vpop.permute.xlu0 %1051
  %v1054 = vadd.f32 %v1048, %v1052
  %v1055 = vmax.f32 %v1054, 0.0
  %s1056 = scalar_lea.vmem %s1, 8
  %v1057 = vld [vmem:[%s1056] sm:$0xf]
  %1059 = vrot.lane.b32.xlu0 %v1055, 9
  %v1060 = vpop.permute.xlu0 %1059
  %v1062 = vmul.f32 %v1060, %v934
  %1063 = vrot.lane.b32.xlu0 %v1055, 8
  %v1064 = vpop.permute.xlu0 %1063
  %v1066 = vmul.f32 %v1064, %v942
  %1067 = vrot.lane.b32.xlu0 %v1055, 7
  %v1068 = vpop.permute.xlu0 %1067
  %v1070 = vmul.f32 %v1068, %v950
  %1071 = vrot.lane.b32.xlu0 %v1055, 1
  %v1072 = vpop.permute.xlu0 %1071
  %v1074 = vmul.f32 %v1072, %v958
  %1075 = vrot.lane.b32.xlu0 %v1055, 127
  %v1076 = vpop.permute.xlu0 %1075
  %v1078 = vmul.f32 %v1076, %v966
  %1079 = vrot.lane.b32.xlu0 %v1055, 121
  %v1080 = vpop.permute.xlu0 %1079
  %v1082 = vmul.f32 %v1080, %v974
  %1083 = vrot.lane.b32.xlu0 %v1055, 120
  %v1084 = vpop.permute.xlu0 %1083
  %v1086 = vmul.f32 %v1084, %v982
  %1087 = vrot.lane.b32.xlu0 %v1055, 119
  %v1088 = vpop.permute.xlu0 %1087
  %v1090 = vmul.f32 %v1088, %v990
  %v1091 = vpack.c.bf16 %v1066, %v1062
  %v1092 = vpack.c.bf16 %v1074, %v1070
  %v1093 = vpack.c.bf16 %v1078, %v1055
  %v1094 = vpack.c.bf16 %v1086, %v1082
  %v1095 = vpack.c.bf16 %v1090, %v1090
  %v1097 = vsel %vm537, %v1057, 0
  %v1100 = vsel %vm541, %v1095, 0
  %1102 = vmatprep.subr.bf16.mxu0 0
  %1103 = vmatpush1.bf16.msra.mxu0 %v1091
  %1104 = vmatprep.subr.bf16.mxu0 0
  %1105 = vmatpush1.bf16.msra.mxu0 %v1092
  %1106 = vmatprep.subr.bf16.mxu0 0
  %1107 = vmatpush1.bf16.msra.mxu0 %v1093
  %1108 = vmatprep.subr.bf16.mxu0 0
  %1109 = vmatpush1.bf16.msra.mxu0 %v1094
  %1110 = vmatprep.subr.bf16.mxu0 0
  %1111 = vmatpush1.bf16.msra.mxu0 %v1100
  %1112 = vmatprep.subr.bf16.mxu0 0
  %1113 = vmatpush1.bf16.msra.mxu0 0
  %1114 = vmatprep.subr.bf16.mxu0 0
  %1115 = vmatpush1.bf16.msra.mxu0 0
  %1116 = vmatprep.subr.bf16.mxu0 0
  %1117 = vmatpush1.bf16.msra.mxu0 0
  %1118 = vmatprep.subr.bf16.mxu0 0
  %1119 = vmatpush1.bf16.msra.mxu0 0
  %1120 = vmatprep.subr.bf16.mxu0 0
  %1121 = vmatpush1.bf16.msra.mxu0 0
  %1122 = vmatprep.subr.bf16.mxu0 0
  %1123 = vmatpush1.bf16.msra.mxu0 0
  %1124 = vmatprep.subr.bf16.mxu0 0
  %1125 = vmatpush1.bf16.msra.mxu0 0
  %1126 = vmatprep.subr.bf16.mxu0 0
  %1127 = vmatpush1.bf16.msra.mxu0 0
  %1128 = vmatprep.subr.bf16.mxu0 0
  %1129 = vmatpush1.bf16.msra.mxu0 0
  %1130 = vmatprep.subr.bf16.mxu0 0
  %1131 = vmatpush1.bf16.msra.mxu0 0
  %1132 = vmatprep.subr.bf16.mxu0 0
  %1133 = vmatpush1.bf16.msra.mxu0 0
  %1134 = vmatprep.mubr.bf16.mxu0 0
  %1135 = vmatmul.mubr.bf16.gmra.mrb[0].mxu0 %v1097
  %v1136 = vpop.f32.mrb[0].mxu0
  %v1137 = vadd.f32 0.0, %v1136
  %v1138 = vpop.f32.mrb[0].mxu0
  %v1139 = vpop.f32.mrb[0].mxu0
  %v1140 = vpop.f32.mrb[0].mxu0
  %1141 = vdwg.mxu0
  %v1142 = vpack.c.bf16 %v1137, %v1137
  %v1159 = vunpack.c.l.b16 %v114
  %v1160 = vunpack.c.l.b16 %v115
  %v1161 = vunpack.c.l.b16 %v116
  %v1162 = vunpack.c.l.b16 %v117
  %v1163 = vunpack.c.l.b16 %v118
  %v1164 = vunpack.c.l.b16 %v119
  %v1165 = vunpack.c.l.b16 %v120
  %v1166 = vunpack.c.l.b16 %v121
  %v1167 = vunpack.c.l.b16 %v122
  %v1168 = vunpack.c.l.b16 %v123
  %v1169 = vunpack.c.l.b16 %v124
  %v1170 = vunpack.c.l.b16 %v125
  %v1171 = vunpack.c.l.b16 %v126
  %v1172 = vunpack.c.l.b16 %v127
  %v1173 = vunpack.c.l.b16 %v128
  %v1174 = vunpack.c.l.b16 %v129
  %v1175 = vpack.c.b16 %v1160, %v1159
  %v1176 = vpack.c.b16 %v1162, %v1161
  %v1177 = vpack.c.b16 %v1164, %v1163
  %v1178 = vpack.c.b16 %v1166, %v1165
  %v1179 = vpack.c.b16 %v1168, %v1167
  %v1180 = vpack.c.b16 %v1170, %v1169
  %v1181 = vpack.c.b16 %v1172, %v1171
  %v1182 = vpack.c.b16 %v1174, %v1173
  %1191 = vmatprep.subr.bf16.mxu0 0
  %1192 = vmatpush1.bf16.msra.mxu0 %v1175
  %1193 = vmatprep.subr.bf16.mxu0 0
  %1194 = vmatpush1.bf16.msra.mxu0 %v1176
  %1195 = vmatprep.subr.bf16.mxu0 0
  %1196 = vmatpush1.bf16.msra.mxu0 %v1177
  %1197 = vmatprep.subr.bf16.mxu0 0
  %1198 = vmatpush1.bf16.msra.mxu0 %v1178
  %1199 = vmatprep.subr.bf16.mxu0 0
  %1200 = vmatpush1.bf16.msra.mxu0 %v1179
  %1201 = vmatprep.subr.bf16.mxu0 0
  %1202 = vmatpush1.bf16.msra.mxu0 %v1180
  %1203 = vmatprep.subr.bf16.mxu0 0
  %1204 = vmatpush1.bf16.msra.mxu0 %v1181
  %1205 = vmatprep.subr.bf16.mxu0 0
  %1206 = vmatpush1.bf16.msra.mxu0 %v1182
  %1207 = vmatprep.subr.bf16.mxu0 0
  %1208 = vmatpush1.bf16.msra.mxu0 0
  %1209 = vmatprep.subr.bf16.mxu0 0
  %1210 = vmatpush1.bf16.msra.mxu0 0
  %1211 = vmatprep.subr.bf16.mxu0 0
  %1212 = vmatpush1.bf16.msra.mxu0 0
  %1213 = vmatprep.subr.bf16.mxu0 0
  %1214 = vmatpush1.bf16.msra.mxu0 0
  %1215 = vmatprep.subr.bf16.mxu0 0
  %1216 = vmatpush1.bf16.msra.mxu0 0
  %1217 = vmatprep.subr.bf16.mxu0 0
  %1218 = vmatpush1.bf16.msra.mxu0 0
  %1219 = vmatprep.subr.bf16.mxu0 0
  %1220 = vmatpush1.bf16.msra.mxu0 0
  %1221 = vmatprep.subr.bf16.mxu0 0
  %1222 = vmatpush1.bf16.msra.mxu0 0
  %1223 = vmatprep.mubr.bf16.mxu0 0
  %1224 = vmatmul.mubr.bf16.gmra.mrb[0].mxu0 %v1142
  %v1225 = vpop.f32.mrb[0].mxu0
  %v1226 = vadd.f32 0.0, %v1225
  %v1227 = vpop.f32.mrb[0].mxu0
  %v1228 = vpop.f32.mrb[0].mxu0
  %v1229 = vpop.f32.mrb[0].mxu0
  %1230 = vdwg.mxu0
  %1232 = vset.pattern.permute.xlu0 0
  %1233 = vperm.xlu0 %1232, %v169
  %v1234 = vpop.permute.xlu0 %1233
  %v1236 = vmul.f32 %v1226, %v1234
  %1238 = vset.pattern.permute.xlu0 0
  %1239 = vperm.xlu0 %1238, %v179
  %v1240 = vpop.permute.xlu0 %1239
  %v1242 = vadd.f32 %v1236, %v1240
  %v1243 = vmax.f32 %v1242, 0.0
  %s1244 = scalar_lea.vmem %s1, 12
  %v1245 = vld [vmem:[%s1244] sm:$0xf]
  %v1246 = vpack.c.bf16 %v1243, %v1243
  %v1247 = vld [vmem:[%s5] sm:$0xf]
  %v1248 = vld [vmem:[%s5 + $0x4] sm:$0xf]
  %v1249 = vld [vmem:[%s5 + $0x8] sm:$0xf]
  %v1250 = vld [vmem:[%s5 + $0xc] sm:$0xf]
  %v1255 = vunpack.c.l.b16 %v1247
  %v1256 = vunpack.c.l.b16 %v1248
  %v1257 = vunpack.c.l.b16 %v1249
  %v1258 = vunpack.c.l.b16 %v1250
  %v1259 = vpack.c.b16 %v1256, %v1255
  %v1260 = vpack.c.b16 %v1258, %v1257
  %vm1263 = vcmask 261120
  %v1265 = vsel %vm1263, %v1246, 0
  %1267 = vmatprep.subr.bf16.mxu0 0
  %1268 = vmatpush1.bf16.msra.mxu0 %v1259
  %1269 = vmatprep.subr.bf16.mxu0 0
  %1270 = vmatpush1.bf16.msra.mxu0 %v1260
  %1271 = vmatprep.subr.bf16.mxu0 0
  %1272 = vmatpush1.bf16.msra.mxu0 0
  %1273 = vmatprep.subr.bf16.mxu0 0
  %1274 = vmatpush1.bf16.msra.mxu0 0
  %1275 = vmatprep.subr.bf16.mxu0 0
  %1276 = vmatpush1.bf16.msra.mxu0 0
  %1277 = vmatprep.subr.bf16.mxu0 0
  %1278 = vmatpush1.bf16.msra.mxu0 0
  %1279 = vmatprep.subr.bf16.mxu0 0
  %1280 = vmatpush1.bf16.msra.mxu0 0
  %1281 = vmatprep.subr.bf16.mxu0 0
  %1282 = vmatpush1.bf16.msra.mxu0 0
  %1283 = vmatprep.subr.bf16.mxu0 0
  %1284 = vmatpush1.bf16.msra.mxu0 0
  %1285 = vmatprep.subr.bf16.mxu0 0
  %1286 = vmatpush1.bf16.msra.mxu0 0
  %1287 = vmatprep.subr.bf16.mxu0 0
  %1288 = vmatpush1.bf16.msra.mxu0 0
  %1289 = vmatprep.subr.bf16.mxu0 0
  %1290 = vmatpush1.bf16.msra.mxu0 0
  %1291 = vmatprep.subr.bf16.mxu0 0
  %1292 = vmatpush1.bf16.msra.mxu0 0
  %1293 = vmatprep.subr.bf16.mxu0 0
  %1294 = vmatpush1.bf16.msra.mxu0 0
  %1295 = vmatprep.subr.bf16.mxu0 0
  %1296 = vmatpush1.bf16.msra.mxu0 0
  %1297 = vmatprep.subr.bf16.mxu0 0
  %1298 = vmatpush1.bf16.msra.mxu0 0
  %1299 = vmatprep.mubr.bf16.mxu0 0
  %1300 = vmatmul.mubr.bf16.gmra.mrb[0].mxu0 %v1265
  %v1301 = vpop.f32.mrb[0].mxu0
  %v1302 = vadd.f32 0.0, %v1301
  %v1303 = vpop.f32.mrb[0].mxu0
  %v1304 = vpop.f32.mrb[0].mxu0
  %v1305 = vpop.f32.mrb[0].mxu0
  %1306 = vdwg.mxu0
  %s1307 = scalar_lea.vmem %s5, 16
  %v1308 = vld [vmem:[%s1307] sm:$0xf]
  %v1309 = vld [vmem:[%s1307 + $0x4] sm:$0xf]
  %v1310 = vld [vmem:[%s1307 + $0x8] sm:$0xf]
  %v1311 = vld [vmem:[%s1307 + $0xc] sm:$0xf]
  %v1316 = vunpack.c.l.b16 %v1308
  %v1317 = vunpack.c.l.b16 %v1309
  %v1318 = vunpack.c.l.b16 %v1310
  %v1319 = vunpack.c.l.b16 %v1311
  %v1320 = vpack.c.b16 %v1317, %v1316
  %v1321 = vpack.c.b16 %v1319, %v1318
  %1324 = vmatprep.subr.bf16.mxu0 0
  %1325 = vmatpush1.bf16.msra.mxu0 %v1320
  %1326 = vmatprep.subr.bf16.mxu0 0
  %1327 = vmatpush1.bf16.msra.mxu0 %v1321
  %1328 = vmatprep.subr.bf16.mxu0 0
  %1329 = vmatpush1.bf16.msra.mxu0 0
  %1330 = vmatprep.subr.bf16.mxu0 0
  %1331 = vmatpush1.bf16.msra.mxu0 0
  %1332 = vmatprep.subr.bf16.mxu0 0
  %1333 = vmatpush1.bf16.msra.mxu0 0
  %1334 = vmatprep.subr.bf16.mxu0 0
  %1335 = vmatpush1.bf16.msra.mxu0 0
  %1336 = vmatprep.subr.bf16.mxu0 0
  %1337 = vmatpush1.bf16.msra.mxu0 0
  %1338 = vmatprep.subr.bf16.mxu0 0
  %1339 = vmatpush1.bf16.msra.mxu0 0
  %1340 = vmatprep.subr.bf16.mxu0 0
  %1341 = vmatpush1.bf16.msra.mxu0 0
  %1342 = vmatprep.subr.bf16.mxu0 0
  %1343 = vmatpush1.bf16.msra.mxu0 0
  %1344 = vmatprep.subr.bf16.mxu0 0
  %1345 = vmatpush1.bf16.msra.mxu0 0
  %1346 = vmatprep.subr.bf16.mxu0 0
  %1347 = vmatpush1.bf16.msra.mxu0 0
  %1348 = vmatprep.subr.bf16.mxu0 0
  %1349 = vmatpush1.bf16.msra.mxu0 0
  %1350 = vmatprep.subr.bf16.mxu0 0
  %1351 = vmatpush1.bf16.msra.mxu0 0
  %1352 = vmatprep.subr.bf16.mxu0 0
  %1353 = vmatpush1.bf16.msra.mxu0 0
  %1354 = vmatprep.subr.bf16.mxu0 0
  %1355 = vmatpush1.bf16.msra.mxu0 0
  %1356 = vmatprep.mubr.bf16.mxu0 0
  %1357 = vmatmul.mubr.bf16.gmra.mrb[0].mxu0 %v1265
  %v1358 = vpop.f32.mrb[0].mxu0
  %v1359 = vadd.f32 0.0, %v1358
  %v1360 = vpop.f32.mrb[0].mxu0
  %v1361 = vpop.f32.mrb[0].mxu0
  %v1362 = vpop.f32.mrb[0].mxu0
  %1363 = vdwg.mxu0
  %s1364 = scalar_lea.vmem %s5, 32
  %v1365 = vld [vmem:[%s1364] sm:$0xf]
  %v1366 = vld [vmem:[%s1364 + $0x4] sm:$0xf]
  %v1367 = vld [vmem:[%s1364 + $0x8] sm:$0xf]
  %v1368 = vld [vmem:[%s1364 + $0xc] sm:$0xf]
  %v1373 = vunpack.c.l.b16 %v1365
  %v1374 = vunpack.c.l.b16 %v1366
  %v1375 = vunpack.c.l.b16 %v1367
  %v1376 = vunpack.c.l.b16 %v1368
  %v1377 = vpack.c.b16 %v1374, %v1373
  %v1378 = vpack.c.b16 %v1376, %v1375
  %1381 = vmatprep.subr.bf16.mxu0 0
  %1382 = vmatpush1.bf16.msra.mxu0 %v1377
  %1383 = vmatprep.subr.bf16.mxu0 0
  %1384 = vmatpush1.bf16.msra.mxu0 %v1378
  %1385 = vmatprep.subr.bf16.mxu0 0
  %1386 = vmatpush1.bf16.msra.mxu0 0
  %1387 = vmatprep.subr.bf16.mxu0 0
  %1388 = vmatpush1.bf16.msra.mxu0 0
  %1389 = vmatprep.subr.bf16.mxu0 0
  %1390 = vmatpush1.bf16.msra.mxu0 0
  %1391 = vmatprep.subr.bf16.mxu0 0
  %1392 = vmatpush1.bf16.msra.mxu0 0
  %1393 = vmatprep.subr.bf16.mxu0 0
  %1394 = vmatpush1.bf16.msra.mxu0 0
  %1395 = vmatprep.subr.bf16.mxu0 0
  %1396 = vmatpush1.bf16.msra.mxu0 0
  %1397 = vmatprep.subr.bf16.mxu0 0
  %1398 = vmatpush1.bf16.msra.mxu0 0
  %1399 = vmatprep.subr.bf16.mxu0 0
  %1400 = vmatpush1.bf16.msra.mxu0 0
  %1401 = vmatprep.subr.bf16.mxu0 0
  %1402 = vmatpush1.bf16.msra.mxu0 0
  %1403 = vmatprep.subr.bf16.mxu0 0
  %1404 = vmatpush1.bf16.msra.mxu0 0
  %1405 = vmatprep.subr.bf16.mxu0 0
  %1406 = vmatpush1.bf16.msra.mxu0 0
  %1407 = vmatprep.subr.bf16.mxu0 0
  %1408 = vmatpush1.bf16.msra.mxu0 0
  %1409 = vmatprep.subr.bf16.mxu0 0
  %1410 = vmatpush1.bf16.msra.mxu0 0
  %1411 = vmatprep.subr.bf16.mxu0 0
  %1412 = vmatpush1.bf16.msra.mxu0 0
  %1413 = vmatprep.mubr.bf16.mxu0 0
  %1414 = vmatmul.mubr.bf16.gmra.mrb[0].mxu0 %v1265
  %v1415 = vpop.f32.mrb[0].mxu0
  %v1416 = vadd.f32 0.0, %v1415
  %v1417 = vpop.f32.mrb[0].mxu0
  %v1418 = vpop.f32.mrb[0].mxu0
  %v1419 = vpop.f32.mrb[0].mxu0
  %1420 = vdwg.mxu0
  %s1421 = scalar_lea.vmem %s5, 48
  %v1422 = vld [vmem:[%s1421] sm:$0xf]
  %v1423 = vld [vmem:[%s1421 + $0x4] sm:$0xf]
  %v1424 = vld [vmem:[%s1421 + $0x8] sm:$0xf]
  %v1425 = vld [vmem:[%s1421 + $0xc] sm:$0xf]
  %v1430 = vunpack.c.l.b16 %v1422
  %v1431 = vunpack.c.l.b16 %v1423
  %v1432 = vunpack.c.l.b16 %v1424
  %v1433 = vunpack.c.l.b16 %v1425
  %v1434 = vpack.c.b16 %v1431, %v1430
  %v1435 = vpack.c.b16 %v1433, %v1432
  %1438 = vmatprep.subr.bf16.mxu0 0
  %1439 = vmatpush1.bf16.msra.mxu0 %v1434
  %1440 = vmatprep.subr.bf16.mxu0 0
  %1441 = vmatpush1.bf16.msra.mxu0 %v1435
  %1442 = vmatprep.subr.bf16.mxu0 0
  %1443 = vmatpush1.bf16.msra.mxu0 0
  %1444 = vmatprep.subr.bf16.mxu0 0
  %1445 = vmatpush1.bf16.msra.mxu0 0
  %1446 = vmatprep.subr.bf16.mxu0 0
  %1447 = vmatpush1.bf16.msra.mxu0 0
  %1448 = vmatprep.subr.bf16.mxu0 0
  %1449 = vmatpush1.bf16.msra.mxu0 0
  %1450 = vmatprep.subr.bf16.mxu0 0
  %1451 = vmatpush1.bf16.msra.mxu0 0
  %1452 = vmatprep.subr.bf16.mxu0 0
  %1453 = vmatpush1.bf16.msra.mxu0 0
  %1454 = vmatprep.subr.bf16.mxu0 0
  %1455 = vmatpush1.bf16.msra.mxu0 0
  %1456 = vmatprep.subr.bf16.mxu0 0
  %1457 = vmatpush1.bf16.msra.mxu0 0
  %1458 = vmatprep.subr.bf16.mxu0 0
  %1459 = vmatpush1.bf16.msra.mxu0 0
  %1460 = vmatprep.subr.bf16.mxu0 0
  %1461 = vmatpush1.bf16.msra.mxu0 0
  %1462 = vmatprep.subr.bf16.mxu0 0
  %1463 = vmatpush1.bf16.msra.mxu0 0
  %1464 = vmatprep.subr.bf16.mxu0 0
  %1465 = vmatpush1.bf16.msra.mxu0 0
  %1466 = vmatprep.subr.bf16.mxu0 0
  %1467 = vmatpush1.bf16.msra.mxu0 0
  %1468 = vmatprep.subr.bf16.mxu0 0
  %1469 = vmatpush1.bf16.msra.mxu0 0
  %1470 = vmatprep.mubr.bf16.mxu0 0
  %1471 = vmatmul.mubr.bf16.gmra.mrb[0].mxu0 %v1265
  %v1472 = vpop.f32.mrb[0].mxu0
  %v1473 = vadd.f32 0.0, %v1472
  %v1474 = vpop.f32.mrb[0].mxu0
  %v1475 = vpop.f32.mrb[0].mxu0
  %v1476 = vpop.f32.mrb[0].mxu0
  %1477 = vdwg.mxu0
  %s1478 = scalar_lea.vmem %s5, 64
  %v1479 = vld [vmem:[%s1478] sm:$0xf]
  %v1480 = vld [vmem:[%s1478 + $0x4] sm:$0xf]
  %v1481 = vld [vmem:[%s1478 + $0x8] sm:$0xf]
  %v1482 = vld [vmem:[%s1478 + $0xc] sm:$0xf]
  %v1487 = vunpack.c.l.b16 %v1479
  %v1488 = vunpack.c.l.b16 %v1480
  %v1489 = vunpack.c.l.b16 %v1481
  %v1490 = vunpack.c.l.b16 %v1482
  %v1491 = vpack.c.b16 %v1488, %v1487
  %v1492 = vpack.c.b16 %v1490, %v1489
  %1495 = vmatprep.subr.bf16.mxu0 0
  %1496 = vmatpush1.bf16.msra.mxu0 %v1491
  %1497 = vmatprep.subr.bf16.mxu0 0
  %1498 = vmatpush1.bf16.msra.mxu0 %v1492
  %1499 = vmatprep.subr.bf16.mxu0 0
  %1500 = vmatpush1.bf16.msra.mxu0 0
  %1501 = vmatprep.subr.bf16.mxu0 0
  %1502 = vmatpush1.bf16.msra.mxu0 0
  %1503 = vmatprep.subr.bf16.mxu0 0
  %1504 = vmatpush1.bf16.msra.mxu0 0
  %1505 = vmatprep.subr.bf16.mxu0 0
  %1506 = vmatpush1.bf16.msra.mxu0 0
  %1507 = vmatprep.subr.bf16.mxu0 0
  %1508 = vmatpush1.bf16.msra.mxu0 0
  %1509 = vmatprep.subr.bf16.mxu0 0
  %1510 = vmatpush1.bf16.msra.mxu0 0
  %1511 = vmatprep.subr.bf16.mxu0 0
  %1512 = vmatpush1.bf16.msra.mxu0 0
  %1513 = vmatprep.subr.bf16.mxu0 0
  %1514 = vmatpush1.bf16.msra.mxu0 0
  %1515 = vmatprep.subr.bf16.mxu0 0
  %1516 = vmatpush1.bf16.msra.mxu0 0
  %1517 = vmatprep.subr.bf16.mxu0 0
  %1518 = vmatpush1.bf16.msra.mxu0 0
  %1519 = vmatprep.subr.bf16.mxu0 0
  %1520 = vmatpush1.bf16.msra.mxu0 0
  %1521 = vmatprep.subr.bf16.mxu0 0
  %1522 = vmatpush1.bf16.msra.mxu0 0
  %1523 = vmatprep.subr.bf16.mxu0 0
  %1524 = vmatpush1.bf16.msra.mxu0 0
  %1525 = vmatprep.subr.bf16.mxu0 0
  %1526 = vmatpush1.bf16.msra.mxu0 0
  %1527 = vmatprep.mubr.bf16.mxu0 0
  %1528 = vmatmul.mubr.bf16.gmra.mrb[0].mxu0 %v1265
  %v1529 = vpop.f32.mrb[0].mxu0
  %v1530 = vadd.f32 0.0, %v1529
  %v1531 = vpop.f32.mrb[0].mxu0
  %v1532 = vpop.f32.mrb[0].mxu0
  %v1533 = vpop.f32.mrb[0].mxu0
  %1534 = vdwg.mxu0
  %s1535 = scalar_lea.vmem %s5, 80
  %v1536 = vld [vmem:[%s1535] sm:$0xf]
  %v1537 = vld [vmem:[%s1535 + $0x4] sm:$0xf]
  %v1538 = vld [vmem:[%s1535 + $0x8] sm:$0xf]
  %v1539 = vld [vmem:[%s1535 + $0xc] sm:$0xf]
  %v1544 = vunpack.c.l.b16 %v1536
  %v1545 = vunpack.c.l.b16 %v1537
  %v1546 = vunpack.c.l.b16 %v1538
  %v1547 = vunpack.c.l.b16 %v1539
  %v1548 = vpack.c.b16 %v1545, %v1544
  %v1549 = vpack.c.b16 %v1547, %v1546
  %1552 = vmatprep.subr.bf16.mxu0 0
  %1553 = vmatpush1.bf16.msra.mxu0 %v1548
  %1554 = vmatprep.subr.bf16.mxu0 0
  %1555 = vmatpush1.bf16.msra.mxu0 %v1549
  %1556 = vmatprep.subr.bf16.mxu0 0
  %1557 = vmatpush1.bf16.msra.mxu0 0
  %1558 = vmatprep.subr.bf16.mxu0 0
  %1559 = vmatpush1.bf16.msra.mxu0 0
  %1560 = vmatprep.subr.bf16.mxu0 0
  %1561 = vmatpush1.bf16.msra.mxu0 0
  %1562 = vmatprep.subr.bf16.mxu0 0
  %1563 = vmatpush1.bf16.msra.mxu0 0
  %1564 = vmatprep.subr.bf16.mxu0 0
  %1565 = vmatpush1.bf16.msra.mxu0 0
  %1566 = vmatprep.subr.bf16.mxu0 0
  %1567 = vmatpush1.bf16.msra.mxu0 0
  %1568 = vmatprep.subr.bf16.mxu0 0
  %1569 = vmatpush1.bf16.msra.mxu0 0
  %1570 = vmatprep.subr.bf16.mxu0 0
  %1571 = vmatpush1.bf16.msra.mxu0 0
  %1572 = vmatprep.subr.bf16.mxu0 0
  %1573 = vmatpush1.bf16.msra.mxu0 0
  %1574 = vmatprep.subr.bf16.mxu0 0
  %1575 = vmatpush1.bf16.msra.mxu0 0
  %1576 = vmatprep.subr.bf16.mxu0 0
  %1577 = vmatpush1.bf16.msra.mxu0 0
  %1578 = vmatprep.subr.bf16.mxu0 0
  %1579 = vmatpush1.bf16.msra.mxu0 0
  %1580 = vmatprep.subr.bf16.mxu0 0
  %1581 = vmatpush1.bf16.msra.mxu0 0
  %1582 = vmatprep.subr.bf16.mxu0 0
  %1583 = vmatpush1.bf16.msra.mxu0 0
  %1584 = vmatprep.mubr.bf16.mxu0 0
  %1585 = vmatmul.mubr.bf16.gmra.mrb[0].mxu0 %v1265
  %v1586 = vpop.f32.mrb[0].mxu0
  %v1587 = vadd.f32 0.0, %v1586
  %v1588 = vpop.f32.mrb[0].mxu0
  %v1589 = vpop.f32.mrb[0].mxu0
  %v1590 = vpop.f32.mrb[0].mxu0
  %1591 = vdwg.mxu0
  %s1592 = scalar_lea.vmem %s5, 96
  %v1593 = vld [vmem:[%s1592] sm:$0xf]
  %v1594 = vld [vmem:[%s1592 + $0x4] sm:$0xf]
  %v1595 = vld [vmem:[%s1592 + $0x8] sm:$0xf]
  %v1596 = vld [vmem:[%s1592 + $0xc] sm:$0xf]
  %v1601 = vunpack.c.l.b16 %v1593
  %v1602 = vunpack.c.l.b16 %v1594
  %v1603 = vunpack.c.l.b16 %v1595
  %v1604 = vunpack.c.l.b16 %v1596
  %v1605 = vpack.c.b16 %v1602, %v1601
  %v1606 = vpack.c.b16 %v1604, %v1603
  %1609 = vmatprep.subr.bf16.mxu0 0
  %1610 = vmatpush1.bf16.msra.mxu0 %v1605
  %1611 = vmatprep.subr.bf16.mxu0 0
  %1612 = vmatpush1.bf16.msra.mxu0 %v1606
  %1613 = vmatprep.subr.bf16.mxu0 0
  %1614 = vmatpush1.bf16.msra.mxu0 0
  %1615 = vmatprep.subr.bf16.mxu0 0
  %1616 = vmatpush1.bf16.msra.mxu0 0
  %1617 = vmatprep.subr.bf16.mxu0 0
  %1618 = vmatpush1.bf16.msra.mxu0 0
  %1619 = vmatprep.subr.bf16.mxu0 0
  %1620 = vmatpush1.bf16.msra.mxu0 0
  %1621 = vmatprep.subr.bf16.mxu0 0
  %1622 = vmatpush1.bf16.msra.mxu0 0
  %1623 = vmatprep.subr.bf16.mxu0 0
  %1624 = vmatpush1.bf16.msra.mxu0 0
  %1625 = vmatprep.subr.bf16.mxu0 0
  %1626 = vmatpush1.bf16.msra.mxu0 0
  %1627 = vmatprep.subr.bf16.mxu0 0
  %1628 = vmatpush1.bf16.msra.mxu0 0
  %1629 = vmatprep.subr.bf16.mxu0 0
  %1630 = vmatpush1.bf16.msra.mxu0 0
  %1631 = vmatprep.subr.bf16.mxu0 0
  %1632 = vmatpush1.bf16.msra.mxu0 0
  %1633 = vmatprep.subr.bf16.mxu0 0
  %1634 = vmatpush1.bf16.msra.mxu0 0
  %1635 = vmatprep.subr.bf16.mxu0 0
  %1636 = vmatpush1.bf16.msra.mxu0 0
  %1637 = vmatprep.subr.bf16.mxu0 0
  %1638 = vmatpush1.bf16.msra.mxu0 0
  %1639 = vmatprep.subr.bf16.mxu0 0
  %1640 = vmatpush1.bf16.msra.mxu0 0
  %1641 = vmatprep.mubr.bf16.mxu0 0
  %1642 = vmatmul.mubr.bf16.gmra.mrb[0].mxu0 %v1265
  %v1643 = vpop.f32.mrb[0].mxu0
  %v1644 = vadd.f32 0.0, %v1643
  %v1645 = vpop.f32.mrb[0].mxu0
  %v1646 = vpop.f32.mrb[0].mxu0
  %v1647 = vpop.f32.mrb[0].mxu0
  %1648 = vdwg.mxu0
  %s1649 = scalar_lea.vmem %s5, 112
  %v1650 = vld [vmem:[%s1649] sm:$0xf]
  %v1651 = vld [vmem:[%s1649 + $0x4] sm:$0xf]
  %v1652 = vld [vmem:[%s1649 + $0x8] sm:$0xf]
  %v1653 = vld [vmem:[%s1649 + $0xc] sm:$0xf]
  %v1658 = vunpack.c.l.b16 %v1650
  %v1659 = vunpack.c.l.b16 %v1651
  %v1660 = vunpack.c.l.b16 %v1652
  %v1661 = vunpack.c.l.b16 %v1653
  %v1662 = vpack.c.b16 %v1659, %v1658
  %v1663 = vpack.c.b16 %v1661, %v1660
  %1666 = vmatprep.subr.bf16.mxu0 0
  %1667 = vmatpush1.bf16.msra.mxu0 %v1662
  %1668 = vmatprep.subr.bf16.mxu0 0
  %1669 = vmatpush1.bf16.msra.mxu0 %v1663
  %1670 = vmatprep.subr.bf16.mxu0 0
  %1671 = vmatpush1.bf16.msra.mxu0 0
  %1672 = vmatprep.subr.bf16.mxu0 0
  %1673 = vmatpush1.bf16.msra.mxu0 0
  %1674 = vmatprep.subr.bf16.mxu0 0
  %1675 = vmatpush1.bf16.msra.mxu0 0
  %1676 = vmatprep.subr.bf16.mxu0 0
  %1677 = vmatpush1.bf16.msra.mxu0 0
  %1678 = vmatprep.subr.bf16.mxu0 0
  %1679 = vmatpush1.bf16.msra.mxu0 0
  %1680 = vmatprep.subr.bf16.mxu0 0
  %1681 = vmatpush1.bf16.msra.mxu0 0
  %1682 = vmatprep.subr.bf16.mxu0 0
  %1683 = vmatpush1.bf16.msra.mxu0 0
  %1684 = vmatprep.subr.bf16.mxu0 0
  %1685 = vmatpush1.bf16.msra.mxu0 0
  %1686 = vmatprep.subr.bf16.mxu0 0
  %1687 = vmatpush1.bf16.msra.mxu0 0
  %1688 = vmatprep.subr.bf16.mxu0 0
  %1689 = vmatpush1.bf16.msra.mxu0 0
  %1690 = vmatprep.subr.bf16.mxu0 0
  %1691 = vmatpush1.bf16.msra.mxu0 0
  %1692 = vmatprep.subr.bf16.mxu0 0
  %1693 = vmatpush1.bf16.msra.mxu0 0
  %1694 = vmatprep.subr.bf16.mxu0 0
  %1695 = vmatpush1.bf16.msra.mxu0 0
  %1696 = vmatprep.subr.bf16.mxu0 0
  %1697 = vmatpush1.bf16.msra.mxu0 0
  %1698 = vmatprep.mubr.bf16.mxu0 0
  %1699 = vmatmul.mubr.bf16.gmra.mrb[0].mxu0 %v1265
  %v1700 = vpop.f32.mrb[0].mxu0
  %v1701 = vadd.f32 0.0, %v1700
  %v1702 = vpop.f32.mrb[0].mxu0
  %v1703 = vpop.f32.mrb[0].mxu0
  %v1704 = vpop.f32.mrb[0].mxu0
  %1705 = vdwg.mxu0
  %v1706 = vpack.c.bf16 %v1359, %v1302
  %v1707 = vpack.c.bf16 %v1473, %v1416
  %v1708 = vpack.c.bf16 %v1530, %v1243
  %v1709 = vpack.c.bf16 %v1644, %v1587
  %v1710 = vpack.c.bf16 %v1701, %v1701
  %v1712 = vsel %vm537, %v1245, 0
  %v1715 = vsel %vm541, %v1710, 0
  %1717 = vmatprep.subr.bf16.mxu0 0
  %1718 = vmatpush1.bf16.msra.mxu0 %v1706
  %1719 = vmatprep.subr.bf16.mxu0 0
  %1720 = vmatpush1.bf16.msra.mxu0 %v1707
  %1721 = vmatprep.subr.bf16.mxu0 0
  %1722 = vmatpush1.bf16.msra.mxu0 %v1708
  %1723 = vmatprep.subr.bf16.mxu0 0
  %1724 = vmatpush1.bf16.msra.mxu0 %v1709
  %1725 = vmatprep.subr.bf16.mxu0 0
  %1726 = vmatpush1.bf16.msra.mxu0 %v1715
  %1727 = vmatprep.subr.bf16.mxu0 0
  %1728 = vmatpush1.bf16.msra.mxu0 0
  %1729 = vmatprep.subr.bf16.mxu0 0
  %1730 = vmatpush1.bf16.msra.mxu0 0
  %1731 = vmatprep.subr.bf16.mxu0 0
  %1732 = vmatpush1.bf16.msra.mxu0 0
  %1733 = vmatprep.subr.bf16.mxu0 0
  %1734 = vmatpush1.bf16.msra.mxu0 0
  %1735 = vmatprep.subr.bf16.mxu0 0
  %1736 = vmatpush1.bf16.msra.mxu0 0
  %1737 = vmatprep.subr.bf16.mxu0 0
  %1738 = vmatpush1.bf16.msra.mxu0 0
  %1739 = vmatprep.subr.bf16.mxu0 0
  %1740 = vmatpush1.bf16.msra.mxu0 0
  %1741 = vmatprep.subr.bf16.mxu0 0
  %1742 = vmatpush1.bf16.msra.mxu0 0
  %1743 = vmatprep.subr.bf16.mxu0 0
  %1744 = vmatpush1.bf16.msra.mxu0 0
  %1745 = vmatprep.subr.bf16.mxu0 0
  %1746 = vmatpush1.bf16.msra.mxu0 0
  %1747 = vmatprep.subr.bf16.mxu0 0
  %1748 = vmatpush1.bf16.msra.mxu0 0
  %1749 = vmatprep.mubr.bf16.mxu0 0
  %1750 = vmatmul.mubr.bf16.gmra.mrb[0].mxu0 %v1712
  %v1751 = vpop.f32.mrb[0].mxu0
  %v1752 = vadd.f32 0.0, %v1751
  %v1753 = vpop.f32.mrb[0].mxu0
  %v1754 = vpop.f32.mrb[0].mxu0
  %v1755 = vpop.f32.mrb[0].mxu0
  %1756 = vdwg.mxu0
  %1758 = vset.pattern.permute.xlu0 0
  %1759 = vperm.xlu0 %1758, %v170
  %v1760 = vpop.permute.xlu0 %1759
  %v1762 = vmul.f32 %v1752, %v1760
  %1764 = vset.pattern.permute.xlu0 0
  %1765 = vperm.xlu0 %1764, %v180
  %v1766 = vpop.permute.xlu0 %1765
  %v1768 = vadd.f32 %v1762, %v1766
  %v1769 = vmax.f32 %v1768, 0.0
  %v1770 = vpack.c.bf16 %v1769, %v1769
  %v1775 = vunpack.c.l.b16 %v130
  %v1776 = vunpack.c.l.b16 %v131
  %v1777 = vunpack.c.l.b16 %v132
  %v1778 = vunpack.c.l.b16 %v133
  %v1779 = vpack.c.b16 %v1776, %v1775
  %v1780 = vpack.c.b16 %v1778, %v1777
  %v1784 = vsel %vm1263, %v1770, 0
  %1786 = vmatprep.subr.bf16.mxu0 0
  %1787 = vmatpush1.bf16.msra.mxu0 %v1779
  %1788 = vmatprep.subr.bf16.mxu0 0
  %1789 = vmatpush1.bf16.msra.mxu0 %v1780
  %1790 = vmatprep.subr.bf16.mxu0 0
  %1791 = vmatpush1.bf16.msra.mxu0 0
  %1792 = vmatprep.subr.bf16.mxu0 0
  %1793 = vmatpush1.bf16.msra.mxu0 0
  %1794 = vmatprep.subr.bf16.mxu0 0
  %1795 = vmatpush1.bf16.msra.mxu0 0
  %1796 = vmatprep.subr.bf16.mxu0 0
  %1797 = vmatpush1.bf16.msra.mxu0 0
  %1798 = vmatprep.subr.bf16.mxu0 0
  %1799 = vmatpush1.bf16.msra.mxu0 0
  %1800 = vmatprep.subr.bf16.mxu0 0
  %1801 = vmatpush1.bf16.msra.mxu0 0
  %1802 = vmatprep.subr.bf16.mxu0 0
  %1803 = vmatpush1.bf16.msra.mxu0 0
  %1804 = vmatprep.subr.bf16.mxu0 0
  %1805 = vmatpush1.bf16.msra.mxu0 0
  %1806 = vmatprep.subr.bf16.mxu0 0
  %1807 = vmatpush1.bf16.msra.mxu0 0
  %1808 = vmatprep.subr.bf16.mxu0 0
  %1809 = vmatpush1.bf16.msra.mxu0 0
  %1810 = vmatprep.subr.bf16.mxu0 0
  %1811 = vmatpush1.bf16.msra.mxu0 0
  %1812 = vmatprep.subr.bf16.mxu0 0
  %1813 = vmatpush1.bf16.msra.mxu0 0
  %1814 = vmatprep.subr.bf16.mxu0 0
  %1815 = vmatpush1.bf16.msra.mxu0 0
  %1816 = vmatprep.subr.bf16.mxu0 0
  %1817 = vmatpush1.bf16.msra.mxu0 0
  %1818 = vmatprep.mubr.bf16.mxu0 0
  %1819 = vmatmul.mubr.bf16.gmra.mrb[0].mxu0 %v1784
  %v1820 = vpop.f32.mrb[0].mxu0
  %v1821 = vadd.f32 0.0, %v1820
  %v1822 = vpop.f32.mrb[0].mxu0
  %v1823 = vpop.f32.mrb[0].mxu0
  %v1824 = vpop.f32.mrb[0].mxu0
  %1825 = vdwg.mxu0
  %s1826 = scalar_lea.vmem %s1, 16
  %v1827 = vld [vmem:[%s1826] sm:$0xf]
  %1829 = vrot.lane.b32.xlu0 %v1821, 9
  %v1830 = vpop.permute.xlu0 %1829
  %v1832 = vmul.f32 %v1830, %v934
  %1833 = vrot.lane.b32.xlu0 %v1821, 8
  %v1834 = vpop.permute.xlu0 %1833
  %v1836 = vmul.f32 %v1834, %v942
  %1837 = vrot.lane.b32.xlu0 %v1821, 7
  %v1838 = vpop.permute.xlu0 %1837
  %v1840 = vmul.f32 %v1838, %v950
  %1841 = vrot.lane.b32.xlu0 %v1821, 1
  %v1842 = vpop.permute.xlu0 %1841
  %v1844 = vmul.f32 %v1842, %v958
  %1845 = vrot.lane.b32.xlu0 %v1821, 127
  %v1846 = vpop.permute.xlu0 %1845
  %v1848 = vmul.f32 %v1846, %v966
  %1849 = vrot.lane.b32.xlu0 %v1821, 121
  %v1850 = vpop.permute.xlu0 %1849
  %v1852 = vmul.f32 %v1850, %v974
  %1853 = vrot.lane.b32.xlu0 %v1821, 120
  %v1854 = vpop.permute.xlu0 %1853
  %v1856 = vmul.f32 %v1854, %v982
  %1857 = vrot.lane.b32.xlu0 %v1821, 119
  %v1858 = vpop.permute.xlu0 %1857
  %v1860 = vmul.f32 %v1858, %v990
  %v1861 = vpack.c.bf16 %v1836, %v1832
  %v1862 = vpack.c.bf16 %v1844, %v1840
  %v1863 = vpack.c.bf16 %v1848, %v1821
  %v1864 = vpack.c.bf16 %v1856, %v1852
  %v1865 = vpack.c.bf16 %v1860, %v1860
  %v1867 = vsel %vm537, %v1827, 0
  %v1870 = vsel %vm541, %v1865, 0
  %1872 = vmatprep.subr.bf16.mxu0 0
  %1873 = vmatpush1.bf16.msra.mxu0 %v1861
  %1874 = vmatprep.subr.bf16.mxu0 0
  %1875 = vmatpush1.bf16.msra.mxu0 %v1862
  %1876 = vmatprep.subr.bf16.mxu0 0
  %1877 = vmatpush1.bf16.msra.mxu0 %v1863
  %1878 = vmatprep.subr.bf16.mxu0 0
  %1879 = vmatpush1.bf16.msra.mxu0 %v1864
  %1880 = vmatprep.subr.bf16.mxu0 0
  %1881 = vmatpush1.bf16.msra.mxu0 %v1870
  %1882 = vmatprep.subr.bf16.mxu0 0
  %1883 = vmatpush1.bf16.msra.mxu0 0
  %1884 = vmatprep.subr.bf16.mxu0 0
  %1885 = vmatpush1.bf16.msra.mxu0 0
  %1886 = vmatprep.subr.bf16.mxu0 0
  %1887 = vmatpush1.bf16.msra.mxu0 0
  %1888 = vmatprep.subr.bf16.mxu0 0
  %1889 = vmatpush1.bf16.msra.mxu0 0
  %1890 = vmatprep.subr.bf16.mxu0 0
  %1891 = vmatpush1.bf16.msra.mxu0 0
  %1892 = vmatprep.subr.bf16.mxu0 0
  %1893 = vmatpush1.bf16.msra.mxu0 0
  %1894 = vmatprep.subr.bf16.mxu0 0
  %1895 = vmatpush1.bf16.msra.mxu0 0
  %1896 = vmatprep.subr.bf16.mxu0 0
  %1897 = vmatpush1.bf16.msra.mxu0 0
  %1898 = vmatprep.subr.bf16.mxu0 0
  %1899 = vmatpush1.bf16.msra.mxu0 0
  %1900 = vmatprep.subr.bf16.mxu0 0
  %1901 = vmatpush1.bf16.msra.mxu0 0
  %1902 = vmatprep.subr.bf16.mxu0 0
  %1903 = vmatpush1.bf16.msra.mxu0 0
  %1904 = vmatprep.mubr.bf16.mxu0 0
  %1905 = vmatmul.mubr.bf16.gmra.mrb[0].mxu0 %v1867
  %v1906 = vpop.f32.mrb[0].mxu0
  %v1907 = vadd.f32 0.0, %v1906
  %v1908 = vpop.f32.mrb[0].mxu0
  %v1909 = vpop.f32.mrb[0].mxu0
  %v1910 = vpop.f32.mrb[0].mxu0
  %1911 = vdwg.mxu0
  %1913 = vset.pattern.permute.xlu0 0
  %1914 = vperm.xlu0 %1913, %v171
  %v1915 = vpop.permute.xlu0 %1914
  %v1917 = vmul.f32 %v1907, %v1915
  %1919 = vset.pattern.permute.xlu0 0
  %1920 = vperm.xlu0 %1919, %v181
  %v1921 = vpop.permute.xlu0 %1920
  %v1923 = vadd.f32 %v1917, %v1921
  %v1924 = vmax.f32 %v1923, 0.0
  %s1925 = scalar_lea.vmem %s1, 20
  %v1926 = vld [vmem:[%s1925] sm:$0xf]
  %1928 = vrot.lane.b32.xlu0 %v1924, 9
  %v1929 = vpop.permute.xlu0 %1928
  %v1931 = vmul.f32 %v1929, %v934
  %1932 = vrot.lane.b32.xlu0 %v1924, 8
  %v1933 = vpop.permute.xlu0 %1932
  %v1935 = vmul.f32 %v1933, %v942
  %1936 = vrot.lane.b32.xlu0 %v1924, 7
  %v1937 = vpop.permute.xlu0 %1936
  %v1939 = vmul.f32 %v1937, %v950
  %1940 = vrot.lane.b32.xlu0 %v1924, 1
  %v1941 = vpop.permute.xlu0 %1940
  %v1943 = vmul.f32 %v1941, %v958
  %1944 = vrot.lane.b32.xlu0 %v1924, 127
  %v1945 = vpop.permute.xlu0 %1944
  %v1947 = vmul.f32 %v1945, %v966
  %1948 = vrot.lane.b32.xlu0 %v1924, 121
  %v1949 = vpop.permute.xlu0 %1948
  %v1951 = vmul.f32 %v1949, %v974
  %1952 = vrot.lane.b32.xlu0 %v1924, 120
  %v1953 = vpop.permute.xlu0 %1952
  %v1955 = vmul.f32 %v1953, %v982
  %1956 = vrot.lane.b32.xlu0 %v1924, 119
  %v1957 = vpop.permute.xlu0 %1956
  %v1959 = vmul.f32 %v1957, %v990
  %v1960 = vpack.c.bf16 %v1935, %v1931
  %v1961 = vpack.c.bf16 %v1943, %v1939
  %v1962 = vpack.c.bf16 %v1947, %v1924
  %v1963 = vpack.c.bf16 %v1955, %v1951
  %v1964 = vpack.c.bf16 %v1959, %v1959
  %v1966 = vsel %vm537, %v1926, 0
  %v1969 = vsel %vm541, %v1964, 0
  %1971 = vmatprep.subr.bf16.mxu0 0
  %1972 = vmatpush1.bf16.msra.mxu0 %v1960
  %1973 = vmatprep.subr.bf16.mxu0 0
  %1974 = vmatpush1.bf16.msra.mxu0 %v1961
  %1975 = vmatprep.subr.bf16.mxu0 0
  %1976 = vmatpush1.bf16.msra.mxu0 %v1962
  %1977 = vmatprep.subr.bf16.mxu0 0
  %1978 = vmatpush1.bf16.msra.mxu0 %v1963
  %1979 = vmatprep.subr.bf16.mxu0 0
  %1980 = vmatpush1.bf16.msra.mxu0 %v1969
  %1981 = vmatprep.subr.bf16.mxu0 0
  %1982 = vmatpush1.bf16.msra.mxu0 0
  %1983 = vmatprep.subr.bf16.mxu0 0
  %1984 = vmatpush1.bf16.msra.mxu0 0
  %1985 = vmatprep.subr.bf16.mxu0 0
  %1986 = vmatpush1.bf16.msra.mxu0 0
  %1987 = vmatprep.subr.bf16.mxu0 0
  %1988 = vmatpush1.bf16.msra.mxu0 0
  %1989 = vmatprep.subr.bf16.mxu0 0
  %1990 = vmatpush1.bf16.msra.mxu0 0
  %1991 = vmatprep.subr.bf16.mxu0 0
  %1992 = vmatpush1.bf16.msra.mxu0 0
  %1993 = vmatprep.subr.bf16.mxu0 0
  %1994 = vmatpush1.bf16.msra.mxu0 0
  %1995 = vmatprep.subr.bf16.mxu0 0
  %1996 = vmatpush1.bf16.msra.mxu0 0
  %1997 = vmatprep.subr.bf16.mxu0 0
  %1998 = vmatpush1.bf16.msra.mxu0 0
  %1999 = vmatprep.subr.bf16.mxu0 0
  %2000 = vmatpush1.bf16.msra.mxu0 0
  %2001 = vmatprep.subr.bf16.mxu0 0
  %2002 = vmatpush1.bf16.msra.mxu0 0
  %2003 = vmatprep.mubr.bf16.mxu0 0
  %2004 = vmatmul.mubr.bf16.gmra.mrb[0].mxu0 %v1966
  %v2005 = vpop.f32.mrb[0].mxu0
  %v2006 = vadd.f32 0.0, %v2005
  %v2007 = vpop.f32.mrb[0].mxu0
  %v2008 = vpop.f32.mrb[0].mxu0
  %v2009 = vpop.f32.mrb[0].mxu0
  %2010 = vdwg.mxu0
  %2012 = vset.pattern.permute.xlu0 0
  %2013 = vperm.xlu0 %2012, %v172
  %v2014 = vpop.permute.xlu0 %2013
  %2017 = vset.pattern.permute.xlu0 0
  %2018 = vperm.xlu0 %2017, %v173
  %v2019 = vpop.permute.xlu0 %2018
  %v2021 = vmul.f32 %v2006, %v2014
  %v2022 = vmul.f32 %v1038, %v2019
  %2024 = vset.pattern.permute.xlu0 0
  %2025 = vperm.xlu0 %2024, %v182
  %v2026 = vpop.permute.xlu0 %2025
  %2029 = vset.pattern.permute.xlu0 0
  %2030 = vperm.xlu0 %2029, %v183
  %v2031 = vpop.permute.xlu0 %2030
  %v2033 = vadd.f32 %v2021, %v2026
  %v2034 = vadd.f32 %v2022, %v2031
  %v2035 = vmax.f32 %v2033, 0.0
  %v2036 = vmax.f32 %v2034, 0.0
  %v2037 = vpack.c.bf16 %v2036, %v2035
  %v2070 = vunpack.c.l.b16 %v134
  %v2071 = vunpack.c.h.b16 %v134
  %v2072 = vunpack.c.l.b16 %v135
  %v2073 = vunpack.c.h.b16 %v135
  %v2074 = vunpack.c.l.b16 %v136
  %v2075 = vunpack.c.h.b16 %v136
  %v2076 = vunpack.c.l.b16 %v137
  %v2077 = vunpack.c.h.b16 %v137
  %v2078 = vunpack.c.l.b16 %v138
  %v2079 = vunpack.c.h.b16 %v138
  %v2080 = vunpack.c.l.b16 %v139
  %v2081 = vunpack.c.h.b16 %v139
  %v2082 = vunpack.c.l.b16 %v140
  %v2083 = vunpack.c.h.b16 %v140
  %v2084 = vunpack.c.l.b16 %v141
  %v2085 = vunpack.c.h.b16 %v141
  %v2086 = vunpack.c.l.b16 %v142
  %v2087 = vunpack.c.h.b16 %v142
  %v2088 = vunpack.c.l.b16 %v143
  %v2089 = vunpack.c.h.b16 %v143
  %v2090 = vunpack.c.l.b16 %v144
  %v2091 = vunpack.c.h.b16 %v144
  %v2092 = vunpack.c.l.b16 %v145
  %v2093 = vunpack.c.h.b16 %v145
  %v2094 = vunpack.c.l.b16 %v146
  %v2095 = vunpack.c.h.b16 %v146
  %v2096 = vunpack.c.l.b16 %v147
  %v2097 = vunpack.c.h.b16 %v147
  %v2098 = vunpack.c.l.b16 %v148
  %v2099 = vunpack.c.h.b16 %v148
  %v2100 = vunpack.c.l.b16 %v149
  %v2101 = vunpack.c.h.b16 %v149
  %v2102 = vunpack.c.l.b16 %v150
  %v2103 = vunpack.c.h.b16 %v150
  %v2104 = vunpack.c.l.b16 %v151
  %v2105 = vunpack.c.h.b16 %v151
  %v2106 = vunpack.c.l.b16 %v152
  %v2107 = vunpack.c.h.b16 %v152
  %v2108 = vunpack.c.l.b16 %v153
  %v2109 = vunpack.c.h.b16 %v153
  %v2110 = vunpack.c.l.b16 %v154
  %v2111 = vunpack.c.h.b16 %v154
  %v2112 = vunpack.c.l.b16 %v155
  %v2113 = vunpack.c.h.b16 %v155
  %v2114 = vunpack.c.l.b16 %v156
  %v2115 = vunpack.c.h.b16 %v156
  %v2116 = vunpack.c.l.b16 %v157
  %v2117 = vunpack.c.h.b16 %v157
  %v2118 = vunpack.c.l.b16 %v158
  %v2119 = vunpack.c.h.b16 %v158
  %v2120 = vunpack.c.l.b16 %v159
  %v2121 = vunpack.c.h.b16 %v159
  %v2122 = vunpack.c.l.b16 %v160
  %v2123 = vunpack.c.h.b16 %v160
  %v2124 = vunpack.c.l.b16 %v161
  %v2125 = vunpack.c.h.b16 %v161
  %v2126 = vunpack.c.l.b16 %v162
  %v2127 = vunpack.c.h.b16 %v162
  %v2128 = vunpack.c.l.b16 %v163
  %v2129 = vunpack.c.h.b16 %v163
  %v2130 = vunpack.c.l.b16 %v164
  %v2131 = vunpack.c.h.b16 %v164
  %v2132 = vunpack.c.l.b16 %v165
  %v2133 = vunpack.c.h.b16 %v165
  %v2134 = vpack.c.b16 %v2074, %v2070
  %v2135 = vpack.c.b16 %v2075, %v2071
  %v2136 = vpack.c.b16 %v2076, %v2072
  %v2137 = vpack.c.b16 %v2077, %v2073
  %v2138 = vpack.c.b16 %v2082, %v2078
  %v2139 = vpack.c.b16 %v2083, %v2079
  %v2140 = vpack.c.b16 %v2084, %v2080
  %v2141 = vpack.c.b16 %v2085, %v2081
  %v2142 = vpack.c.b16 %v2090, %v2086
  %v2143 = vpack.c.b16 %v2091, %v2087
  %v2144 = vpack.c.b16 %v2092, %v2088
  %v2145 = vpack.c.b16 %v2093, %v2089
  %v2146 = vpack.c.b16 %v2098, %v2094
  %v2147 = vpack.c.b16 %v2099, %v2095
  %v2148 = vpack.c.b16 %v2100, %v2096
  %v2149 = vpack.c.b16 %v2101, %v2097
  %v2150 = vpack.c.b16 %v2106, %v2102
  %v2151 = vpack.c.b16 %v2107, %v2103
  %v2152 = vpack.c.b16 %v2108, %v2104
  %v2153 = vpack.c.b16 %v2109, %v2105
  %v2154 = vpack.c.b16 %v2114, %v2110
  %v2155 = vpack.c.b16 %v2115, %v2111
  %v2156 = vpack.c.b16 %v2116, %v2112
  %v2157 = vpack.c.b16 %v2117, %v2113
  %v2158 = vpack.c.b16 %v2122, %v2118
  %v2159 = vpack.c.b16 %v2123, %v2119
  %v2160 = vpack.c.b16 %v2124, %v2120
  %v2161 = vpack.c.b16 %v2125, %v2121
  %v2162 = vpack.c.b16 %v2130, %v2126
  %v2163 = vpack.c.b16 %v2131, %v2127
  %v2164 = vpack.c.b16 %v2132, %v2128
  %v2165 = vpack.c.b16 %v2133, %v2129
  %2198 = vmatprep.subr.bf16.mxu0 %v2135
  %2199 = vmatpush1.bf16.msra.mxu0 %v2134
  %2200 = vmatprep.subr.bf16.mxu0 %v2139
  %2201 = vmatpush1.bf16.msra.mxu0 %v2138
  %2202 = vmatprep.subr.bf16.mxu0 %v2143
  %2203 = vmatpush1.bf16.msra.mxu0 %v2142
  %2204 = vmatprep.subr.bf16.mxu0 %v2147
  %2205 = vmatpush1.bf16.msra.mxu0 %v2146
  %2206 = vmatprep.subr.bf16.mxu0 %v2151
  %2207 = vmatpush1.bf16.msra.mxu0 %v2150
  %2208 = vmatprep.subr.bf16.mxu0 %v2155
  %2209 = vmatpush1.bf16.msra.mxu0 %v2154
  %2210 = vmatprep.subr.bf16.mxu0 %v2159
  %2211 = vmatpush1.bf16.msra.mxu0 %v2158
  %2212 = vmatprep.subr.bf16.mxu0 %v2163
  %2213 = vmatpush1.bf16.msra.mxu0 %v2162
  %2214 = vmatprep.subr.bf16.mxu0 0
  %2215 = vmatpush1.bf16.msra.mxu0 0
  %2216 = vmatprep.subr.bf16.mxu0 0
  %2217 = vmatpush1.bf16.msra.mxu0 0
  %2218 = vmatprep.subr.bf16.mxu0 0
  %2219 = vmatpush1.bf16.msra.mxu0 0
  %2220 = vmatprep.subr.bf16.mxu0 0
  %2221 = vmatpush1.bf16.msra.mxu0 0
  %2222 = vmatprep.subr.bf16.mxu0 0
  %2223 = vmatpush1.bf16.msra.mxu0 0
  %2224 = vmatprep.subr.bf16.mxu0 0
  %2225 = vmatpush1.bf16.msra.mxu0 0
  %2226 = vmatprep.subr.bf16.mxu0 0
  %2227 = vmatpush1.bf16.msra.mxu0 0
  %2228 = vmatprep.subr.bf16.mxu0 0
  %2229 = vmatpush1.bf16.msra.mxu0 0
  %2230 = vmatprep.mubr.bf16.mxu0 0
  %2231 = vmatmul.mubr.bf16.gmra.mrb[0].mxu0 %v2037
  %v2232 = vpop.f32.mrb[0].mxu0
  %v2233 = vadd.f32 0.0, %v2232
  %v2234 = vpop.f32.mrb[0].mxu0
  %v2235 = vadd.f32 0.0, %v2234
  %v2236 = vpop.f32.mrb[0].mxu0
  %v2237 = vadd.f32 0.0, %v2236
  %v2238 = vpop.f32.mrb[0].mxu0
  %v2239 = vadd.f32 0.0, %v2238
  %2240 = vdwg.mxu0
  %2241 = vmatprep.subr.bf16.mxu0 %v2137
  %2242 = vmatpush1.bf16.msra.mxu0 %v2136
  %2243 = vmatprep.subr.bf16.mxu0 %v2141
  %2244 = vmatpush1.bf16.msra.mxu0 %v2140
  %2245 = vmatprep.subr.bf16.mxu0 %v2145
  %2246 = vmatpush1.bf16.msra.mxu0 %v2144
  %2247 = vmatprep.subr.bf16.mxu0 %v2149
  %2248 = vmatpush1.bf16.msra.mxu0 %v2148
  %2249 = vmatprep.subr.bf16.mxu0 %v2153
  %2250 = vmatpush1.bf16.msra.mxu0 %v2152
  %2251 = vmatprep.subr.bf16.mxu0 %v2157
  %2252 = vmatpush1.bf16.msra.mxu0 %v2156
  %2253 = vmatprep.subr.bf16.mxu0 %v2161
  %2254 = vmatpush1.bf16.msra.mxu0 %v2160
  %2255 = vmatprep.subr.bf16.mxu0 %v2165
  %2256 = vmatpush1.bf16.msra.mxu0 %v2164
  %2257 = vmatprep.subr.bf16.mxu0 0
  %2258 = vmatpush1.bf16.msra.mxu0 0
  %2259 = vmatprep.subr.bf16.mxu0 0
  %2260 = vmatpush1.bf16.msra.mxu0 0
  %2261 = vmatprep.subr.bf16.mxu0 0
  %2262 = vmatpush1.bf16.msra.mxu0 0
  %2263 = vmatprep.subr.bf16.mxu0 0
  %2264 = vmatpush1.bf16.msra.mxu0 0
  %2265 = vmatprep.subr.bf16.mxu0 0
  %2266 = vmatpush1.bf16.msra.mxu0 0
  %2267 = vmatprep.subr.bf16.mxu0 0
  %2268 = vmatpush1.bf16.msra.mxu0 0
  %2269 = vmatprep.subr.bf16.mxu0 0
  %2270 = vmatpush1.bf16.msra.mxu0 0
  %2271 = vmatprep.subr.bf16.mxu0 0
  %2272 = vmatpush1.bf16.msra.mxu0 0
  %2273 = vmatprep.mubr.bf16.mxu0 0
  %2274 = vmatmul.mubr.bf16.gmra.mrb[0].mxu0 %v2037
  %v2275 = vpop.f32.mrb[0].mxu0
  %v2276 = vadd.f32 0.0, %v2275
  %v2277 = vpop.f32.mrb[0].mxu0
  %v2278 = vadd.f32 0.0, %v2277
  %v2279 = vpop.f32.mrb[0].mxu0
  %v2280 = vadd.f32 0.0, %v2279
  %v2281 = vpop.f32.mrb[0].mxu0
  %v2282 = vadd.f32 0.0, %v2281
  %2283 = vdwg.mxu0
  %v2284 = vld [vmem:[%s2] sm:$0xff]
  %2287 = vrot.lane.b32.xlu0 %v2278, 17
  %v2288 = vpop.permute.xlu0 %2287
  %2289 = vrot.lane.b32.xlu0 %v2282, 17
  %v2290 = vpop.permute.xlu0 %2289
  %2299 = vrot.lane.b32.xlu0 %v2233, 17
  %v2300 = vpop.permute.xlu0 %2299
  %2301 = vrot.lane.b32.xlu0 %v2235, 17
  %v2302 = vpop.permute.xlu0 %2301
  %2303 = vrot.lane.b32.xlu0 %v2276, 17
  %v2304 = vpop.permute.xlu0 %2303
  %2305 = vrot.lane.b32.xlu0 %v2237, 17
  %v2306 = vpop.permute.xlu0 %2305
  %2307 = vrot.lane.b32.xlu0 %v2239, 17
  %v2308 = vpop.permute.xlu0 %2307
  %2309 = vrot.lane.b32.xlu0 %v2280, 17
  %v2310 = vpop.permute.xlu0 %2309
  %v2311 = vsel %vm222, %v2300, %v2302
  %v2312 = vsel %vm222, %v2302, %v2304
  %v2313 = vsel %vm222, %v2304, %v2288
  %v2314 = vsel %vm222, %v2306, %v2308
  %v2315 = vsel %vm222, %v2308, %v2310
  %v2316 = vsel %vm222, %v2310, %v2290
  %v2325 = vsel %vm222, %v2288, %v2300
  %v2326 = vsel %vm222, %v2290, %v2306
  %v2327 = vmul.f32 %v2325, %v234
  %v2328 = vmul.f32 %v2311, %v238
  %v2329 = vmul.f32 %v2312, %v242
  %v2330 = vmul.f32 %v2313, %v246
  %v2331 = vmul.f32 %v2326, %v234
  %v2332 = vmul.f32 %v2314, %v238
  %v2333 = vmul.f32 %v2315, %v242
  %v2334 = vmul.f32 %v2316, %v246
  %2335 = vrot.lane.b32.xlu0 %v2278, 16
  %v2336 = vpop.permute.xlu0 %2335
  %2337 = vrot.lane.b32.xlu0 %v2282, 16
  %v2338 = vpop.permute.xlu0 %2337
  %2341 = vrot.lane.b32.xlu0 %v2233, 16
  %v2342 = vpop.permute.xlu0 %2341
  %2343 = vrot.lane.b32.xlu0 %v2235, 16
  %v2344 = vpop.permute.xlu0 %2343
  %2345 = vrot.lane.b32.xlu0 %v2276, 16
  %v2346 = vpop.permute.xlu0 %2345
  %2347 = vrot.lane.b32.xlu0 %v2237, 16
  %v2348 = vpop.permute.xlu0 %2347
  %2349 = vrot.lane.b32.xlu0 %v2239, 16
  %v2350 = vpop.permute.xlu0 %2349
  %2351 = vrot.lane.b32.xlu0 %v2280, 16
  %v2352 = vpop.permute.xlu0 %2351
  %v2353 = vsel %vm260, %v2342, %v2344
  %v2354 = vsel %vm260, %v2344, %v2346
  %v2355 = vsel %vm260, %v2346, %v2336
  %v2356 = vsel %vm260, %v2348, %v2350
  %v2357 = vsel %vm260, %v2350, %v2352
  %v2358 = vsel %vm260, %v2352, %v2338
  %v2367 = vsel %vm260, %v2336, %v2342
  %v2368 = vsel %vm260, %v2338, %v2348
  %v2369 = vmul.f32 %v2367, %v272
  %v2370 = vmul.f32 %v2353, %v276
  %v2371 = vmul.f32 %v2354, %v280
  %v2372 = vmul.f32 %v2355, %v284
  %v2373 = vmul.f32 %v2368, %v272
  %v2374 = vmul.f32 %v2356, %v276
  %v2375 = vmul.f32 %v2357, %v280
  %v2376 = vmul.f32 %v2358, %v284
  %2377 = vrot.lane.b32.xlu0 %v2278, 15
  %v2378 = vpop.permute.xlu0 %2377
  %2379 = vrot.lane.b32.xlu0 %v2282, 15
  %v2380 = vpop.permute.xlu0 %2379
  %2383 = vrot.lane.b32.xlu0 %v2233, 15
  %v2384 = vpop.permute.xlu0 %2383
  %2385 = vrot.lane.b32.xlu0 %v2235, 15
  %v2386 = vpop.permute.xlu0 %2385
  %2387 = vrot.lane.b32.xlu0 %v2276, 15
  %v2388 = vpop.permute.xlu0 %2387
  %2389 = vrot.lane.b32.xlu0 %v2237, 15
  %v2390 = vpop.permute.xlu0 %2389
  %2391 = vrot.lane.b32.xlu0 %v2239, 15
  %v2392 = vpop.permute.xlu0 %2391
  %2393 = vrot.lane.b32.xlu0 %v2280, 15
  %v2394 = vpop.permute.xlu0 %2393
  %v2395 = vsel %vm298, %v2384, %v2386
  %v2396 = vsel %vm298, %v2386, %v2388
  %v2397 = vsel %vm298, %v2388, %v2378
  %v2398 = vsel %vm298, %v2390, %v2392
  %v2399 = vsel %vm298, %v2392, %v2394
  %v2400 = vsel %vm298, %v2394, %v2380
  %v2409 = vsel %vm298, %v2378, %v2384
  %v2410 = vsel %vm298, %v2380, %v2390
  %v2411 = vmul.f32 %v2409, %v310
  %v2412 = vmul.f32 %v2395, %v314
  %v2413 = vmul.f32 %v2396, %v318
  %v2414 = vmul.f32 %v2397, %v322
  %v2415 = vmul.f32 %v2410, %v310
  %v2416 = vmul.f32 %v2398, %v314
  %v2417 = vmul.f32 %v2399, %v318
  %v2418 = vmul.f32 %v2400, %v322
  %2419 = vrot.lane.b32.xlu0 %v2278, 1
  %v2420 = vpop.permute.xlu0 %2419
  %2421 = vrot.lane.b32.xlu0 %v2282, 1
  %v2422 = vpop.permute.xlu0 %2421
  %2425 = vrot.lane.b32.xlu0 %v2233, 1
  %v2426 = vpop.permute.xlu0 %2425
  %2427 = vrot.lane.b32.xlu0 %v2235, 1
  %v2428 = vpop.permute.xlu0 %2427
  %2429 = vrot.lane.b32.xlu0 %v2276, 1
  %v2430 = vpop.permute.xlu0 %2429
  %2431 = vrot.lane.b32.xlu0 %v2237, 1
  %v2432 = vpop.permute.xlu0 %2431
  %2433 = vrot.lane.b32.xlu0 %v2239, 1
  %v2434 = vpop.permute.xlu0 %2433
  %2435 = vrot.lane.b32.xlu0 %v2280, 1
  %v2436 = vpop.permute.xlu0 %2435
  %v2437 = vsel %vm336, %v2426, %v2428
  %v2438 = vsel %vm336, %v2428, %v2430
  %v2439 = vsel %vm336, %v2430, %v2420
  %v2440 = vsel %vm336, %v2432, %v2434
  %v2441 = vsel %vm336, %v2434, %v2436
  %v2442 = vsel %vm336, %v2436, %v2422
  %v2451 = vsel %vm336, %v2420, %v2426
  %v2452 = vsel %vm336, %v2422, %v2432
  %v2453 = vmul.f32 %v2451, %v348
  %v2454 = vmul.f32 %v2437, %v352
  %v2455 = vmul.f32 %v2438, %v356
  %v2456 = vmul.f32 %v2439, %v360
  %v2457 = vmul.f32 %v2452, %v348
  %v2458 = vmul.f32 %v2440, %v352
  %v2459 = vmul.f32 %v2441, %v356
  %v2460 = vmul.f32 %v2442, %v360
  %2461 = vrot.lane.b32.xlu0 %v2233, 127
  %v2462 = vpop.permute.xlu0 %2461
  %2463 = vrot.lane.b32.xlu0 %v2235, 127
  %v2464 = vpop.permute.xlu0 %2463
  %2465 = vrot.lane.b32.xlu0 %v2276, 127
  %v2466 = vpop.permute.xlu0 %2465
  %2467 = vrot.lane.b32.xlu0 %v2278, 127
  %v2468 = vpop.permute.xlu0 %2467
  %2469 = vrot.lane.b32.xlu0 %v2237, 127
  %v2470 = vpop.permute.xlu0 %2469
  %2471 = vrot.lane.b32.xlu0 %v2239, 127
  %v2472 = vpop.permute.xlu0 %2471
  %2473 = vrot.lane.b32.xlu0 %v2280, 127
  %v2474 = vpop.permute.xlu0 %2473
  %2475 = vrot.lane.b32.xlu0 %v2282, 127
  %v2476 = vpop.permute.xlu0 %2475
  %v2477 = vsel %vm373, %v2462, %v2464
  %v2478 = vsel %vm373, %v2464, %v2466
  %v2479 = vsel %vm373, %v2466, %v2468
  %v2480 = vsel %vm373, %v2470, %v2472
  %v2481 = vsel %vm373, %v2472, %v2474
  %v2482 = vsel %vm373, %v2474, %v2476
  %v2493 = vsel %vm373, %v2468, %v2462
  %v2494 = vsel %vm373, %v2476, %v2470
  %v2495 = vmul.f32 %v2477, %v386
  %v2496 = vmul.f32 %v2478, %v390
  %v2497 = vmul.f32 %v2479, %v394
  %v2498 = vmul.f32 %v2493, %v398
  %v2499 = vmul.f32 %v2480, %v386
  %v2500 = vmul.f32 %v2481, %v390
  %v2501 = vmul.f32 %v2482, %v394
  %v2502 = vmul.f32 %v2494, %v398
  %2503 = vrot.lane.b32.xlu0 %v2233, 113
  %v2504 = vpop.permute.xlu0 %2503
  %2505 = vrot.lane.b32.xlu0 %v2235, 113
  %v2506 = vpop.permute.xlu0 %2505
  %2507 = vrot.lane.b32.xlu0 %v2276, 113
  %v2508 = vpop.permute.xlu0 %2507
  %2509 = vrot.lane.b32.xlu0 %v2278, 113
  %v2510 = vpop.permute.xlu0 %2509
  %2511 = vrot.lane.b32.xlu0 %v2237, 113
  %v2512 = vpop.permute.xlu0 %2511
  %2513 = vrot.lane.b32.xlu0 %v2239, 113
  %v2514 = vpop.permute.xlu0 %2513
  %2515 = vrot.lane.b32.xlu0 %v2280, 113
  %v2516 = vpop.permute.xlu0 %2515
  %2517 = vrot.lane.b32.xlu0 %v2282, 113
  %v2518 = vpop.permute.xlu0 %2517
  %v2519 = vsel %vm411, %v2504, %v2506
  %v2520 = vsel %vm411, %v2506, %v2508
  %v2521 = vsel %vm411, %v2508, %v2510
  %v2522 = vsel %vm411, %v2512, %v2514
  %v2523 = vsel %vm411, %v2514, %v2516
  %v2524 = vsel %vm411, %v2516, %v2518
  %v2535 = vsel %vm411, %v2510, %v2504
  %v2536 = vsel %vm411, %v2518, %v2512
  %v2537 = vmul.f32 %v2519, %v424
  %v2538 = vmul.f32 %v2520, %v428
  %v2539 = vmul.f32 %v2521, %v432
  %v2540 = vmul.f32 %v2535, %v436
  %v2541 = vmul.f32 %v2522, %v424
  %v2542 = vmul.f32 %v2523, %v428
  %v2543 = vmul.f32 %v2524, %v432
  %v2544 = vmul.f32 %v2536, %v436
  %2545 = vrot.lane.b32.xlu0 %v2233, 112
  %v2546 = vpop.permute.xlu0 %2545
  %2547 = vrot.lane.b32.xlu0 %v2235, 112
  %v2548 = vpop.permute.xlu0 %2547
  %2549 = vrot.lane.b32.xlu0 %v2276, 112
  %v2550 = vpop.permute.xlu0 %2549
  %2551 = vrot.lane.b32.xlu0 %v2278, 112
  %v2552 = vpop.permute.xlu0 %2551
  %2553 = vrot.lane.b32.xlu0 %v2237, 112
  %v2554 = vpop.permute.xlu0 %2553
  %2555 = vrot.lane.b32.xlu0 %v2239, 112
  %v2556 = vpop.permute.xlu0 %2555
  %2557 = vrot.lane.b32.xlu0 %v2280, 112
  %v2558 = vpop.permute.xlu0 %2557
  %2559 = vrot.lane.b32.xlu0 %v2282, 112
  %v2560 = vpop.permute.xlu0 %2559
  %v2561 = vsel %vm449, %v2546, %v2548
  %v2562 = vsel %vm449, %v2548, %v2550
  %v2563 = vsel %vm449, %v2550, %v2552
  %v2564 = vsel %vm449, %v2554, %v2556
  %v2565 = vsel %vm449, %v2556, %v2558
  %v2566 = vsel %vm449, %v2558, %v2560
  %v2577 = vsel %vm449, %v2552, %v2546
  %v2578 = vsel %vm449, %v2560, %v2554
  %v2579 = vmul.f32 %v2561, %v462
  %v2580 = vmul.f32 %v2562, %v466
  %v2581 = vmul.f32 %v2563, %v470
  %v2582 = vmul.f32 %v2577, %v474
  %v2583 = vmul.f32 %v2564, %v462
  %v2584 = vmul.f32 %v2565, %v466
  %v2585 = vmul.f32 %v2566, %v470
  %v2586 = vmul.f32 %v2578, %v474
  %2587 = vrot.lane.b32.xlu0 %v2233, 111
  %v2588 = vpop.permute.xlu0 %2587
  %2589 = vrot.lane.b32.xlu0 %v2235, 111
  %v2590 = vpop.permute.xlu0 %2589
  %2591 = vrot.lane.b32.xlu0 %v2276, 111
  %v2592 = vpop.permute.xlu0 %2591
  %2593 = vrot.lane.b32.xlu0 %v2278, 111
  %v2594 = vpop.permute.xlu0 %2593
  %2595 = vrot.lane.b32.xlu0 %v2237, 111
  %v2596 = vpop.permute.xlu0 %2595
  %2597 = vrot.lane.b32.xlu0 %v2239, 111
  %v2598 = vpop.permute.xlu0 %2597
  %2599 = vrot.lane.b32.xlu0 %v2280, 111
  %v2600 = vpop.permute.xlu0 %2599
  %2601 = vrot.lane.b32.xlu0 %v2282, 111
  %v2602 = vpop.permute.xlu0 %2601
  %v2603 = vsel %vm487, %v2588, %v2590
  %v2604 = vsel %vm487, %v2590, %v2592
  %v2605 = vsel %vm487, %v2592, %v2594
  %v2606 = vsel %vm487, %v2596, %v2598
  %v2607 = vsel %vm487, %v2598, %v2600
  %v2608 = vsel %vm487, %v2600, %v2602
  %v2619 = vsel %vm487, %v2594, %v2588
  %v2620 = vsel %vm487, %v2602, %v2596
  %v2621 = vmul.f32 %v2603, %v500
  %v2622 = vmul.f32 %v2604, %v504
  %v2623 = vmul.f32 %v2605, %v508
  %v2624 = vmul.f32 %v2619, %v512
  %v2625 = vmul.f32 %v2606, %v500
  %v2626 = vmul.f32 %v2607, %v504
  %v2627 = vmul.f32 %v2608, %v508
  %v2628 = vmul.f32 %v2620, %v512
  %v2629 = vpack.c.bf16 %v2331, %v2327
  %v2630 = vpack.c.bf16 %v2332, %v2328
  %v2631 = vpack.c.bf16 %v2333, %v2329
  %v2632 = vpack.c.bf16 %v2334, %v2330
  %v2633 = vpack.c.bf16 %v2373, %v2369
  %v2634 = vpack.c.bf16 %v2374, %v2370
  %v2635 = vpack.c.bf16 %v2375, %v2371
  %v2636 = vpack.c.bf16 %v2376, %v2372
  %v2637 = vpack.c.bf16 %v2415, %v2411
  %v2638 = vpack.c.bf16 %v2416, %v2412
  %v2639 = vpack.c.bf16 %v2417, %v2413
  %v2640 = vpack.c.bf16 %v2418, %v2414
  %v2641 = vpack.c.bf16 %v2457, %v2453
  %v2642 = vpack.c.bf16 %v2458, %v2454
  %v2643 = vpack.c.bf16 %v2459, %v2455
  %v2644 = vpack.c.bf16 %v2460, %v2456
  %v2645 = vpack.c.bf16 %v2237, %v2233
  %v2646 = vpack.c.bf16 %v2239, %v2235
  %v2647 = vpack.c.bf16 %v2280, %v2276
  %v2648 = vpack.c.bf16 %v2282, %v2278
  %v2649 = vpack.c.bf16 %v2499, %v2495
  %v2650 = vpack.c.bf16 %v2500, %v2496
  %v2651 = vpack.c.bf16 %v2501, %v2497
  %v2652 = vpack.c.bf16 %v2502, %v2498
  %v2653 = vpack.c.bf16 %v2541, %v2537
  %v2654 = vpack.c.bf16 %v2542, %v2538
  %v2655 = vpack.c.bf16 %v2543, %v2539
  %v2656 = vpack.c.bf16 %v2544, %v2540
  %v2657 = vpack.c.bf16 %v2583, %v2579
  %v2658 = vpack.c.bf16 %v2584, %v2580
  %v2659 = vpack.c.bf16 %v2585, %v2581
  %v2660 = vpack.c.bf16 %v2586, %v2582
  %v2661 = vpack.c.bf16 %v2625, %v2621
  %v2662 = vpack.c.bf16 %v2626, %v2622
  %v2663 = vpack.c.bf16 %v2627, %v2623
  %v2664 = vpack.c.bf16 %v2628, %v2624
  %v2666 = vunpack.c.l.b16 %v2284
  %v2667 = vunpack.c.h.b16 %v2284
  %v2668 = vpack.c.b16 %v2666, %v2666
  %v2669 = vpack.c.b16 %v2667, %v2667
  %v2672 = vsel %vm260, %v2669, 0
  %2674 = vmatprep.subr.bf16.mxu0 %v2630
  %2675 = vmatpush1.bf16.msra.mxu0 %v2629
  %2676 = vmatprep.subr.bf16.mxu0 %v2634
  %2677 = vmatpush1.bf16.msra.mxu0 %v2633
  %2678 = vmatprep.subr.bf16.mxu0 %v2638
  %2679 = vmatpush1.bf16.msra.mxu0 %v2637
  %2680 = vmatprep.subr.bf16.mxu0 %v2642
  %2681 = vmatpush1.bf16.msra.mxu0 %v2641
  %2682 = vmatprep.subr.bf16.mxu0 %v2646
  %2683 = vmatpush1.bf16.msra.mxu0 %v2645
  %2684 = vmatprep.subr.bf16.mxu0 %v2650
  %2685 = vmatpush1.bf16.msra.mxu0 %v2649
  %2686 = vmatprep.subr.bf16.mxu0 %v2654
  %2687 = vmatpush1.bf16.msra.mxu0 %v2653
  %2688 = vmatprep.subr.bf16.mxu0 %v2658
  %2689 = vmatpush1.bf16.msra.mxu0 %v2657
  %2690 = vmatprep.subr.bf16.mxu0 %v2662
  %2691 = vmatpush1.bf16.msra.mxu0 %v2661
  %2692 = vmatprep.subr.bf16.mxu0 0
  %2693 = vmatpush1.bf16.msra.mxu0 0
  %2694 = vmatprep.subr.bf16.mxu0 0
  %2695 = vmatpush1.bf16.msra.mxu0 0
  %2696 = vmatprep.subr.bf16.mxu0 0
  %2697 = vmatpush1.bf16.msra.mxu0 0
  %2698 = vmatprep.subr.bf16.mxu0 0
  %2699 = vmatpush1.bf16.msra.mxu0 0
  %2700 = vmatprep.subr.bf16.mxu0 0
  %2701 = vmatpush1.bf16.msra.mxu0 0
  %2702 = vmatprep.subr.bf16.mxu0 0
  %2703 = vmatpush1.bf16.msra.mxu0 0
  %2704 = vmatprep.subr.bf16.mxu0 0
  %2705 = vmatpush1.bf16.msra.mxu0 0
  %2706 = vmatprep.mubr.bf16.mxu0 %v2672
  %2707 = vmatmul.mubr.bf16.gmra.mrb[0].mxu0 %v2668
  %v2708 = vpop.f32.mrb[0].mxu0
  %v2709 = vadd.f32 0.0, %v2708
  %v2710 = vpop.f32.mrb[0].mxu0
  %v2711 = vadd.f32 0.0, %v2710
  %v2712 = vpop.f32.mrb[0].mxu0
  %v2713 = vpop.f32.mrb[0].mxu0
  %2714 = vdwg.mxu0
  %2715 = vmatprep.subr.bf16.mxu0 %v2632
  %2716 = vmatpush1.bf16.msra.mxu0 %v2631
  %2717 = vmatprep.subr.bf16.mxu0 %v2636
  %2718 = vmatpush1.bf16.msra.mxu0 %v2635
  %2719 = vmatprep.subr.bf16.mxu0 %v2640
  %2720 = vmatpush1.bf16.msra.mxu0 %v2639
  %2721 = vmatprep.subr.bf16.mxu0 %v2644
  %2722 = vmatpush1.bf16.msra.mxu0 %v2643
  %2723 = vmatprep.subr.bf16.mxu0 %v2648
  %2724 = vmatpush1.bf16.msra.mxu0 %v2647
  %2725 = vmatprep.subr.bf16.mxu0 %v2652
  %2726 = vmatpush1.bf16.msra.mxu0 %v2651
  %2727 = vmatprep.subr.bf16.mxu0 %v2656
  %2728 = vmatpush1.bf16.msra.mxu0 %v2655
  %2729 = vmatprep.subr.bf16.mxu0 %v2660
  %2730 = vmatpush1.bf16.msra.mxu0 %v2659
  %2731 = vmatprep.subr.bf16.mxu0 %v2664
  %2732 = vmatpush1.bf16.msra.mxu0 %v2663
  %2733 = vmatprep.subr.bf16.mxu0 0
  %2734 = vmatpush1.bf16.msra.mxu0 0
  %2735 = vmatprep.subr.bf16.mxu0 0
  %2736 = vmatpush1.bf16.msra.mxu0 0
  %2737 = vmatprep.subr.bf16.mxu0 0
  %2738 = vmatpush1.bf16.msra.mxu0 0
  %2739 = vmatprep.subr.bf16.mxu0 0
  %2740 = vmatpush1.bf16.msra.mxu0 0
  %2741 = vmatprep.subr.bf16.mxu0 0
  %2742 = vmatpush1.bf16.msra.mxu0 0
  %2743 = vmatprep.subr.bf16.mxu0 0
  %2744 = vmatpush1.bf16.msra.mxu0 0
  %2745 = vmatprep.subr.bf16.mxu0 0
  %2746 = vmatpush1.bf16.msra.mxu0 0
  %2747 = vmatprep.mubr.bf16.mxu0 %v2672
  %2748 = vmatmul.mubr.bf16.gmra.mrb[0].mxu0 %v2668
  %v2749 = vpop.f32.mrb[0].mxu0
  %v2750 = vadd.f32 0.0, %v2749
  %v2751 = vpop.f32.mrb[0].mxu0
  %v2752 = vadd.f32 0.0, %v2751
  %v2753 = vpop.f32.mrb[0].mxu0
  %v2754 = vpop.f32.mrb[0].mxu0
  %2755 = vdwg.mxu0
  %2757 = vset.pattern.permute.xlu0 0
  %2758 = vperm.xlu0 %2757, %v174
  %v2759 = vpop.permute.xlu0 %2758
  %v2761 = vmul.f32 %v2709, %v2759
  %v2762 = vmul.f32 %v2711, %v2759
  %v2763 = vmul.f32 %v2750, %v2759
  %v2764 = vmul.f32 %v2752, %v2759
  %2766 = vset.pattern.permute.xlu0 0
  %2767 = vperm.xlu0 %2766, %v184
  %v2768 = vpop.permute.xlu0 %2767
  %v2770 = vadd.f32 %v2761, %v2768
  %v2771 = vadd.f32 %v2762, %v2768
  %v2772 = vadd.f32 %v2763, %v2768
  %v2773 = vadd.f32 %v2764, %v2768
  %v2774 = vmax.f32 %v2770, 0.0
  %v2775 = vmax.f32 %v2771, 0.0
  %v2776 = vmax.f32 %v2772, 0.0
  %v2777 = vmax.f32 %v2773, 0.0
  %s2778 = scalar_lea.vmem %s1, 24
  %v2779 = vld [vmem:[%s2778] sm:$0xf]
  %2781 = vrot.lane.b32.xlu0 %v2777, 17
  %v2782 = vpop.permute.xlu0 %2781
  %2787 = vrot.lane.b32.xlu0 %v2774, 17
  %v2788 = vpop.permute.xlu0 %2787
  %2789 = vrot.lane.b32.xlu0 %v2775, 17
  %v2790 = vpop.permute.xlu0 %2789
  %2791 = vrot.lane.b32.xlu0 %v2776, 17
  %v2792 = vpop.permute.xlu0 %2791
  %v2793 = vsel %vm222, %v2788, %v2790
  %v2794 = vsel %vm222, %v2790, %v2792
  %v2795 = vsel %vm222, %v2792, %v2782
  %v2800 = vsel %vm222, %v2782, %v2788
  %v2801 = vmul.f32 %v2800, %v234
  %v2802 = vmul.f32 %v2793, %v238
  %v2803 = vmul.f32 %v2794, %v242
  %v2804 = vmul.f32 %v2795, %v246
  %2805 = vrot.lane.b32.xlu0 %v2777, 16
  %v2806 = vpop.permute.xlu0 %2805
  %2808 = vrot.lane.b32.xlu0 %v2774, 16
  %v2809 = vpop.permute.xlu0 %2808
  %2810 = vrot.lane.b32.xlu0 %v2775, 16
  %v2811 = vpop.permute.xlu0 %2810
  %2812 = vrot.lane.b32.xlu0 %v2776, 16
  %v2813 = vpop.permute.xlu0 %2812
  %v2814 = vsel %vm260, %v2809, %v2811
  %v2815 = vsel %vm260, %v2811, %v2813
  %v2816 = vsel %vm260, %v2813, %v2806
  %v2821 = vsel %vm260, %v2806, %v2809
  %v2822 = vmul.f32 %v2821, %v272
  %v2823 = vmul.f32 %v2814, %v276
  %v2824 = vmul.f32 %v2815, %v280
  %v2825 = vmul.f32 %v2816, %v284
  %2826 = vrot.lane.b32.xlu0 %v2777, 15
  %v2827 = vpop.permute.xlu0 %2826
  %2829 = vrot.lane.b32.xlu0 %v2774, 15
  %v2830 = vpop.permute.xlu0 %2829
  %2831 = vrot.lane.b32.xlu0 %v2775, 15
  %v2832 = vpop.permute.xlu0 %2831
  %2833 = vrot.lane.b32.xlu0 %v2776, 15
  %v2834 = vpop.permute.xlu0 %2833
  %v2835 = vsel %vm298, %v2830, %v2832
  %v2836 = vsel %vm298, %v2832, %v2834
  %v2837 = vsel %vm298, %v2834, %v2827
  %v2842 = vsel %vm298, %v2827, %v2830
  %v2843 = vmul.f32 %v2842, %v310
  %v2844 = vmul.f32 %v2835, %v314
  %v2845 = vmul.f32 %v2836, %v318
  %v2846 = vmul.f32 %v2837, %v322
  %2847 = vrot.lane.b32.xlu0 %v2777, 1
  %v2848 = vpop.permute.xlu0 %2847
  %2850 = vrot.lane.b32.xlu0 %v2774, 1
  %v2851 = vpop.permute.xlu0 %2850
  %2852 = vrot.lane.b32.xlu0 %v2775, 1
  %v2853 = vpop.permute.xlu0 %2852
  %2854 = vrot.lane.b32.xlu0 %v2776, 1
  %v2855 = vpop.permute.xlu0 %2854
  %v2856 = vsel %vm336, %v2851, %v2853
  %v2857 = vsel %vm336, %v2853, %v2855
  %v2858 = vsel %vm336, %v2855, %v2848
  %v2863 = vsel %vm336, %v2848, %v2851
  %v2864 = vmul.f32 %v2863, %v348
  %v2865 = vmul.f32 %v2856, %v352
  %v2866 = vmul.f32 %v2857, %v356
  %v2867 = vmul.f32 %v2858, %v360
  %2868 = vrot.lane.b32.xlu0 %v2774, 127
  %v2869 = vpop.permute.xlu0 %2868
  %2870 = vrot.lane.b32.xlu0 %v2775, 127
  %v2871 = vpop.permute.xlu0 %2870
  %2872 = vrot.lane.b32.xlu0 %v2776, 127
  %v2873 = vpop.permute.xlu0 %2872
  %2874 = vrot.lane.b32.xlu0 %v2777, 127
  %v2875 = vpop.permute.xlu0 %2874
  %v2876 = vsel %vm373, %v2869, %v2871
  %v2877 = vsel %vm373, %v2871, %v2873
  %v2878 = vsel %vm373, %v2873, %v2875
  %v2884 = vsel %vm373, %v2875, %v2869
  %v2885 = vmul.f32 %v2876, %v386
  %v2886 = vmul.f32 %v2877, %v390
  %v2887 = vmul.f32 %v2878, %v394
  %v2888 = vmul.f32 %v2884, %v398
  %2889 = vrot.lane.b32.xlu0 %v2774, 113
  %v2890 = vpop.permute.xlu0 %2889
  %2891 = vrot.lane.b32.xlu0 %v2775, 113
  %v2892 = vpop.permute.xlu0 %2891
  %2893 = vrot.lane.b32.xlu0 %v2776, 113
  %v2894 = vpop.permute.xlu0 %2893
  %2895 = vrot.lane.b32.xlu0 %v2777, 113
  %v2896 = vpop.permute.xlu0 %2895
  %v2897 = vsel %vm411, %v2890, %v2892
  %v2898 = vsel %vm411, %v2892, %v2894
  %v2899 = vsel %vm411, %v2894, %v2896
  %v2905 = vsel %vm411, %v2896, %v2890
  %v2906 = vmul.f32 %v2897, %v424
  %v2907 = vmul.f32 %v2898, %v428
  %v2908 = vmul.f32 %v2899, %v432
  %v2909 = vmul.f32 %v2905, %v436
  %2910 = vrot.lane.b32.xlu0 %v2774, 112
  %v2911 = vpop.permute.xlu0 %2910
  %2912 = vrot.lane.b32.xlu0 %v2775, 112
  %v2913 = vpop.permute.xlu0 %2912
  %2914 = vrot.lane.b32.xlu0 %v2776, 112
  %v2915 = vpop.permute.xlu0 %2914
  %2916 = vrot.lane.b32.xlu0 %v2777, 112
  %v2917 = vpop.permute.xlu0 %2916
  %v2918 = vsel %vm449, %v2911, %v2913
  %v2919 = vsel %vm449, %v2913, %v2915
  %v2920 = vsel %vm449, %v2915, %v2917
  %v2926 = vsel %vm449, %v2917, %v2911
  %v2927 = vmul.f32 %v2918, %v462
  %v2928 = vmul.f32 %v2919, %v466
  %v2929 = vmul.f32 %v2920, %v470
  %v2930 = vmul.f32 %v2926, %v474
  %2931 = vrot.lane.b32.xlu0 %v2774, 111
  %v2932 = vpop.permute.xlu0 %2931
  %2933 = vrot.lane.b32.xlu0 %v2775, 111
  %v2934 = vpop.permute.xlu0 %2933
  %2935 = vrot.lane.b32.xlu0 %v2776, 111
  %v2936 = vpop.permute.xlu0 %2935
  %2937 = vrot.lane.b32.xlu0 %v2777, 111
  %v2938 = vpop.permute.xlu0 %2937
  %v2939 = vsel %vm487, %v2932, %v2934
  %v2940 = vsel %vm487, %v2934, %v2936
  %v2941 = vsel %vm487, %v2936, %v2938
  %v2947 = vsel %vm487, %v2938, %v2932
  %v2948 = vmul.f32 %v2939, %v500
  %v2949 = vmul.f32 %v2940, %v504
  %v2950 = vmul.f32 %v2941, %v508
  %v2951 = vmul.f32 %v2947, %v512
  %v2952 = vpack.c.bf16 %v2822, %v2801
  %v2953 = vpack.c.bf16 %v2823, %v2802
  %v2954 = vpack.c.bf16 %v2824, %v2803
  %v2955 = vpack.c.bf16 %v2825, %v2804
  %v2956 = vpack.c.bf16 %v2864, %v2843
  %v2957 = vpack.c.bf16 %v2865, %v2844
  %v2958 = vpack.c.bf16 %v2866, %v2845
  %v2959 = vpack.c.bf16 %v2867, %v2846
  %v2960 = vpack.c.bf16 %v2885, %v2774
  %v2961 = vpack.c.bf16 %v2886, %v2775
  %v2962 = vpack.c.bf16 %v2887, %v2776
  %v2963 = vpack.c.bf16 %v2888, %v2777
  %v2964 = vpack.c.bf16 %v2927, %v2906
  %v2965 = vpack.c.bf16 %v2928, %v2907
  %v2966 = vpack.c.bf16 %v2929, %v2908
  %v2967 = vpack.c.bf16 %v2930, %v2909
  %v2968 = vpack.c.bf16 %v2948, %v2948
  %v2969 = vpack.c.bf16 %v2949, %v2949
  %v2970 = vpack.c.bf16 %v2950, %v2950
  %v2971 = vpack.c.bf16 %v2951, %v2951
  %2973 = vset.pattern.permute.xlu0 0
  %2974 = vperm.xlu0 %2973, %v185
  %v2975 = vpop.permute.xlu0 %2974
  %v2978 = vsel %vm537, %v2779, 0
  %v2981 = vsel %vm541, %v2968, 0
  %v2984 = vsel %vm541, %v2969, 0
  %v2987 = vsel %vm541, %v2970, 0
  %v2990 = vsel %vm541, %v2971, 0
  %2992 = vmatprep.subr.bf16.mxu0 %v2953
  %2993 = vmatpush1.bf16.msra.mxu0 %v2952
  %2994 = vmatprep.subr.bf16.mxu0 %v2957
  %2995 = vmatpush1.bf16.msra.mxu0 %v2956
  %2996 = vmatprep.subr.bf16.mxu0 %v2961
  %2997 = vmatpush1.bf16.msra.mxu0 %v2960
  %2998 = vmatprep.subr.bf16.mxu0 %v2965
  %2999 = vmatpush1.bf16.msra.mxu0 %v2964
  %3000 = vmatprep.subr.bf16.mxu0 %v2984
  %3001 = vmatpush1.bf16.msra.mxu0 %v2981
  %3002 = vmatprep.subr.bf16.mxu0 0
  %3003 = vmatpush1.bf16.msra.mxu0 0
  %3004 = vmatprep.subr.bf16.mxu0 0
  %3005 = vmatpush1.bf16.msra.mxu0 0
  %3006 = vmatprep.subr.bf16.mxu0 0
  %3007 = vmatpush1.bf16.msra.mxu0 0
  %3008 = vmatprep.subr.bf16.mxu0 0
  %3009 = vmatpush1.bf16.msra.mxu0 0
  %3010 = vmatprep.subr.bf16.mxu0 0
  %3011 = vmatpush1.bf16.msra.mxu0 0
  %3012 = vmatprep.subr.bf16.mxu0 0
  %3013 = vmatpush1.bf16.msra.mxu0 0
  %3014 = vmatprep.subr.bf16.mxu0 0
  %3015 = vmatpush1.bf16.msra.mxu0 0
  %3016 = vmatprep.subr.bf16.mxu0 0
  %3017 = vmatpush1.bf16.msra.mxu0 0
  %3018 = vmatprep.subr.bf16.mxu0 0
  %3019 = vmatpush1.bf16.msra.mxu0 0
  %3020 = vmatprep.subr.bf16.mxu0 0
  %3021 = vmatpush1.bf16.msra.mxu0 0
  %3022 = vmatprep.subr.bf16.mxu0 0
  %3023 = vmatpush1.bf16.msra.mxu0 0
  %3024 = vmatprep.mubr.bf16.mxu0 0
  %3025 = vmatmul.mubr.bf16.gmra.mrb[0].mxu0 %v2978
  %v3026 = vpop.f32.mrb[0].mxu0
  %v3027 = vadd.f32 %v2975, %v3026
  %v3028 = vpop.f32.mrb[0].mxu0
  %v3029 = vadd.f32 %v2975, %v3028
  %v3030 = vpop.f32.mrb[0].mxu0
  %v3031 = vpop.f32.mrb[0].mxu0
  %3032 = vdwg.mxu0
  %3033 = vmatprep.subr.bf16.mxu0 %v2955
  %3034 = vmatpush1.bf16.msra.mxu0 %v2954
  %3035 = vmatprep.subr.bf16.mxu0 %v2959
  %3036 = vmatpush1.bf16.msra.mxu0 %v2958
  %3037 = vmatprep.subr.bf16.mxu0 %v2963
  %3038 = vmatpush1.bf16.msra.mxu0 %v2962
  %3039 = vmatprep.subr.bf16.mxu0 %v2967
  %3040 = vmatpush1.bf16.msra.mxu0 %v2966
  %3041 = vmatprep.subr.bf16.mxu0 %v2990
  %3042 = vmatpush1.bf16.msra.mxu0 %v2987
  %3043 = vmatprep.subr.bf16.mxu0 0
  %3044 = vmatpush1.bf16.msra.mxu0 0
  %3045 = vmatprep.subr.bf16.mxu0 0
  %3046 = vmatpush1.bf16.msra.mxu0 0
  %3047 = vmatprep.subr.bf16.mxu0 0
  %3048 = vmatpush1.bf16.msra.mxu0 0
  %3049 = vmatprep.subr.bf16.mxu0 0
  %3050 = vmatpush1.bf16.msra.mxu0 0
  %3051 = vmatprep.subr.bf16.mxu0 0
  %3052 = vmatpush1.bf16.msra.mxu0 0
  %3053 = vmatprep.subr.bf16.mxu0 0
  %3054 = vmatpush1.bf16.msra.mxu0 0
  %3055 = vmatprep.subr.bf16.mxu0 0
  %3056 = vmatpush1.bf16.msra.mxu0 0
  %3057 = vmatprep.subr.bf16.mxu0 0
  %3058 = vmatpush1.bf16.msra.mxu0 0
  %3059 = vmatprep.subr.bf16.mxu0 0
  %3060 = vmatpush1.bf16.msra.mxu0 0
  %3061 = vmatprep.subr.bf16.mxu0 0
  %3062 = vmatpush1.bf16.msra.mxu0 0
  %3063 = vmatprep.subr.bf16.mxu0 0
  %3064 = vmatpush1.bf16.msra.mxu0 0
  %3065 = vmatprep.mubr.bf16.mxu0 0
  %3066 = vmatmul.mubr.bf16.gmra.mrb[0].mxu0 %v2978
  %v3067 = vpop.f32.mrb[0].mxu0
  %v3068 = vadd.f32 %v2975, %v3067
  %v3069 = vpop.f32.mrb[0].mxu0
  %v3070 = vadd.f32 %v2975, %v3069
  %v3071 = vpop.f32.mrb[0].mxu0
  %v3072 = vpop.f32.mrb[0].mxu0
  %3073 = vdwg.mxu0
  %v3074 = vadd.f32 %v3027, %v36
  %v3075 = vadd.f32 %v3029, %v37
  %v3076 = vadd.f32 %v3068, %v38
  %v3077 = vadd.f32 %v3070, %v39
  %3078 = vst [vmem:[%s10] sm:$0xff] %v3074
  %3079 = vst [vmem:[%s10 + $0x8] sm:$0xff] %v3075
  %3080 = vst [vmem:[%s10 + $0x10] sm:$0xff] %v3076
  %3081 = vst [vmem:[%s10 + $0x18] sm:$0xff] %v3077
  // Predicated region
  $region42: #{unet_module_forward.1} parent=0 // pred_check
    _
  $region43: #{unet_module_forward.1} parent=0 // pred_check_branch
    %3083 = sbr.rel (0) target = $region45
  $region44: #{unet_module_forward.1} parent=0 // pred_region
    _
  $region45: #{unet_module_forward.1} parent=0 // pred_fallthru
    _
  // Predicated region
  $region46: #{unet_module_forward.1} parent=0 // pred_check
    _
  $region47: #{unet_module_forward.1} parent=0 // pred_check_branch
    %3085 = sbr.rel (0) target = $region49
  $region48: #{unet_module_forward.1} parent=0 // pred_region
    _
  $region49: #{unet_module_forward.1} parent=0 // pred_fallthru
    _

</llo_original>
